<compile_context>
chip_gen: v6e
topology: v6e:2x2x1
jax: 0.10.0
libtpu: 0.0.40
codegen_flags: <defaults>
</compile_context>

<pallas_src>
import jax
import jax.numpy as jnp
from jax import lax
from jax.experimental import pallas as pl
from jax.experimental.pallas import tpu as pltpu

# ---- small, module-consistent hyper-parameters -------------------------------
CNN_EMBED_DIM = 64      # RNN_input_size   (original default: 300)
H_RNN_LAYERS = 3
H_RNN = 32              # LSTM hidden size (original default: 256)
H_FC_DIM = 16           # fc1 output       (original default: 128)
NUM_CLASSES = 3
DROP_P = 0.3            # inference mode -> identity
BN_EPS = 1e-5

BATCH = 2
SEQ = 8


# ------------------------------- Pallas kernel --------------------------------
def decoder_rnn_kernel(x_ref,                                   # (T*B, E)  f32, t-major rows
                       wih0, whh0, b0,                          # layer 0 LSTM weights
                       wih1, whh1, b1,                          # layer 1
                       wih2, whh2, b2,                          # layer 2
                       fc1_w, fc1_b,                            # (H, F), (1, F)  (BN folded in)
                       fc2_w, fc2_b,                            # (F, C), (1, C)
                       out_ref,                                 # (B, C)
                       seq_ref,                                 # scratch (T*B, H)
                       xproj_ref):                              # scratch (T*B, 4H)
    B = out_ref.shape[0]
    TB = x_ref.shape[0]
    T = TB // B
    H = whh0.shape[0]                                           # w_hh is (H, 4H)

    w_ih = (wih0, wih1, wih2)
    w_hh = (whh0, whh1, whh2)
    bias = (b0, b1, b2)

    h_top = None
    for l in range(H_RNN_LAYERS):
        src = x_ref if l == 0 else seq_ref
        # Bulk input projection (no recurrent dependence): one MXU-friendly matmul
        # over the whole sequence, off the serial critical path.  The full read of
        # seq_ref here completes before the loop below starts overwriting it.
        xproj_ref[...] = (
            jnp.dot(src[...], w_ih[l][...], preferred_element_type=jnp.float32)
            + bias[l][...])
        wh = w_hh[l][...]                                       # (H, 4H)
        last_layer = (l == H_RNN_LAYERS - 1)

        def body(t, carry, _wh=wh, _last=last_layer):
            h, c = carry
            row = pl.multiple_of(t * B, B)
            gates = (xproj_ref[pl.ds(row, B), :]
                     + jnp.dot(h, _wh, preferred_element_type=jnp.float32))
            # Gate order i, f, g, o (PyTorch).  NOTE: at H=32 these 32-lane slices
            # cost XLU relayouts; at the module's real default H=256 they fall on
            # vreg-aligned boundaries and are free.
            i = jax.nn.sigmoid(gates[:, 0 * H:1 * H])
            f = jax.nn.sigmoid(gates[:, 1 * H:2 * H])
            g = jnp.tanh(gates[:, 2 * H:3 * H])
            o = jax.nn.sigmoid(gates[:, 3 * H:4 * H])
            c_new = f * c + i * g
            h_new = o * jnp.tanh(c_new)
            if not _last:                      # last layer's output sequence is never read
                seq_ref[pl.ds(row, B), :] = h_new
            return (h_new, c_new)

        zero = jnp.zeros((B, H), jnp.float32)
        # T is tiny and static: full unroll gives the scheduler cross-iteration
        # visibility (overlap step t+1's h@W_hh with step t's gate math).
        h_top, _ = lax.fori_loop(0, T, body, (zero, zero), unroll=True)

    # Head on RNN_out[:, -1, :] == final hidden state of the top layer.
    # BatchNorm1d (eval, running stats) is algebraically folded into fc1_w / fc1_b.
    y = jnp.dot(h_top, fc1_w[...], preferred_element_type=jnp.float32) + fc1_b[...]
    y = jnp.maximum(y, 0.0)                                      # ReLU
    # TODO(synk): F.dropout(p=0.3, training=True) not implemented; eval-mode identity.
    out_ref[...] = jnp.dot(y, fc2_w[...], preferred_element_type=jnp.float32) + fc2_b[...]


# --------------------------------- wrapper ------------------------------------
def decoder_rnn_forward(x, params):
    """x: (B, T, E) float32  ->  logits (B, NUM_CLASSES) float32."""
    B, T, E = x.shape
    # (B, T, E) -> time-major 2-D slab (T*B, E): row t*B + b holds (batch b, step t).
    x2d = jnp.transpose(x, (1, 0, 2)).reshape(T * B, E)

    inputs = [x2d]
    for l in range(H_RNN_LAYERS):
        w_ih, w_hh, b_ih, b_hh = params[f"lstm{l}"]
        inputs += [w_ih.T, w_hh.T, (b_ih + b_hh)[None, :]]       # pre-transpose / fuse biases

    # Fold BatchNorm1d (eval) into fc1:
    #   bn(fc1(h)) = h @ (W1^T * s) + ((b1 - mean) * s + beta),  s = gamma * rsqrt(var + eps)
    s = params["bn_g"] * lax.rsqrt(params["bn_v"] + BN_EPS)
    fc1_w_fold = params["fc1_w"].T * s[None, :]                  # (H, F)
    fc1_b_fold = (params["fc1_b"] - params["bn_m"]) * s + params["bn_b"]
    inputs += [fc1_w_fold, fc1_b_fold[None, :],
               params["fc2_w"].T, params["fc2_b"][None, :]]

    vmem = pl.BlockSpec(memory_space=pltpu.MemorySpace.VMEM)
    return pl.pallas_call(
        decoder_rnn_kernel,
        out_shape=jax.ShapeDtypeStruct((B, NUM_CLASSES), jnp.float32),
        in_specs=[vmem] * len(inputs),
        out_specs=vmem,
        scratch_shapes=[pltpu.VMEM((T * B, H_RNN), jnp.float32),       # layer-output slab
                        pltpu.VMEM((T * B, 4 * H_RNN), jnp.float32)],  # bulk input projection
    )(*inputs)


# ----------------------------- pure-JAX reference -----------------------------
HIGHEST = lax.Precision.HIGHEST   # golden reference: full-precision matmuls


def reference_forward(x, params):
    B, T, _ = x.shape
    seq = x
    h_last = None
    for l in range(H_RNN_LAYERS):
        w_ih, w_hh, b_ih, b_hh = params[f"lstm{l}"]
        H = w_hh.shape[1]

        def step(carry, x_t):
            h, c = carry
            gates = (jnp.dot(x_t, w_ih.T, precision=HIGHEST) + b_ih
                     + jnp.dot(h, w_hh.T, precision=HIGHEST) + b_hh)
            i, f, g, o = jnp.split(gates, 4, axis=-1)
            c = jax.nn.sigmoid(f) * c + jax.nn.sigmoid(i) * jnp.tanh(g)
            h = jax.nn.sigmoid(o) * jnp.tanh(c)
            return (h, c), h

        (h_last, _), ys = lax.scan(step,
                                   (jnp.zeros((B, H)), jnp.zeros((B, H))),
                                   jnp.transpose(seq, (1, 0, 2)))
        seq = jnp.transpose(ys, (1, 0, 2))

    y = jnp.dot(h_last, params["fc1_w"].T, precision=HIGHEST) + params["fc1_b"]
    y = (y - params["bn_m"]) * lax.rsqrt(params["bn_v"] + BN_EPS) * params["bn_g"] + params["bn_b"]
    y = jnp.maximum(y, 0.0)
    return jnp.dot(y, params["fc2_w"].T, precision=HIGHEST) + params["fc2_b"]


# ------------------------------ deterministic init ----------------------------
def init_params(key):
    params = {}
    k = 1.0 / jnp.sqrt(H_RNN)
    for l in range(H_RNN_LAYERS):
        in_l = CNN_EMBED_DIM if l == 0 else H_RNN
        key, k1, k2, k3, k4 = jax.random.split(key, 5)
        params[f"lstm{l}"] = (
            jax.random.uniform(k1, (4 * H_RNN, in_l), jnp.float32, -k, k),   # weight_ih_l{l}
            jax.random.uniform(k2, (4 * H_RNN, H_RNN), jnp.float32, -k, k),  # weight_hh_l{l}
            jax.random.uniform(k3, (4 * H_RNN,), jnp.float32, -k, k),        # bias_ih_l{l}
            jax.random.uniform(k4, (4 * H_RNN,), jnp.float32, -k, k),        # bias_hh_l{l}
        )
    key, k1, k2, k3, k4 = jax.random.split(key, 5)
    params["fc1_w"] = jax.random.uniform(k1, (H_FC_DIM, H_RNN), jnp.float32, -0.1, 0.1)
    params["fc1_b"] = jax.random.uniform(k2, (H_FC_DIM,), jnp.float32, -0.1, 0.1)
    params["fc2_w"] = jax.random.uniform(k3, (NUM_CLASSES, H_FC_DIM), jnp.float32, -0.1, 0.1)
    params["fc2_b"] = jax.random.uniform(k4, (NUM_CLASSES,), jnp.float32, -0.1, 0.1)
    key, k1, k2, k3 = jax.random.split(key, 4)
    params["bn_g"] = 1.0 + 0.1 * jax.random.normal(k1, (H_FC_DIM,), jnp.float32)
    params["bn_b"] = 0.1 * jax.random.normal(k2, (H_FC_DIM,), jnp.float32)
    params["bn_m"] = 0.05 * jax.random.normal(k3, (H_FC_DIM,), jnp.float32)
    params["bn_v"] = jnp.ones((H_FC_DIM,), jnp.float32)
    return params


if __name__ == "__main__":
    key = jax.random.PRNGKey(0)
    key, kx = jax.random.split(key)
    params = init_params(key)
    x = jax.random.normal(kx, (BATCH, SEQ, CNN_EMBED_DIM), jnp.float32)  # (B, T, E)

    out = decoder_rnn_forward(x, params)
    out = jax.block_until_ready(out)

    ref = jax.block_until_ready(reference_forward(x, params))

    assert out.shape == (BATCH, NUM_CLASSES), out.shape
    assert bool(jnp.all(jnp.isfinite(out)))
    # Tightened 4x from the previous 2e-2; remaining slack covers possible
    # MXU f32 pass-count differences between the Pallas kernel and the
    # Precision.HIGHEST XLA reference (any gate-order / bias-fold bug is O(0.1+)).
    assert bool(jnp.allclose(out, ref, rtol=5e-3, atol=5e-3)), (out, ref)
    print("KERNEL_OK")
</pallas_src>

<mosaic_0001>
module attributes {stable_mosaic.version = 11 : i64} {
  func.func @decoder_rnn_kernel(%arg0: memref<16x64xf32, #tpu.memory_space<vmem>>, %arg1: memref<64x128xf32, #tpu.memory_space<vmem>>, %arg2: memref<32x128xf32, #tpu.memory_space<vmem>>, %arg3: memref<1x128xf32, #tpu.memory_space<vmem>>, %arg4: memref<32x128xf32, #tpu.memory_space<vmem>>, %arg5: memref<32x128xf32, #tpu.memory_space<vmem>>, %arg6: memref<1x128xf32, #tpu.memory_space<vmem>>, %arg7: memref<32x128xf32, #tpu.memory_space<vmem>>, %arg8: memref<32x128xf32, #tpu.memory_space<vmem>>, %arg9: memref<1x128xf32, #tpu.memory_space<vmem>>, %arg10: memref<32x16xf32, #tpu.memory_space<vmem>>, %arg11: memref<1x16xf32, #tpu.memory_space<vmem>>, %arg12: memref<16x3xf32, #tpu.memory_space<vmem>>, %arg13: memref<1x3xf32, #tpu.memory_space<vmem>>, %arg14: memref<2x3xf32, #tpu.memory_space<vmem>>, %arg15: memref<16x32xf32, #tpu.memory_space<vmem>>, %arg16: memref<16x128xf32, #tpu.memory_space<vmem>>) attributes {dimension_semantics = [], scalar_prefetch = 0 : i64, scratch_operands = 2 : i64, tpu.core_type = #tpu.core_type<tc>} {
    %c0 = arith.constant 0 : index
    %c0_0 = arith.constant 0 : index
    %0 = vector.load %arg0[%c0, %c0_0] : memref<16x64xf32, #tpu.memory_space<vmem>>, vector<16x64xf32>
    %c0_1 = arith.constant 0 : index
    %c0_2 = arith.constant 0 : index
    %1 = vector.load %arg1[%c0_1, %c0_2] : memref<64x128xf32, #tpu.memory_space<vmem>>, vector<64x128xf32>
    %cst = arith.constant dense<0.000000e+00> : vector<16x128xf32>
    %2 = tpu.matmul %0, %1, %cst {dimension_numbers = #tpu.dot_dimension_numbers<[1], [0], [0], [1], [0, 0, 1, 1], [], []>} : vector<16x64xf32>, vector<64x128xf32>, vector<16x128xf32> -> vector<16x128xf32>
    %c0_3 = arith.constant 0 : index
    %c0_4 = arith.constant 0 : index
    %3 = vector.load %arg3[%c0_3, %c0_4] : memref<1x128xf32, #tpu.memory_space<vmem>>, vector<1x128xf32>
    %4 = vector.broadcast %3 : vector<1x128xf32> to vector<16x128xf32>
    %5 = arith.addf %2, %4 : vector<16x128xf32>
    %c0_5 = arith.constant 0 : index
    %c0_6 = arith.constant 0 : index
    %6 = vector.load %arg16[%c0_5, %c0_6] : memref<16x128xf32, #tpu.memory_space<vmem>>, vector<16x128xf32>
    tpu.vector_store %arg16[%c0_5, %c0_6], %5 {strides = array<i32>} : memref<16x128xf32, #tpu.memory_space<vmem>>, vector<16x128xf32>,
    %c0_7 = arith.constant 0 : index
    %c0_8 = arith.constant 0 : index
    %7 = vector.load %arg2[%c0_7, %c0_8] : memref<32x128xf32, #tpu.memory_space<vmem>>, vector<32x128xf32>
    %cst_9 = arith.constant 0.000000e+00 : f32
    %8 = vector.broadcast %cst_9 : f32 to vector<2x32xf32>
    %c0_i32 = arith.constant 0 : i32
    %c2_i32 = arith.constant 2 : i32
    %9 = arith.muli %c0_i32, %c2_i32 : i32
    %10 = tpu.assume_multiple %9, 2 : i32
    %11 = arith.index_cast %10 : i32 to index
    %c0_10 = arith.constant 0 : index
    %12 = vector.load %arg16[%11, %c0_10] : memref<16x128xf32, #tpu.memory_space<vmem>>, vector<2x128xf32>
    %cst_11 = arith.constant dense<0.000000e+00> : vector<2x128xf32>
    %13 = tpu.matmul %8, %7, %cst_11 {dimension_numbers = #tpu.dot_dimension_numbers<[1], [0], [0], [1], [0, 0, 1, 1], [], []>} : vector<2x32xf32>, vector<32x128xf32>, vector<2x128xf32> -> vector<2x128xf32>
    %14 = arith.addf %12, %13 : vector<2x128xf32>
    %15 = vector.extract_strided_slice %14 {offsets = [0, 0], sizes = [2, 32], strides = [1, 1]} : vector<2x128xf32> to vector<2x32xf32>
    %16 = arith.negf %15 : vector<2x32xf32>
    %17 = math.exp %16 : vector<2x32xf32>
    %cst_12 = arith.constant 1.000000e+00 : f32
    %18 = vector.broadcast %cst_12 : f32 to vector<2x32xf32>
    %19 = arith.addf %18, %17 : vector<2x32xf32>
    %20 = arith.divf %18, %19 : vector<2x32xf32>
    %21 = vector.extract_strided_slice %14 {offsets = [0, 32], sizes = [2, 32], strides = [1, 1]} : vector<2x128xf32> to vector<2x32xf32>
    %22 = arith.negf %21 : vector<2x32xf32>
    %23 = math.exp %22 : vector<2x32xf32>
    %cst_13 = arith.constant 1.000000e+00 : f32
    %24 = vector.broadcast %cst_13 : f32 to vector<2x32xf32>
    %25 = arith.addf %24, %23 : vector<2x32xf32>
    %26 = arith.divf %24, %25 : vector<2x32xf32>
    %27 = vector.extract_strided_slice %14 {offsets = [0, 64], sizes = [2, 32], strides = [1, 1]} : vector<2x128xf32> to vector<2x32xf32>
    %28 = math.tanh %27 : vector<2x32xf32>
    %29 = vector.extract_strided_slice %14 {offsets = [0, 96], sizes = [2, 32], strides = [1, 1]} : vector<2x128xf32> to vector<2x32xf32>
    %30 = arith.negf %29 : vector<2x32xf32>
    %31 = math.exp %30 : vector<2x32xf32>
    %cst_14 = arith.constant 1.000000e+00 : f32
    %32 = vector.broadcast %cst_14 : f32 to vector<2x32xf32>
    %33 = arith.addf %32, %31 : vector<2x32xf32>
    %34 = arith.divf %32, %33 : vector<2x32xf32>
    %35 = arith.mulf %26, %8 : vector<2x32xf32>
    %36 = arith.mulf %20, %28 : vector<2x32xf32>
    %37 = arith.addf %35, %36 : vector<2x32xf32>
    %38 = math.tanh %37 : vector<2x32xf32>
    %39 = arith.mulf %34, %38 : vector<2x32xf32>
    %40 = arith.index_cast %10 : i32 to index
    %c0_15 = arith.constant 0 : index
    %41 = vector.load %arg15[%40, %c0_15] : memref<16x32xf32, #tpu.memory_space<vmem>>, vector<2x32xf32>
    tpu.vector_store %arg15[%40, %c0_15], %39 {strides = array<i32>} : memref<16x32xf32, #tpu.memory_space<vmem>>, vector<2x32xf32>,
    %c1_i32 = arith.constant 1 : i32
    %c2_i32_16 = arith.constant 2 : i32
    %42 = arith.muli %c1_i32, %c2_i32_16 : i32
    %43 = tpu.assume_multiple %42, 2 : i32
    %44 = arith.index_cast %43 : i32 to index
    %c0_17 = arith.constant 0 : index
    %45 = vector.load %arg16[%44, %c0_17] : memref<16x128xf32, #tpu.memory_space<vmem>>, vector<2x128xf32>
    %cst_18 = arith.constant dense<0.000000e+00> : vector<2x128xf32>
    %46 = tpu.matmul %39, %7, %cst_18 {dimension_numbers = #tpu.dot_dimension_numbers<[1], [0], [0], [1], [0, 0, 1, 1], [], []>} : vector<2x32xf32>, vector<32x128xf32>, vector<2x128xf32> -> vector<2x128xf32>
    %47 = arith.addf %45, %46 : vector<2x128xf32>
    %48 = vector.extract_strided_slice %47 {offsets = [0, 0], sizes = [2, 32], strides = [1, 1]} : vector<2x128xf32> to vector<2x32xf32>
    %49 = arith.negf %48 : vector<2x32xf32>
    %50 = math.exp %49 : vector<2x32xf32>
    %cst_19 = arith.constant 1.000000e+00 : f32
    %51 = vector.broadcast %cst_19 : f32 to vector<2x32xf32>
    %52 = arith.addf %51, %50 : vector<2x32xf32>
    %53 = arith.divf %51, %52 : vector<2x32xf32>
    %54 = vector.extract_strided_slice %47 {offsets = [0, 32], sizes = [2, 32], strides = [1, 1]} : vector<2x128xf32> to vector<2x32xf32>
    %55 = arith.negf %54 : vector<2x32xf32>
    %56 = math.exp %55 : vector<2x32xf32>
    %cst_20 = arith.constant 1.000000e+00 : f32
    %57 = vector.broadcast %cst_20 : f32 to vector<2x32xf32>
    %58 = arith.addf %57, %56 : vector<2x32xf32>
    %59 = arith.divf %57, %58 : vector<2x32xf32>
    %60 = vector.extract_strided_slice %47 {offsets = [0, 64], sizes = [2, 32], strides = [1, 1]} : vector<2x128xf32> to vector<2x32xf32>
    %61 = math.tanh %60 : vector<2x32xf32>
    %62 = vector.extract_strided_slice %47 {offsets = [0, 96], sizes = [2, 32], strides = [1, 1]} : vector<2x128xf32> to vector<2x32xf32>
    %63 = arith.negf %62 : vector<2x32xf32>
    %64 = math.exp %63 : vector<2x32xf32>
    %cst_21 = arith.constant 1.000000e+00 : f32
    %65 = vector.broadcast %cst_21 : f32 to vector<2x32xf32>
    %66 = arith.addf %65, %64 : vector<2x32xf32>
    %67 = arith.divf %65, %66 : vector<2x32xf32>
    %68 = arith.mulf %59, %37 : vector<2x32xf32>
    %69 = arith.mulf %53, %61 : vector<2x32xf32>
    %70 = arith.addf %68, %69 : vector<2x32xf32>
    %71 = math.tanh %70 : vector<2x32xf32>
    %72 = arith.mulf %67, %71 : vector<2x32xf32>
    %73 = arith.index_cast %43 : i32 to index
    %c0_22 = arith.constant 0 : index
    %74 = vector.load %arg15[%73, %c0_22] : memref<16x32xf32, #tpu.memory_space<vmem>>, vector<2x32xf32>
    tpu.vector_store %arg15[%73, %c0_22], %72 {strides = array<i32>} : memref<16x32xf32, #tpu.memory_space<vmem>>, vector<2x32xf32>,
    %c2_i32_23 = arith.constant 2 : i32
    %c2_i32_24 = arith.constant 2 : i32
    %75 = arith.muli %c2_i32_23, %c2_i32_24 : i32
    %76 = tpu.assume_multiple %75, 2 : i32
    %77 = arith.index_cast %76 : i32 to index
    %c0_25 = arith.constant 0 : index
    %78 = vector.load %arg16[%77, %c0_25] : memref<16x128xf32, #tpu.memory_space<vmem>>, vector<2x128xf32>
    %cst_26 = arith.constant dense<0.000000e+00> : vector<2x128xf32>
    %79 = tpu.matmul %72, %7, %cst_26 {dimension_numbers = #tpu.dot_dimension_numbers<[1], [0], [0], [1], [0, 0, 1, 1], [], []>} : vector<2x32xf32>, vector<32x128xf32>, vector<2x128xf32> -> vector<2x128xf32>
    %80 = arith.addf %78, %79 : vector<2x128xf32>
    %81 = vector.extract_strided_slice %80 {offsets = [0, 0], sizes = [2, 32], strides = [1, 1]} : vector<2x128xf32> to vector<2x32xf32>
    %82 = arith.negf %81 : vector<2x32xf32>
    %83 = math.exp %82 : vector<2x32xf32>
    %cst_27 = arith.constant 1.000000e+00 : f32
    %84 = vector.broadcast %cst_27 : f32 to vector<2x32xf32>
    %85 = arith.addf %84, %83 : vector<2x32xf32>
    %86 = arith.divf %84, %85 : vector<2x32xf32>
    %87 = vector.extract_strided_slice %80 {offsets = [0, 32], sizes = [2, 32], strides = [1, 1]} : vector<2x128xf32> to vector<2x32xf32>
    %88 = arith.negf %87 : vector<2x32xf32>
    %89 = math.exp %88 : vector<2x32xf32>
    %cst_28 = arith.constant 1.000000e+00 : f32
    %90 = vector.broadcast %cst_28 : f32 to vector<2x32xf32>
    %91 = arith.addf %90, %89 : vector<2x32xf32>
    %92 = arith.divf %90, %91 : vector<2x32xf32>
    %93 = vector.extract_strided_slice %80 {offsets = [0, 64], sizes = [2, 32], strides = [1, 1]} : vector<2x128xf32> to vector<2x32xf32>
    %94 = math.tanh %93 : vector<2x32xf32>
    %95 = vector.extract_strided_slice %80 {offsets = [0, 96], sizes = [2, 32], strides = [1, 1]} : vector<2x128xf32> to vector<2x32xf32>
    %96 = arith.negf %95 : vector<2x32xf32>
    %97 = math.exp %96 : vector<2x32xf32>
    %cst_29 = arith.constant 1.000000e+00 : f32
    %98 = vector.broadcast %cst_29 : f32 to vector<2x32xf32>
    %99 = arith.addf %98, %97 : vector<2x32xf32>
    %100 = arith.divf %98, %99 : vector<2x32xf32>
    %101 = arith.mulf %92, %70 : vector<2x32xf32>
    %102 = arith.mulf %86, %94 : vector<2x32xf32>
    %103 = arith.addf %101, %102 : vector<2x32xf32>
    %104 = math.tanh %103 : vector<2x32xf32>
    %105 = arith.mulf %100, %104 : vector<2x32xf32>
    %106 = arith.index_cast %76 : i32 to index
    %c0_30 = arith.constant 0 : index
    %107 = vector.load %arg15[%106, %c0_30] : memref<16x32xf32, #tpu.memory_space<vmem>>, vector<2x32xf32>
    tpu.vector_store %arg15[%106, %c0_30], %105 {strides = array<i32>} : memref<16x32xf32, #tpu.memory_space<vmem>>, vector<2x32xf32>,
    %c3_i32 = arith.constant 3 : i32
    %c2_i32_31 = arith.constant 2 : i32
    %108 = arith.muli %c3_i32, %c2_i32_31 : i32
    %109 = tpu.assume_multiple %108, 2 : i32
    %110 = arith.index_cast %109 : i32 to index
    %c0_32 = arith.constant 0 : index
    %111 = vector.load %arg16[%110, %c0_32] : memref<16x128xf32, #tpu.memory_space<vmem>>, vector<2x128xf32>
    %cst_33 = arith.constant dense<0.000000e+00> : vector<2x128xf32>
    %112 = tpu.matmul %105, %7, %cst_33 {dimension_numbers = #tpu.dot_dimension_numbers<[1], [0], [0], [1], [0, 0, 1, 1], [], []>} : vector<2x32xf32>, vector<32x128xf32>, vector<2x128xf32> -> vector<2x128xf32>
    %113 = arith.addf %111, %112 : vector<2x128xf32>
    %114 = vector.extract_strided_slice %113 {offsets = [0, 0], sizes = [2, 32], strides = [1, 1]} : vector<2x128xf32> to vector<2x32xf32>
    %115 = arith.negf %114 : vector<2x32xf32>
    %116 = math.exp %115 : vector<2x32xf32>
    %cst_34 = arith.constant 1.000000e+00 : f32
    %117 = vector.broadcast %cst_34 : f32 to vector<2x32xf32>
    %118 = arith.addf %117, %116 : vector<2x32xf32>
    %119 = arith.divf %117, %118 : vector<2x32xf32>
    %120 = vector.extract_strided_slice %113 {offsets = [0, 32], sizes = [2, 32], strides = [1, 1]} : vector<2x128xf32> to vector<2x32xf32>
    %121 = arith.negf %120 : vector<2x32xf32>
    %122 = math.exp %121 : vector<2x32xf32>
    %cst_35 = arith.constant 1.000000e+00 : f32
    %123 = vector.broadcast %cst_35 : f32 to vector<2x32xf32>
    %124 = arith.addf %123, %122 : vector<2x32xf32>
    %125 = arith.divf %123, %124 : vector<2x32xf32>
    %126 = vector.extract_strided_slice %113 {offsets = [0, 64], sizes = [2, 32], strides = [1, 1]} : vector<2x128xf32> to vector<2x32xf32>
    %127 = math.tanh %126 : vector<2x32xf32>
    %128 = vector.extract_strided_slice %113 {offsets = [0, 96], sizes = [2, 32], strides = [1, 1]} : vector<2x128xf32> to vector<2x32xf32>
    %129 = arith.negf %128 : vector<2x32xf32>
    %130 = math.exp %129 : vector<2x32xf32>
    %cst_36 = arith.constant 1.000000e+00 : f32
    %131 = vector.broadcast %cst_36 : f32 to vector<2x32xf32>
    %132 = arith.addf %131, %130 : vector<2x32xf32>
    %133 = arith.divf %131, %132 : vector<2x32xf32>
    %134 = arith.mulf %125, %103 : vector<2x32xf32>
    %135 = arith.mulf %119, %127 : vector<2x32xf32>
    %136 = arith.addf %134, %135 : vector<2x32xf32>
    %137 = math.tanh %136 : vector<2x32xf32>
    %138 = arith.mulf %133, %137 : vector<2x32xf32>
    %139 = arith.index_cast %109 : i32 to index
    %c0_37 = arith.constant 0 : index
    %140 = vector.load %arg15[%139, %c0_37] : memref<16x32xf32, #tpu.memory_space<vmem>>, vector<2x32xf32>
    tpu.vector_store %arg15[%139, %c0_37], %138 {strides = array<i32>} : memref<16x32xf32, #tpu.memory_space<vmem>>, vector<2x32xf32>,
    %c4_i32 = arith.constant 4 : i32
    %c2_i32_38 = arith.constant 2 : i32
    %141 = arith.muli %c4_i32, %c2_i32_38 : i32
    %142 = tpu.assume_multiple %141, 2 : i32
    %143 = arith.index_cast %142 : i32 to index
    %c0_39 = arith.constant 0 : index
    %144 = vector.load %arg16[%143, %c0_39] : memref<16x128xf32, #tpu.memory_space<vmem>>, vector<2x128xf32>
    %cst_40 = arith.constant dense<0.000000e+00> : vector<2x128xf32>
    %145 = tpu.matmul %138, %7, %cst_40 {dimension_numbers = #tpu.dot_dimension_numbers<[1], [0], [0], [1], [0, 0, 1, 1], [], []>} : vector<2x32xf32>, vector<32x128xf32>, vector<2x128xf32> -> vector<2x128xf32>
    %146 = arith.addf %144, %145 : vector<2x128xf32>
    %147 = vector.extract_strided_slice %146 {offsets = [0, 0], sizes = [2, 32], strides = [1, 1]} : vector<2x128xf32> to vector<2x32xf32>
    %148 = arith.negf %147 : vector<2x32xf32>
    %149 = math.exp %148 : vector<2x32xf32>
    %cst_41 = arith.constant 1.000000e+00 : f32
    %150 = vector.broadcast %cst_41 : f32 to vector<2x32xf32>
    %151 = arith.addf %150, %149 : vector<2x32xf32>
    %152 = arith.divf %150, %151 : vector<2x32xf32>
    %153 = vector.extract_strided_slice %146 {offsets = [0, 32], sizes = [2, 32], strides = [1, 1]} : vector<2x128xf32> to vector<2x32xf32>
    %154 = arith.negf %153 : vector<2x32xf32>
    %155 = math.exp %154 : vector<2x32xf32>
    %cst_42 = arith.constant 1.000000e+00 : f32
    %156 = vector.broadcast %cst_42 : f32 to vector<2x32xf32>
    %157 = arith.addf %156, %155 : vector<2x32xf32>
    %158 = arith.divf %156, %157 : vector<2x32xf32>
    %159 = vector.extract_strided_slice %146 {offsets = [0, 64], sizes = [2, 32], strides = [1, 1]} : vector<2x128xf32> to vector<2x32xf32>
    %160 = math.tanh %159 : vector<2x32xf32>
    %161 = vector.extract_strided_slice %146 {offsets = [0, 96], sizes = [2, 32], strides = [1, 1]} : vector<2x128xf32> to vector<2x32xf32>
    %162 = arith.negf %161 : vector<2x32xf32>
    %163 = math.exp %162 : vector<2x32xf32>
    %cst_43 = arith.constant 1.000000e+00 : f32
    %164 = vector.broadcast %cst_43 : f32 to vector<2x32xf32>
    %165 = arith.addf %164, %163 : vector<2x32xf32>
    %166 = arith.divf %164, %165 : vector<2x32xf32>
    %167 = arith.mulf %158, %136 : vector<2x32xf32>
    %168 = arith.mulf %152, %160 : vector<2x32xf32>
    %169 = arith.addf %167, %168 : vector<2x32xf32>
    %170 = math.tanh %169 : vector<2x32xf32>
    %171 = arith.mulf %166, %170 : vector<2x32xf32>
    %172 = arith.index_cast %142 : i32 to index
    %c0_44 = arith.constant 0 : index
    %173 = vector.load %arg15[%172, %c0_44] : memref<16x32xf32, #tpu.memory_space<vmem>>, vector<2x32xf32>
    tpu.vector_store %arg15[%172, %c0_44], %171 {strides = array<i32>} : memref<16x32xf32, #tpu.memory_space<vmem>>, vector<2x32xf32>,
    %c5_i32 = arith.constant 5 : i32
    %c2_i32_45 = arith.constant 2 : i32
    %174 = arith.muli %c5_i32, %c2_i32_45 : i32
    %175 = tpu.assume_multiple %174, 2 : i32
    %176 = arith.index_cast %175 : i32 to index
    %c0_46 = arith.constant 0 : index
    %177 = vector.load %arg16[%176, %c0_46] : memref<16x128xf32, #tpu.memory_space<vmem>>, vector<2x128xf32>
    %cst_47 = arith.constant dense<0.000000e+00> : vector<2x128xf32>
    %178 = tpu.matmul %171, %7, %cst_47 {dimension_numbers = #tpu.dot_dimension_numbers<[1], [0], [0], [1], [0, 0, 1, 1], [], []>} : vector<2x32xf32>, vector<32x128xf32>, vector<2x128xf32> -> vector<2x128xf32>
    %179 = arith.addf %177, %178 : vector<2x128xf32>
    %180 = vector.extract_strided_slice %179 {offsets = [0, 0], sizes = [2, 32], strides = [1, 1]} : vector<2x128xf32> to vector<2x32xf32>
    %181 = arith.negf %180 : vector<2x32xf32>
    %182 = math.exp %181 : vector<2x32xf32>
    %cst_48 = arith.constant 1.000000e+00 : f32
    %183 = vector.broadcast %cst_48 : f32 to vector<2x32xf32>
    %184 = arith.addf %183, %182 : vector<2x32xf32>
    %185 = arith.divf %183, %184 : vector<2x32xf32>
    %186 = vector.extract_strided_slice %179 {offsets = [0, 32], sizes = [2, 32], strides = [1, 1]} : vector<2x128xf32> to vector<2x32xf32>
    %187 = arith.negf %186 : vector<2x32xf32>
    %188 = math.exp %187 : vector<2x32xf32>
    %cst_49 = arith.constant 1.000000e+00 : f32
    %189 = vector.broadcast %cst_49 : f32 to vector<2x32xf32>
    %190 = arith.addf %189, %188 : vector<2x32xf32>
    %191 = arith.divf %189, %190 : vector<2x32xf32>
    %192 = vector.extract_strided_slice %179 {offsets = [0, 64], sizes = [2, 32], strides = [1, 1]} : vector<2x128xf32> to vector<2x32xf32>
    %193 = math.tanh %192 : vector<2x32xf32>
    %194 = vector.extract_strided_slice %179 {offsets = [0, 96], sizes = [2, 32], strides = [1, 1]} : vector<2x128xf32> to vector<2x32xf32>
    %195 = arith.negf %194 : vector<2x32xf32>
    %196 = math.exp %195 : vector<2x32xf32>
    %cst_50 = arith.constant 1.000000e+00 : f32
    %197 = vector.broadcast %cst_50 : f32 to vector<2x32xf32>
    %198 = arith.addf %197, %196 : vector<2x32xf32>
    %199 = arith.divf %197, %198 : vector<2x32xf32>
    %200 = arith.mulf %191, %169 : vector<2x32xf32>
    %201 = arith.mulf %185, %193 : vector<2x32xf32>
    %202 = arith.addf %200, %201 : vector<2x32xf32>
    %203 = math.tanh %202 : vector<2x32xf32>
    %204 = arith.mulf %199, %203 : vector<2x32xf32>
    %205 = arith.index_cast %175 : i32 to index
    %c0_51 = arith.constant 0 : index
    %206 = vector.load %arg15[%205, %c0_51] : memref<16x32xf32, #tpu.memory_space<vmem>>, vector<2x32xf32>
    tpu.vector_store %arg15[%205, %c0_51], %204 {strides = array<i32>} : memref<16x32xf32, #tpu.memory_space<vmem>>, vector<2x32xf32>,
    %c6_i32 = arith.constant 6 : i32
    %c2_i32_52 = arith.constant 2 : i32
    %207 = arith.muli %c6_i32, %c2_i32_52 : i32
    %208 = tpu.assume_multiple %207, 2 : i32
    %209 = arith.index_cast %208 : i32 to index
    %c0_53 = arith.constant 0 : index
    %210 = vector.load %arg16[%209, %c0_53] : memref<16x128xf32, #tpu.memory_space<vmem>>, vector<2x128xf32>
    %cst_54 = arith.constant dense<0.000000e+00> : vector<2x128xf32>
    %211 = tpu.matmul %204, %7, %cst_54 {dimension_numbers = #tpu.dot_dimension_numbers<[1], [0], [0], [1], [0, 0, 1, 1], [], []>} : vector<2x32xf32>, vector<32x128xf32>, vector<2x128xf32> -> vector<2x128xf32>
    %212 = arith.addf %210, %211 : vector<2x128xf32>
    %213 = vector.extract_strided_slice %212 {offsets = [0, 0], sizes = [2, 32], strides = [1, 1]} : vector<2x128xf32> to vector<2x32xf32>
    %214 = arith.negf %213 : vector<2x32xf32>
    %215 = math.exp %214 : vector<2x32xf32>
    %cst_55 = arith.constant 1.000000e+00 : f32
    %216 = vector.broadcast %cst_55 : f32 to vector<2x32xf32>
    %217 = arith.addf %216, %215 : vector<2x32xf32>
    %218 = arith.divf %216, %217 : vector<2x32xf32>
    %219 = vector.extract_strided_slice %212 {offsets = [0, 32], sizes = [2, 32], strides = [1, 1]} : vector<2x128xf32> to vector<2x32xf32>
    %220 = arith.negf %219 : vector<2x32xf32>
    %221 = math.exp %220 : vector<2x32xf32>
    %cst_56 = arith.constant 1.000000e+00 : f32
    %222 = vector.broadcast %cst_56 : f32 to vector<2x32xf32>
    %223 = arith.addf %222, %221 : vector<2x32xf32>
    %224 = arith.divf %222, %223 : vector<2x32xf32>
    %225 = vector.extract_strided_slice %212 {offsets = [0, 64], sizes = [2, 32], strides = [1, 1]} : vector<2x128xf32> to vector<2x32xf32>
    %226 = math.tanh %225 : vector<2x32xf32>
    %227 = vector.extract_strided_slice %212 {offsets = [0, 96], sizes = [2, 32], strides = [1, 1]} : vector<2x128xf32> to vector<2x32xf32>
    %228 = arith.negf %227 : vector<2x32xf32>
    %229 = math.exp %228 : vector<2x32xf32>
    %cst_57 = arith.constant 1.000000e+00 : f32
    %230 = vector.broadcast %cst_57 : f32 to vector<2x32xf32>
    %231 = arith.addf %230, %229 : vector<2x32xf32>
    %232 = arith.divf %230, %231 : vector<2x32xf32>
    %233 = arith.mulf %224, %202 : vector<2x32xf32>
    %234 = arith.mulf %218, %226 : vector<2x32xf32>
    %235 = arith.addf %233, %234 : vector<2x32xf32>
    %236 = math.tanh %235 : vector<2x32xf32>
    %237 = arith.mulf %232, %236 : vector<2x32xf32>
    %238 = arith.index_cast %208 : i32 to index
    %c0_58 = arith.constant 0 : index
    %239 = vector.load %arg15[%238, %c0_58] : memref<16x32xf32, #tpu.memory_space<vmem>>, vector<2x32xf32>
    tpu.vector_store %arg15[%238, %c0_58], %237 {strides = array<i32>} : memref<16x32xf32, #tpu.memory_space<vmem>>, vector<2x32xf32>,
    %c7_i32 = arith.constant 7 : i32
    %c2_i32_59 = arith.constant 2 : i32
    %240 = arith.muli %c7_i32, %c2_i32_59 : i32
    %241 = tpu.assume_multiple %240, 2 : i32
    %242 = arith.index_cast %241 : i32 to index
    %c0_60 = arith.constant 0 : index
    %243 = vector.load %arg16[%242, %c0_60] : memref<16x128xf32, #tpu.memory_space<vmem>>, vector<2x128xf32>
    %cst_61 = arith.constant dense<0.000000e+00> : vector<2x128xf32>
    %244 = tpu.matmul %237, %7, %cst_61 {dimension_numbers = #tpu.dot_dimension_numbers<[1], [0], [0], [1], [0, 0, 1, 1], [], []>} : vector<2x32xf32>, vector<32x128xf32>, vector<2x128xf32> -> vector<2x128xf32>
    %245 = arith.addf %243, %244 : vector<2x128xf32>
    %246 = vector.extract_strided_slice %245 {offsets = [0, 0], sizes = [2, 32], strides = [1, 1]} : vector<2x128xf32> to vector<2x32xf32>
    %247 = arith.negf %246 : vector<2x32xf32>
    %248 = math.exp %247 : vector<2x32xf32>
    %cst_62 = arith.constant 1.000000e+00 : f32
    %249 = vector.broadcast %cst_62 : f32 to vector<2x32xf32>
    %250 = arith.addf %249, %248 : vector<2x32xf32>
    %251 = arith.divf %249, %250 : vector<2x32xf32>
    %252 = vector.extract_strided_slice %245 {offsets = [0, 32], sizes = [2, 32], strides = [1, 1]} : vector<2x128xf32> to vector<2x32xf32>
    %253 = arith.negf %252 : vector<2x32xf32>
    %254 = math.exp %253 : vector<2x32xf32>
    %cst_63 = arith.constant 1.000000e+00 : f32
    %255 = vector.broadcast %cst_63 : f32 to vector<2x32xf32>
    %256 = arith.addf %255, %254 : vector<2x32xf32>
    %257 = arith.divf %255, %256 : vector<2x32xf32>
    %258 = vector.extract_strided_slice %245 {offsets = [0, 64], sizes = [2, 32], strides = [1, 1]} : vector<2x128xf32> to vector<2x32xf32>
    %259 = math.tanh %258 : vector<2x32xf32>
    %260 = vector.extract_strided_slice %245 {offsets = [0, 96], sizes = [2, 32], strides = [1, 1]} : vector<2x128xf32> to vector<2x32xf32>
    %261 = arith.negf %260 : vector<2x32xf32>
    %262 = math.exp %261 : vector<2x32xf32>
    %cst_64 = arith.constant 1.000000e+00 : f32
    %263 = vector.broadcast %cst_64 : f32 to vector<2x32xf32>
    %264 = arith.addf %263, %262 : vector<2x32xf32>
    %265 = arith.divf %263, %264 : vector<2x32xf32>
    %266 = arith.mulf %257, %235 : vector<2x32xf32>
    %267 = arith.mulf %251, %259 : vector<2x32xf32>
    %268 = arith.addf %266, %267 : vector<2x32xf32>
    %269 = math.tanh %268 : vector<2x32xf32>
    %270 = arith.mulf %265, %269 : vector<2x32xf32>
    %271 = arith.index_cast %241 : i32 to index
    %c0_65 = arith.constant 0 : index
    %272 = vector.load %arg15[%271, %c0_65] : memref<16x32xf32, #tpu.memory_space<vmem>>, vector<2x32xf32>
    tpu.vector_store %arg15[%271, %c0_65], %270 {strides = array<i32>} : memref<16x32xf32, #tpu.memory_space<vmem>>, vector<2x32xf32>,
    %c8_i32 = arith.constant 8 : i32
    %c0_66 = arith.constant 0 : index
    %c0_67 = arith.constant 0 : index
    %273 = vector.load %arg15[%c0_66, %c0_67] : memref<16x32xf32, #tpu.memory_space<vmem>>, vector<16x32xf32>
    %c0_68 = arith.constant 0 : index
    %c0_69 = arith.constant 0 : index
    %274 = vector.load %arg4[%c0_68, %c0_69] : memref<32x128xf32, #tpu.memory_space<vmem>>, vector<32x128xf32>
    %cst_70 = arith.constant dense<0.000000e+00> : vector<16x128xf32>
    %275 = tpu.matmul %273, %274, %cst_70 {dimension_numbers = #tpu.dot_dimension_numbers<[1], [0], [0], [1], [0, 0, 1, 1], [], []>} : vector<16x32xf32>, vector<32x128xf32>, vector<16x128xf32> -> vector<16x128xf32>
    %c0_71 = arith.constant 0 : index
    %c0_72 = arith.constant 0 : index
    %276 = vector.load %arg6[%c0_71, %c0_72] : memref<1x128xf32, #tpu.memory_space<vmem>>, vector<1x128xf32>
    %277 = vector.broadcast %276 : vector<1x128xf32> to vector<16x128xf32>
    %278 = arith.addf %275, %277 : vector<16x128xf32>
    %c0_73 = arith.constant 0 : index
    %c0_74 = arith.constant 0 : index
    %279 = vector.load %arg16[%c0_73, %c0_74] : memref<16x128xf32, #tpu.memory_space<vmem>>, vector<16x128xf32>
    tpu.vector_store %arg16[%c0_73, %c0_74], %278 {strides = array<i32>} : memref<16x128xf32, #tpu.memory_space<vmem>>, vector<16x128xf32>,
    %c0_75 = arith.constant 0 : index
    %c0_76 = arith.constant 0 : index
    %280 = vector.load %arg5[%c0_75, %c0_76] : memref<32x128xf32, #tpu.memory_space<vmem>>, vector<32x128xf32>
    %cst_77 = arith.constant 0.000000e+00 : f32
    %281 = vector.broadcast %cst_77 : f32 to vector<2x32xf32>
    %c0_i32_78 = arith.constant 0 : i32
    %c2_i32_79 = arith.constant 2 : i32
    %282 = arith.muli %c0_i32_78, %c2_i32_79 : i32
    %283 = tpu.assume_multiple %282, 2 : i32
    %284 = arith.index_cast %283 : i32 to index
    %c0_80 = arith.constant 0 : index
    %285 = vector.load %arg16[%284, %c0_80] : memref<16x128xf32, #tpu.memory_space<vmem>>, vector<2x128xf32>
    %cst_81 = arith.constant dense<0.000000e+00> : vector<2x128xf32>
    %286 = tpu.matmul %281, %280, %cst_81 {dimension_numbers = #tpu.dot_dimension_numbers<[1], [0], [0], [1], [0, 0, 1, 1], [], []>} : vector<2x32xf32>, vector<32x128xf32>, vector<2x128xf32> -> vector<2x128xf32>
    %287 = arith.addf %285, %286 : vector<2x128xf32>
    %288 = vector.extract_strided_slice %287 {offsets = [0, 0], sizes = [2, 32], strides = [1, 1]} : vector<2x128xf32> to vector<2x32xf32>
    %289 = arith.negf %288 : vector<2x32xf32>
    %290 = math.exp %289 : vector<2x32xf32>
    %cst_82 = arith.constant 1.000000e+00 : f32
    %291 = vector.broadcast %cst_82 : f32 to vector<2x32xf32>
    %292 = arith.addf %291, %290 : vector<2x32xf32>
    %293 = arith.divf %291, %292 : vector<2x32xf32>
    %294 = vector.extract_strided_slice %287 {offsets = [0, 32], sizes = [2, 32], strides = [1, 1]} : vector<2x128xf32> to vector<2x32xf32>
    %295 = arith.negf %294 : vector<2x32xf32>
    %296 = math.exp %295 : vector<2x32xf32>
    %cst_83 = arith.constant 1.000000e+00 : f32
    %297 = vector.broadcast %cst_83 : f32 to vector<2x32xf32>
    %298 = arith.addf %297, %296 : vector<2x32xf32>
    %299 = arith.divf %297, %298 : vector<2x32xf32>
    %300 = vector.extract_strided_slice %287 {offsets = [0, 64], sizes = [2, 32], strides = [1, 1]} : vector<2x128xf32> to vector<2x32xf32>
    %301 = math.tanh %300 : vector<2x32xf32>
    %302 = vector.extract_strided_slice %287 {offsets = [0, 96], sizes = [2, 32], strides = [1, 1]} : vector<2x128xf32> to vector<2x32xf32>
    %303 = arith.negf %302 : vector<2x32xf32>
    %304 = math.exp %303 : vector<2x32xf32>
    %cst_84 = arith.constant 1.000000e+00 : f32
    %305 = vector.broadcast %cst_84 : f32 to vector<2x32xf32>
    %306 = arith.addf %305, %304 : vector<2x32xf32>
    %307 = arith.divf %305, %306 : vector<2x32xf32>
    %308 = arith.mulf %299, %281 : vector<2x32xf32>
    %309 = arith.mulf %293, %301 : vector<2x32xf32>
    %310 = arith.addf %308, %309 : vector<2x32xf32>
    %311 = math.tanh %310 : vector<2x32xf32>
    %312 = arith.mulf %307, %311 : vector<2x32xf32>
    %313 = arith.index_cast %283 : i32 to index
    %c0_85 = arith.constant 0 : index
    %314 = vector.load %arg15[%313, %c0_85] : memref<16x32xf32, #tpu.memory_space<vmem>>, vector<2x32xf32>
    tpu.vector_store %arg15[%313, %c0_85], %312 {strides = array<i32>} : memref<16x32xf32, #tpu.memory_space<vmem>>, vector<2x32xf32>,
    %c1_i32_86 = arith.constant 1 : i32
    %c2_i32_87 = arith.constant 2 : i32
    %315 = arith.muli %c1_i32_86, %c2_i32_87 : i32
    %316 = tpu.assume_multiple %315, 2 : i32
    %317 = arith.index_cast %316 : i32 to index
    %c0_88 = arith.constant 0 : index
    %318 = vector.load %arg16[%317, %c0_88] : memref<16x128xf32, #tpu.memory_space<vmem>>, vector<2x128xf32>
    %cst_89 = arith.constant dense<0.000000e+00> : vector<2x128xf32>
    %319 = tpu.matmul %312, %280, %cst_89 {dimension_numbers = #tpu.dot_dimension_numbers<[1], [0], [0], [1], [0, 0, 1, 1], [], []>} : vector<2x32xf32>, vector<32x128xf32>, vector<2x128xf32> -> vector<2x128xf32>
    %320 = arith.addf %318, %319 : vector<2x128xf32>
    %321 = vector.extract_strided_slice %320 {offsets = [0, 0], sizes = [2, 32], strides = [1, 1]} : vector<2x128xf32> to vector<2x32xf32>
    %322 = arith.negf %321 : vector<2x32xf32>
    %323 = math.exp %322 : vector<2x32xf32>
    %cst_90 = arith.constant 1.000000e+00 : f32
    %324 = vector.broadcast %cst_90 : f32 to vector<2x32xf32>
    %325 = arith.addf %324, %323 : vector<2x32xf32>
    %326 = arith.divf %324, %325 : vector<2x32xf32>
    %327 = vector.extract_strided_slice %320 {offsets = [0, 32], sizes = [2, 32], strides = [1, 1]} : vector<2x128xf32> to vector<2x32xf32>
    %328 = arith.negf %327 : vector<2x32xf32>
    %329 = math.exp %328 : vector<2x32xf32>
    %cst_91 = arith.constant 1.000000e+00 : f32
    %330 = vector.broadcast %cst_91 : f32 to vector<2x32xf32>
    %331 = arith.addf %330, %329 : vector<2x32xf32>
    %332 = arith.divf %330, %331 : vector<2x32xf32>
    %333 = vector.extract_strided_slice %320 {offsets = [0, 64], sizes = [2, 32], strides = [1, 1]} : vector<2x128xf32> to vector<2x32xf32>
    %334 = math.tanh %333 : vector<2x32xf32>
    %335 = vector.extract_strided_slice %320 {offsets = [0, 96], sizes = [2, 32], strides = [1, 1]} : vector<2x128xf32> to vector<2x32xf32>
    %336 = arith.negf %335 : vector<2x32xf32>
    %337 = math.exp %336 : vector<2x32xf32>
    %cst_92 = arith.constant 1.000000e+00 : f32
    %338 = vector.broadcast %cst_92 : f32 to vector<2x32xf32>
    %339 = arith.addf %338, %337 : vector<2x32xf32>
    %340 = arith.divf %338, %339 : vector<2x32xf32>
    %341 = arith.mulf %332, %310 : vector<2x32xf32>
    %342 = arith.mulf %326, %334 : vector<2x32xf32>
    %343 = arith.addf %341, %342 : vector<2x32xf32>
    %344 = math.tanh %343 : vector<2x32xf32>
    %345 = arith.mulf %340, %344 : vector<2x32xf32>
    %346 = arith.index_cast %316 : i32 to index
    %c0_93 = arith.constant 0 : index
    %347 = vector.load %arg15[%346, %c0_93] : memref<16x32xf32, #tpu.memory_space<vmem>>, vector<2x32xf32>
    tpu.vector_store %arg15[%346, %c0_93], %345 {strides = array<i32>} : memref<16x32xf32, #tpu.memory_space<vmem>>, vector<2x32xf32>,
    %c2_i32_94 = arith.constant 2 : i32
    %c2_i32_95 = arith.constant 2 : i32
    %348 = arith.muli %c2_i32_94, %c2_i32_95 : i32
    %349 = tpu.assume_multiple %348, 2 : i32
    %350 = arith.index_cast %349 : i32 to index
    %c0_96 = arith.constant 0 : index
    %351 = vector.load %arg16[%350, %c0_96] : memref<16x128xf32, #tpu.memory_space<vmem>>, vector<2x128xf32>
    %cst_97 = arith.constant dense<0.000000e+00> : vector<2x128xf32>
    %352 = tpu.matmul %345, %280, %cst_97 {dimension_numbers = #tpu.dot_dimension_numbers<[1], [0], [0], [1], [0, 0, 1, 1], [], []>} : vector<2x32xf32>, vector<32x128xf32>, vector<2x128xf32> -> vector<2x128xf32>
    %353 = arith.addf %351, %352 : vector<2x128xf32>
    %354 = vector.extract_strided_slice %353 {offsets = [0, 0], sizes = [2, 32], strides = [1, 1]} : vector<2x128xf32> to vector<2x32xf32>
    %355 = arith.negf %354 : vector<2x32xf32>
    %356 = math.exp %355 : vector<2x32xf32>
    %cst_98 = arith.constant 1.000000e+00 : f32
    %357 = vector.broadcast %cst_98 : f32 to vector<2x32xf32>
    %358 = arith.addf %357, %356 : vector<2x32xf32>
    %359 = arith.divf %357, %358 : vector<2x32xf32>
    %360 = vector.extract_strided_slice %353 {offsets = [0, 32], sizes = [2, 32], strides = [1, 1]} : vector<2x128xf32> to vector<2x32xf32>
    %361 = arith.negf %360 : vector<2x32xf32>
    %362 = math.exp %361 : vector<2x32xf32>
    %cst_99 = arith.constant 1.000000e+00 : f32
    %363 = vector.broadcast %cst_99 : f32 to vector<2x32xf32>
    %364 = arith.addf %363, %362 : vector<2x32xf32>
    %365 = arith.divf %363, %364 : vector<2x32xf32>
    %366 = vector.extract_strided_slice %353 {offsets = [0, 64], sizes = [2, 32], strides = [1, 1]} : vector<2x128xf32> to vector<2x32xf32>
    %367 = math.tanh %366 : vector<2x32xf32>
    %368 = vector.extract_strided_slice %353 {offsets = [0, 96], sizes = [2, 32], strides = [1, 1]} : vector<2x128xf32> to vector<2x32xf32>
    %369 = arith.negf %368 : vector<2x32xf32>
    %370 = math.exp %369 : vector<2x32xf32>
    %cst_100 = arith.constant 1.000000e+00 : f32
    %371 = vector.broadcast %cst_100 : f32 to vector<2x32xf32>
    %372 = arith.addf %371, %370 : vector<2x32xf32>
    %373 = arith.divf %371, %372 : vector<2x32xf32>
    %374 = arith.mulf %365, %343 : vector<2x32xf32>
    %375 = arith.mulf %359, %367 : vector<2x32xf32>
    %376 = arith.addf %374, %375 : vector<2x32xf32>
    %377 = math.tanh %376 : vector<2x32xf32>
    %378 = arith.mulf %373, %377 : vector<2x32xf32>
    %379 = arith.index_cast %349 : i32 to index
    %c0_101 = arith.constant 0 : index
    %380 = vector.load %arg15[%379, %c0_101] : memref<16x32xf32, #tpu.memory_space<vmem>>, vector<2x32xf32>
    tpu.vector_store %arg15[%379, %c0_101], %378 {strides = array<i32>} : memref<16x32xf32, #tpu.memory_space<vmem>>, vector<2x32xf32>,
    %c3_i32_102 = arith.constant 3 : i32
    %c2_i32_103 = arith.constant 2 : i32
    %381 = arith.muli %c3_i32_102, %c2_i32_103 : i32
    %382 = tpu.assume_multiple %381, 2 : i32
    %383 = arith.index_cast %382 : i32 to index
    %c0_104 = arith.constant 0 : index
    %384 = vector.load %arg16[%383, %c0_104] : memref<16x128xf32, #tpu.memory_space<vmem>>, vector<2x128xf32>
    %cst_105 = arith.constant dense<0.000000e+00> : vector<2x128xf32>
    %385 = tpu.matmul %378, %280, %cst_105 {dimension_numbers = #tpu.dot_dimension_numbers<[1], [0], [0], [1], [0, 0, 1, 1], [], []>} : vector<2x32xf32>, vector<32x128xf32>, vector<2x128xf32> -> vector<2x128xf32>
    %386 = arith.addf %384, %385 : vector<2x128xf32>
    %387 = vector.extract_strided_slice %386 {offsets = [0, 0], sizes = [2, 32], strides = [1, 1]} : vector<2x128xf32> to vector<2x32xf32>
    %388 = arith.negf %387 : vector<2x32xf32>
    %389 = math.exp %388 : vector<2x32xf32>
    %cst_106 = arith.constant 1.000000e+00 : f32
    %390 = vector.broadcast %cst_106 : f32 to vector<2x32xf32>
    %391 = arith.addf %390, %389 : vector<2x32xf32>
    %392 = arith.divf %390, %391 : vector<2x32xf32>
    %393 = vector.extract_strided_slice %386 {offsets = [0, 32], sizes = [2, 32], strides = [1, 1]} : vector<2x128xf32> to vector<2x32xf32>
    %394 = arith.negf %393 : vector<2x32xf32>
    %395 = math.exp %394 : vector<2x32xf32>
    %cst_107 = arith.constant 1.000000e+00 : f32
    %396 = vector.broadcast %cst_107 : f32 to vector<2x32xf32>
    %397 = arith.addf %396, %395 : vector<2x32xf32>
    %398 = arith.divf %396, %397 : vector<2x32xf32>
    %399 = vector.extract_strided_slice %386 {offsets = [0, 64], sizes = [2, 32], strides = [1, 1]} : vector<2x128xf32> to vector<2x32xf32>
    %400 = math.tanh %399 : vector<2x32xf32>
    %401 = vector.extract_strided_slice %386 {offsets = [0, 96], sizes = [2, 32], strides = [1, 1]} : vector<2x128xf32> to vector<2x32xf32>
    %402 = arith.negf %401 : vector<2x32xf32>
    %403 = math.exp %402 : vector<2x32xf32>
    %cst_108 = arith.constant 1.000000e+00 : f32
    %404 = vector.broadcast %cst_108 : f32 to vector<2x32xf32>
    %405 = arith.addf %404, %403 : vector<2x32xf32>
    %406 = arith.divf %404, %405 : vector<2x32xf32>
    %407 = arith.mulf %398, %376 : vector<2x32xf32>
    %408 = arith.mulf %392, %400 : vector<2x32xf32>
    %409 = arith.addf %407, %408 : vector<2x32xf32>
    %410 = math.tanh %409 : vector<2x32xf32>
    %411 = arith.mulf %406, %410 : vector<2x32xf32>
    %412 = arith.index_cast %382 : i32 to index
    %c0_109 = arith.constant 0 : index
    %413 = vector.load %arg15[%412, %c0_109] : memref<16x32xf32, #tpu.memory_space<vmem>>, vector<2x32xf32>
    tpu.vector_store %arg15[%412, %c0_109], %411 {strides = array<i32>} : memref<16x32xf32, #tpu.memory_space<vmem>>, vector<2x32xf32>,
    %c4_i32_110 = arith.constant 4 : i32
    %c2_i32_111 = arith.constant 2 : i32
    %414 = arith.muli %c4_i32_110, %c2_i32_111 : i32
    %415 = tpu.assume_multiple %414, 2 : i32
    %416 = arith.index_cast %415 : i32 to index
    %c0_112 = arith.constant 0 : index
    %417 = vector.load %arg16[%416, %c0_112] : memref<16x128xf32, #tpu.memory_space<vmem>>, vector<2x128xf32>
    %cst_113 = arith.constant dense<0.000000e+00> : vector<2x128xf32>
    %418 = tpu.matmul %411, %280, %cst_113 {dimension_numbers = #tpu.dot_dimension_numbers<[1], [0], [0], [1], [0, 0, 1, 1], [], []>} : vector<2x32xf32>, vector<32x128xf32>, vector<2x128xf32> -> vector<2x128xf32>
    %419 = arith.addf %417, %418 : vector<2x128xf32>
    %420 = vector.extract_strided_slice %419 {offsets = [0, 0], sizes = [2, 32], strides = [1, 1]} : vector<2x128xf32> to vector<2x32xf32>
    %421 = arith.negf %420 : vector<2x32xf32>
    %422 = math.exp %421 : vector<2x32xf32>
    %cst_114 = arith.constant 1.000000e+00 : f32
    %423 = vector.broadcast %cst_114 : f32 to vector<2x32xf32>
    %424 = arith.addf %423, %422 : vector<2x32xf32>
    %425 = arith.divf %423, %424 : vector<2x32xf32>
    %426 = vector.extract_strided_slice %419 {offsets = [0, 32], sizes = [2, 32], strides = [1, 1]} : vector<2x128xf32> to vector<2x32xf32>
    %427 = arith.negf %426 : vector<2x32xf32>
    %428 = math.exp %427 : vector<2x32xf32>
    %cst_115 = arith.constant 1.000000e+00 : f32
    %429 = vector.broadcast %cst_115 : f32 to vector<2x32xf32>
    %430 = arith.addf %429, %428 : vector<2x32xf32>
    %431 = arith.divf %429, %430 : vector<2x32xf32>
    %432 = vector.extract_strided_slice %419 {offsets = [0, 64], sizes = [2, 32], strides = [1, 1]} : vector<2x128xf32> to vector<2x32xf32>
    %433 = math.tanh %432 : vector<2x32xf32>
    %434 = vector.extract_strided_slice %419 {offsets = [0, 96], sizes = [2, 32], strides = [1, 1]} : vector<2x128xf32> to vector<2x32xf32>
    %435 = arith.negf %434 : vector<2x32xf32>
    %436 = math.exp %435 : vector<2x32xf32>
    %cst_116 = arith.constant 1.000000e+00 : f32
    %437 = vector.broadcast %cst_116 : f32 to vector<2x32xf32>
    %438 = arith.addf %437, %436 : vector<2x32xf32>
    %439 = arith.divf %437, %438 : vector<2x32xf32>
    %440 = arith.mulf %431, %409 : vector<2x32xf32>
    %441 = arith.mulf %425, %433 : vector<2x32xf32>
    %442 = arith.addf %440, %441 : vector<2x32xf32>
    %443 = math.tanh %442 : vector<2x32xf32>
    %444 = arith.mulf %439, %443 : vector<2x32xf32>
    %445 = arith.index_cast %415 : i32 to index
    %c0_117 = arith.constant 0 : index
    %446 = vector.load %arg15[%445, %c0_117] : memref<16x32xf32, #tpu.memory_space<vmem>>, vector<2x32xf32>
    tpu.vector_store %arg15[%445, %c0_117], %444 {strides = array<i32>} : memref<16x32xf32, #tpu.memory_space<vmem>>, vector<2x32xf32>,
    %c5_i32_118 = arith.constant 5 : i32
    %c2_i32_119 = arith.constant 2 : i32
    %447 = arith.muli %c5_i32_118, %c2_i32_119 : i32
    %448 = tpu.assume_multiple %447, 2 : i32
    %449 = arith.index_cast %448 : i32 to index
    %c0_120 = arith.constant 0 : index
    %450 = vector.load %arg16[%449, %c0_120] : memref<16x128xf32, #tpu.memory_space<vmem>>, vector<2x128xf32>
    %cst_121 = arith.constant dense<0.000000e+00> : vector<2x128xf32>
    %451 = tpu.matmul %444, %280, %cst_121 {dimension_numbers = #tpu.dot_dimension_numbers<[1], [0], [0], [1], [0, 0, 1, 1], [], []>} : vector<2x32xf32>, vector<32x128xf32>, vector<2x128xf32> -> vector<2x128xf32>
    %452 = arith.addf %450, %451 : vector<2x128xf32>
    %453 = vector.extract_strided_slice %452 {offsets = [0, 0], sizes = [2, 32], strides = [1, 1]} : vector<2x128xf32> to vector<2x32xf32>
    %454 = arith.negf %453 : vector<2x32xf32>
    %455 = math.exp %454 : vector<2x32xf32>
    %cst_122 = arith.constant 1.000000e+00 : f32
    %456 = vector.broadcast %cst_122 : f32 to vector<2x32xf32>
    %457 = arith.addf %456, %455 : vector<2x32xf32>
    %458 = arith.divf %456, %457 : vector<2x32xf32>
    %459 = vector.extract_strided_slice %452 {offsets = [0, 32], sizes = [2, 32], strides = [1, 1]} : vector<2x128xf32> to vector<2x32xf32>
    %460 = arith.negf %459 : vector<2x32xf32>
    %461 = math.exp %460 : vector<2x32xf32>
    %cst_123 = arith.constant 1.000000e+00 : f32
    %462 = vector.broadcast %cst_123 : f32 to vector<2x32xf32>
    %463 = arith.addf %462, %461 : vector<2x32xf32>
    %464 = arith.divf %462, %463 : vector<2x32xf32>
    %465 = vector.extract_strided_slice %452 {offsets = [0, 64], sizes = [2, 32], strides = [1, 1]} : vector<2x128xf32> to vector<2x32xf32>
    %466 = math.tanh %465 : vector<2x32xf32>
    %467 = vector.extract_strided_slice %452 {offsets = [0, 96], sizes = [2, 32], strides = [1, 1]} : vector<2x128xf32> to vector<2x32xf32>
    %468 = arith.negf %467 : vector<2x32xf32>
    %469 = math.exp %468 : vector<2x32xf32>
    %cst_124 = arith.constant 1.000000e+00 : f32
    %470 = vector.broadcast %cst_124 : f32 to vector<2x32xf32>
    %471 = arith.addf %470, %469 : vector<2x32xf32>
    %472 = arith.divf %470, %471 : vector<2x32xf32>
    %473 = arith.mulf %464, %442 : vector<2x32xf32>
    %474 = arith.mulf %458, %466 : vector<2x32xf32>
    %475 = arith.addf %473, %474 : vector<2x32xf32>
    %476 = math.tanh %475 : vector<2x32xf32>
    %477 = arith.mulf %472, %476 : vector<2x32xf32>
    %478 = arith.index_cast %448 : i32 to index
    %c0_125 = arith.constant 0 : index
    %479 = vector.load %arg15[%478, %c0_125] : memref<16x32xf32, #tpu.memory_space<vmem>>, vector<2x32xf32>
    tpu.vector_store %arg15[%478, %c0_125], %477 {strides = array<i32>} : memref<16x32xf32, #tpu.memory_space<vmem>>, vector<2x32xf32>,
    %c6_i32_126 = arith.constant 6 : i32
    %c2_i32_127 = arith.constant 2 : i32
    %480 = arith.muli %c6_i32_126, %c2_i32_127 : i32
    %481 = tpu.assume_multiple %480, 2 : i32
    %482 = arith.index_cast %481 : i32 to index
    %c0_128 = arith.constant 0 : index
    %483 = vector.load %arg16[%482, %c0_128] : memref<16x128xf32, #tpu.memory_space<vmem>>, vector<2x128xf32>
    %cst_129 = arith.constant dense<0.000000e+00> : vector<2x128xf32>
    %484 = tpu.matmul %477, %280, %cst_129 {dimension_numbers = #tpu.dot_dimension_numbers<[1], [0], [0], [1], [0, 0, 1, 1], [], []>} : vector<2x32xf32>, vector<32x128xf32>, vector<2x128xf32> -> vector<2x128xf32>
    %485 = arith.addf %483, %484 : vector<2x128xf32>
    %486 = vector.extract_strided_slice %485 {offsets = [0, 0], sizes = [2, 32], strides = [1, 1]} : vector<2x128xf32> to vector<2x32xf32>
    %487 = arith.negf %486 : vector<2x32xf32>
    %488 = math.exp %487 : vector<2x32xf32>
    %cst_130 = arith.constant 1.000000e+00 : f32
    %489 = vector.broadcast %cst_130 : f32 to vector<2x32xf32>
    %490 = arith.addf %489, %488 : vector<2x32xf32>
    %491 = arith.divf %489, %490 : vector<2x32xf32>
    %492 = vector.extract_strided_slice %485 {offsets = [0, 32], sizes = [2, 32], strides = [1, 1]} : vector<2x128xf32> to vector<2x32xf32>
    %493 = arith.negf %492 : vector<2x32xf32>
    %494 = math.exp %493 : vector<2x32xf32>
    %cst_131 = arith.constant 1.000000e+00 : f32
    %495 = vector.broadcast %cst_131 : f32 to vector<2x32xf32>
    %496 = arith.addf %495, %494 : vector<2x32xf32>
    %497 = arith.divf %495, %496 : vector<2x32xf32>
    %498 = vector.extract_strided_slice %485 {offsets = [0, 64], sizes = [2, 32], strides = [1, 1]} : vector<2x128xf32> to vector<2x32xf32>
    %499 = math.tanh %498 : vector<2x32xf32>
    %500 = vector.extract_strided_slice %485 {offsets = [0, 96], sizes = [2, 32], strides = [1, 1]} : vector<2x128xf32> to vector<2x32xf32>
    %501 = arith.negf %500 : vector<2x32xf32>
    %502 = math.exp %501 : vector<2x32xf32>
    %cst_132 = arith.constant 1.000000e+00 : f32
    %503 = vector.broadcast %cst_132 : f32 to vector<2x32xf32>
    %504 = arith.addf %503, %502 : vector<2x32xf32>
    %505 = arith.divf %503, %504 : vector<2x32xf32>
    %506 = arith.mulf %497, %475 : vector<2x32xf32>
    %507 = arith.mulf %491, %499 : vector<2x32xf32>
    %508 = arith.addf %506, %507 : vector<2x32xf32>
    %509 = math.tanh %508 : vector<2x32xf32>
    %510 = arith.mulf %505, %509 : vector<2x32xf32>
    %511 = arith.index_cast %481 : i32 to index
    %c0_133 = arith.constant 0 : index
    %512 = vector.load %arg15[%511, %c0_133] : memref<16x32xf32, #tpu.memory_space<vmem>>, vector<2x32xf32>
    tpu.vector_store %arg15[%511, %c0_133], %510 {strides = array<i32>} : memref<16x32xf32, #tpu.memory_space<vmem>>, vector<2x32xf32>,
    %c7_i32_134 = arith.constant 7 : i32
    %c2_i32_135 = arith.constant 2 : i32
    %513 = arith.muli %c7_i32_134, %c2_i32_135 : i32
    %514 = tpu.assume_multiple %513, 2 : i32
    %515 = arith.index_cast %514 : i32 to index
    %c0_136 = arith.constant 0 : index
    %516 = vector.load %arg16[%515, %c0_136] : memref<16x128xf32, #tpu.memory_space<vmem>>, vector<2x128xf32>
    %cst_137 = arith.constant dense<0.000000e+00> : vector<2x128xf32>
    %517 = tpu.matmul %510, %280, %cst_137 {dimension_numbers = #tpu.dot_dimension_numbers<[1], [0], [0], [1], [0, 0, 1, 1], [], []>} : vector<2x32xf32>, vector<32x128xf32>, vector<2x128xf32> -> vector<2x128xf32>
    %518 = arith.addf %516, %517 : vector<2x128xf32>
    %519 = vector.extract_strided_slice %518 {offsets = [0, 0], sizes = [2, 32], strides = [1, 1]} : vector<2x128xf32> to vector<2x32xf32>
    %520 = arith.negf %519 : vector<2x32xf32>
    %521 = math.exp %520 : vector<2x32xf32>
    %cst_138 = arith.constant 1.000000e+00 : f32
    %522 = vector.broadcast %cst_138 : f32 to vector<2x32xf32>
    %523 = arith.addf %522, %521 : vector<2x32xf32>
    %524 = arith.divf %522, %523 : vector<2x32xf32>
    %525 = vector.extract_strided_slice %518 {offsets = [0, 32], sizes = [2, 32], strides = [1, 1]} : vector<2x128xf32> to vector<2x32xf32>
    %526 = arith.negf %525 : vector<2x32xf32>
    %527 = math.exp %526 : vector<2x32xf32>
    %cst_139 = arith.constant 1.000000e+00 : f32
    %528 = vector.broadcast %cst_139 : f32 to vector<2x32xf32>
    %529 = arith.addf %528, %527 : vector<2x32xf32>
    %530 = arith.divf %528, %529 : vector<2x32xf32>
    %531 = vector.extract_strided_slice %518 {offsets = [0, 64], sizes = [2, 32], strides = [1, 1]} : vector<2x128xf32> to vector<2x32xf32>
    %532 = math.tanh %531 : vector<2x32xf32>
    %533 = vector.extract_strided_slice %518 {offsets = [0, 96], sizes = [2, 32], strides = [1, 1]} : vector<2x128xf32> to vector<2x32xf32>
    %534 = arith.negf %533 : vector<2x32xf32>
    %535 = math.exp %534 : vector<2x32xf32>
    %cst_140 = arith.constant 1.000000e+00 : f32
    %536 = vector.broadcast %cst_140 : f32 to vector<2x32xf32>
    %537 = arith.addf %536, %535 : vector<2x32xf32>
    %538 = arith.divf %536, %537 : vector<2x32xf32>
    %539 = arith.mulf %530, %508 : vector<2x32xf32>
    %540 = arith.mulf %524, %532 : vector<2x32xf32>
    %541 = arith.addf %539, %540 : vector<2x32xf32>
    %542 = math.tanh %541 : vector<2x32xf32>
    %543 = arith.mulf %538, %542 : vector<2x32xf32>
    %544 = arith.index_cast %514 : i32 to index
    %c0_141 = arith.constant 0 : index
    %545 = vector.load %arg15[%544, %c0_141] : memref<16x32xf32, #tpu.memory_space<vmem>>, vector<2x32xf32>
    tpu.vector_store %arg15[%544, %c0_141], %543 {strides = array<i32>} : memref<16x32xf32, #tpu.memory_space<vmem>>, vector<2x32xf32>,
    %c8_i32_142 = arith.constant 8 : i32
    %c0_143 = arith.constant 0 : index
    %c0_144 = arith.constant 0 : index
    %546 = vector.load %arg15[%c0_143, %c0_144] : memref<16x32xf32, #tpu.memory_space<vmem>>, vector<16x32xf32>
    %c0_145 = arith.constant 0 : index
    %c0_146 = arith.constant 0 : index
    %547 = vector.load %arg7[%c0_145, %c0_146] : memref<32x128xf32, #tpu.memory_space<vmem>>, vector<32x128xf32>
    %cst_147 = arith.constant dense<0.000000e+00> : vector<16x128xf32>
    %548 = tpu.matmul %546, %547, %cst_147 {dimension_numbers = #tpu.dot_dimension_numbers<[1], [0], [0], [1], [0, 0, 1, 1], [], []>} : vector<16x32xf32>, vector<32x128xf32>, vector<16x128xf32> -> vector<16x128xf32>
    %c0_148 = arith.constant 0 : index
    %c0_149 = arith.constant 0 : index
    %549 = vector.load %arg9[%c0_148, %c0_149] : memref<1x128xf32, #tpu.memory_space<vmem>>, vector<1x128xf32>
    %550 = vector.broadcast %549 : vector<1x128xf32> to vector<16x128xf32>
    %551 = arith.addf %548, %550 : vector<16x128xf32>
    %c0_150 = arith.constant 0 : index
    %c0_151 = arith.constant 0 : index
    %552 = vector.load %arg16[%c0_150, %c0_151] : memref<16x128xf32, #tpu.memory_space<vmem>>, vector<16x128xf32>
    tpu.vector_store %arg16[%c0_150, %c0_151], %551 {strides = array<i32>} : memref<16x128xf32, #tpu.memory_space<vmem>>, vector<16x128xf32>,
    %c0_152 = arith.constant 0 : index
    %c0_153 = arith.constant 0 : index
    %553 = vector.load %arg8[%c0_152, %c0_153] : memref<32x128xf32, #tpu.memory_space<vmem>>, vector<32x128xf32>
    %cst_154 = arith.constant 0.000000e+00 : f32
    %554 = vector.broadcast %cst_154 : f32 to vector<2x32xf32>
    %c0_i32_155 = arith.constant 0 : i32
    %c2_i32_156 = arith.constant 2 : i32
    %555 = arith.muli %c0_i32_155, %c2_i32_156 : i32
    %556 = tpu.assume_multiple %555, 2 : i32
    %557 = arith.index_cast %556 : i32 to index
    %c0_157 = arith.constant 0 : index
    %558 = vector.load %arg16[%557, %c0_157] : memref<16x128xf32, #tpu.memory_space<vmem>>, vector<2x128xf32>
    %cst_158 = arith.constant dense<0.000000e+00> : vector<2x128xf32>
    %559 = tpu.matmul %554, %553, %cst_158 {dimension_numbers = #tpu.dot_dimension_numbers<[1], [0], [0], [1], [0, 0, 1, 1], [], []>} : vector<2x32xf32>, vector<32x128xf32>, vector<2x128xf32> -> vector<2x128xf32>
    %560 = arith.addf %558, %559 : vector<2x128xf32>
    %561 = vector.extract_strided_slice %560 {offsets = [0, 0], sizes = [2, 32], strides = [1, 1]} : vector<2x128xf32> to vector<2x32xf32>
    %562 = arith.negf %561 : vector<2x32xf32>
    %563 = math.exp %562 : vector<2x32xf32>
    %cst_159 = arith.constant 1.000000e+00 : f32
    %564 = vector.broadcast %cst_159 : f32 to vector<2x32xf32>
    %565 = arith.addf %564, %563 : vector<2x32xf32>
    %566 = arith.divf %564, %565 : vector<2x32xf32>
    %567 = vector.extract_strided_slice %560 {offsets = [0, 32], sizes = [2, 32], strides = [1, 1]} : vector<2x128xf32> to vector<2x32xf32>
    %568 = arith.negf %567 : vector<2x32xf32>
    %569 = math.exp %568 : vector<2x32xf32>
    %cst_160 = arith.constant 1.000000e+00 : f32
    %570 = vector.broadcast %cst_160 : f32 to vector<2x32xf32>
    %571 = arith.addf %570, %569 : vector<2x32xf32>
    %572 = arith.divf %570, %571 : vector<2x32xf32>
    %573 = vector.extract_strided_slice %560 {offsets = [0, 64], sizes = [2, 32], strides = [1, 1]} : vector<2x128xf32> to vector<2x32xf32>
    %574 = math.tanh %573 : vector<2x32xf32>
    %575 = vector.extract_strided_slice %560 {offsets = [0, 96], sizes = [2, 32], strides = [1, 1]} : vector<2x128xf32> to vector<2x32xf32>
    %576 = arith.negf %575 : vector<2x32xf32>
    %577 = math.exp %576 : vector<2x32xf32>
    %cst_161 = arith.constant 1.000000e+00 : f32
    %578 = vector.broadcast %cst_161 : f32 to vector<2x32xf32>
    %579 = arith.addf %578, %577 : vector<2x32xf32>
    %580 = arith.divf %578, %579 : vector<2x32xf32>
    %581 = arith.mulf %572, %554 : vector<2x32xf32>
    %582 = arith.mulf %566, %574 : vector<2x32xf32>
    %583 = arith.addf %581, %582 : vector<2x32xf32>
    %584 = math.tanh %583 : vector<2x32xf32>
    %585 = arith.mulf %580, %584 : vector<2x32xf32>
    %c1_i32_162 = arith.constant 1 : i32
    %c2_i32_163 = arith.constant 2 : i32
    %586 = arith.muli %c1_i32_162, %c2_i32_163 : i32
    %587 = tpu.assume_multiple %586, 2 : i32
    %588 = arith.index_cast %587 : i32 to index
    %c0_164 = arith.constant 0 : index
    %589 = vector.load %arg16[%588, %c0_164] : memref<16x128xf32, #tpu.memory_space<vmem>>, vector<2x128xf32>
    %cst_165 = arith.constant dense<0.000000e+00> : vector<2x128xf32>
    %590 = tpu.matmul %585, %553, %cst_165 {dimension_numbers = #tpu.dot_dimension_numbers<[1], [0], [0], [1], [0, 0, 1, 1], [], []>} : vector<2x32xf32>, vector<32x128xf32>, vector<2x128xf32> -> vector<2x128xf32>
    %591 = arith.addf %589, %590 : vector<2x128xf32>
    %592 = vector.extract_strided_slice %591 {offsets = [0, 0], sizes = [2, 32], strides = [1, 1]} : vector<2x128xf32> to vector<2x32xf32>
    %593 = arith.negf %592 : vector<2x32xf32>
    %594 = math.exp %593 : vector<2x32xf32>
    %cst_166 = arith.constant 1.000000e+00 : f32
    %595 = vector.broadcast %cst_166 : f32 to vector<2x32xf32>
    %596 = arith.addf %595, %594 : vector<2x32xf32>
    %597 = arith.divf %595, %596 : vector<2x32xf32>
    %598 = vector.extract_strided_slice %591 {offsets = [0, 32], sizes = [2, 32], strides = [1, 1]} : vector<2x128xf32> to vector<2x32xf32>
    %599 = arith.negf %598 : vector<2x32xf32>
    %600 = math.exp %599 : vector<2x32xf32>
    %cst_167 = arith.constant 1.000000e+00 : f32
    %601 = vector.broadcast %cst_167 : f32 to vector<2x32xf32>
    %602 = arith.addf %601, %600 : vector<2x32xf32>
    %603 = arith.divf %601, %602 : vector<2x32xf32>
    %604 = vector.extract_strided_slice %591 {offsets = [0, 64], sizes = [2, 32], strides = [1, 1]} : vector<2x128xf32> to vector<2x32xf32>
    %605 = math.tanh %604 : vector<2x32xf32>
    %606 = vector.extract_strided_slice %591 {offsets = [0, 96], sizes = [2, 32], strides = [1, 1]} : vector<2x128xf32> to vector<2x32xf32>
    %607 = arith.negf %606 : vector<2x32xf32>
    %608 = math.exp %607 : vector<2x32xf32>
    %cst_168 = arith.constant 1.000000e+00 : f32
    %609 = vector.broadcast %cst_168 : f32 to vector<2x32xf32>
    %610 = arith.addf %609, %608 : vector<2x32xf32>
    %611 = arith.divf %609, %610 : vector<2x32xf32>
    %612 = arith.mulf %603, %583 : vector<2x32xf32>
    %613 = arith.mulf %597, %605 : vector<2x32xf32>
    %614 = arith.addf %612, %613 : vector<2x32xf32>
    %615 = math.tanh %614 : vector<2x32xf32>
    %616 = arith.mulf %611, %615 : vector<2x32xf32>
    %c2_i32_169 = arith.constant 2 : i32
    %c2_i32_170 = arith.constant 2 : i32
    %617 = arith.muli %c2_i32_169, %c2_i32_170 : i32
    %618 = tpu.assume_multiple %617, 2 : i32
    %619 = arith.index_cast %618 : i32 to index
    %c0_171 = arith.constant 0 : index
    %620 = vector.load %arg16[%619, %c0_171] : memref<16x128xf32, #tpu.memory_space<vmem>>, vector<2x128xf32>
    %cst_172 = arith.constant dense<0.000000e+00> : vector<2x128xf32>
    %621 = tpu.matmul %616, %553, %cst_172 {dimension_numbers = #tpu.dot_dimension_numbers<[1], [0], [0], [1], [0, 0, 1, 1], [], []>} : vector<2x32xf32>, vector<32x128xf32>, vector<2x128xf32> -> vector<2x128xf32>
    %622 = arith.addf %620, %621 : vector<2x128xf32>
    %623 = vector.extract_strided_slice %622 {offsets = [0, 0], sizes = [2, 32], strides = [1, 1]} : vector<2x128xf32> to vector<2x32xf32>
    %624 = arith.negf %623 : vector<2x32xf32>
    %625 = math.exp %624 : vector<2x32xf32>
    %cst_173 = arith.constant 1.000000e+00 : f32
    %626 = vector.broadcast %cst_173 : f32 to vector<2x32xf32>
    %627 = arith.addf %626, %625 : vector<2x32xf32>
    %628 = arith.divf %626, %627 : vector<2x32xf32>
    %629 = vector.extract_strided_slice %622 {offsets = [0, 32], sizes = [2, 32], strides = [1, 1]} : vector<2x128xf32> to vector<2x32xf32>
    %630 = arith.negf %629 : vector<2x32xf32>
    %631 = math.exp %630 : vector<2x32xf32>
    %cst_174 = arith.constant 1.000000e+00 : f32
    %632 = vector.broadcast %cst_174 : f32 to vector<2x32xf32>
    %633 = arith.addf %632, %631 : vector<2x32xf32>
    %634 = arith.divf %632, %633 : vector<2x32xf32>
    %635 = vector.extract_strided_slice %622 {offsets = [0, 64], sizes = [2, 32], strides = [1, 1]} : vector<2x128xf32> to vector<2x32xf32>
    %636 = math.tanh %635 : vector<2x32xf32>
    %637 = vector.extract_strided_slice %622 {offsets = [0, 96], sizes = [2, 32], strides = [1, 1]} : vector<2x128xf32> to vector<2x32xf32>
    %638 = arith.negf %637 : vector<2x32xf32>
    %639 = math.exp %638 : vector<2x32xf32>
    %cst_175 = arith.constant 1.000000e+00 : f32
    %640 = vector.broadcast %cst_175 : f32 to vector<2x32xf32>
    %641 = arith.addf %640, %639 : vector<2x32xf32>
    %642 = arith.divf %640, %641 : vector<2x32xf32>
    %643 = arith.mulf %634, %614 : vector<2x32xf32>
    %644 = arith.mulf %628, %636 : vector<2x32xf32>
    %645 = arith.addf %643, %644 : vector<2x32xf32>
    %646 = math.tanh %645 : vector<2x32xf32>
    %647 = arith.mulf %642, %646 : vector<2x32xf32>
    %c3_i32_176 = arith.constant 3 : i32
    %c2_i32_177 = arith.constant 2 : i32
    %648 = arith.muli %c3_i32_176, %c2_i32_177 : i32
    %649 = tpu.assume_multiple %648, 2 : i32
    %650 = arith.index_cast %649 : i32 to index
    %c0_178 = arith.constant 0 : index
    %651 = vector.load %arg16[%650, %c0_178] : memref<16x128xf32, #tpu.memory_space<vmem>>, vector<2x128xf32>
    %cst_179 = arith.constant dense<0.000000e+00> : vector<2x128xf32>
    %652 = tpu.matmul %647, %553, %cst_179 {dimension_numbers = #tpu.dot_dimension_numbers<[1], [0], [0], [1], [0, 0, 1, 1], [], []>} : vector<2x32xf32>, vector<32x128xf32>, vector<2x128xf32> -> vector<2x128xf32>
    %653 = arith.addf %651, %652 : vector<2x128xf32>
    %654 = vector.extract_strided_slice %653 {offsets = [0, 0], sizes = [2, 32], strides = [1, 1]} : vector<2x128xf32> to vector<2x32xf32>
    %655 = arith.negf %654 : vector<2x32xf32>
    %656 = math.exp %655 : vector<2x32xf32>
    %cst_180 = arith.constant 1.000000e+00 : f32
    %657 = vector.broadcast %cst_180 : f32 to vector<2x32xf32>
    %658 = arith.addf %657, %656 : vector<2x32xf32>
    %659 = arith.divf %657, %658 : vector<2x32xf32>
    %660 = vector.extract_strided_slice %653 {offsets = [0, 32], sizes = [2, 32], strides = [1, 1]} : vector<2x128xf32> to vector<2x32xf32>
    %661 = arith.negf %660 : vector<2x32xf32>
    %662 = math.exp %661 : vector<2x32xf32>
    %cst_181 = arith.constant 1.000000e+00 : f32
    %663 = vector.broadcast %cst_181 : f32 to vector<2x32xf32>
    %664 = arith.addf %663, %662 : vector<2x32xf32>
    %665 = arith.divf %663, %664 : vector<2x32xf32>
    %666 = vector.extract_strided_slice %653 {offsets = [0, 64], sizes = [2, 32], strides = [1, 1]} : vector<2x128xf32> to vector<2x32xf32>
    %667 = math.tanh %666 : vector<2x32xf32>
    %668 = vector.extract_strided_slice %653 {offsets = [0, 96], sizes = [2, 32], strides = [1, 1]} : vector<2x128xf32> to vector<2x32xf32>
    %669 = arith.negf %668 : vector<2x32xf32>
    %670 = math.exp %669 : vector<2x32xf32>
    %cst_182 = arith.constant 1.000000e+00 : f32
    %671 = vector.broadcast %cst_182 : f32 to vector<2x32xf32>
    %672 = arith.addf %671, %670 : vector<2x32xf32>
    %673 = arith.divf %671, %672 : vector<2x32xf32>
    %674 = arith.mulf %665, %645 : vector<2x32xf32>
    %675 = arith.mulf %659, %667 : vector<2x32xf32>
    %676 = arith.addf %674, %675 : vector<2x32xf32>
    %677 = math.tanh %676 : vector<2x32xf32>
    %678 = arith.mulf %673, %677 : vector<2x32xf32>
    %c4_i32_183 = arith.constant 4 : i32
    %c2_i32_184 = arith.constant 2 : i32
    %679 = arith.muli %c4_i32_183, %c2_i32_184 : i32
    %680 = tpu.assume_multiple %679, 2 : i32
    %681 = arith.index_cast %680 : i32 to index
    %c0_185 = arith.constant 0 : index
    %682 = vector.load %arg16[%681, %c0_185] : memref<16x128xf32, #tpu.memory_space<vmem>>, vector<2x128xf32>
    %cst_186 = arith.constant dense<0.000000e+00> : vector<2x128xf32>
    %683 = tpu.matmul %678, %553, %cst_186 {dimension_numbers = #tpu.dot_dimension_numbers<[1], [0], [0], [1], [0, 0, 1, 1], [], []>} : vector<2x32xf32>, vector<32x128xf32>, vector<2x128xf32> -> vector<2x128xf32>
    %684 = arith.addf %682, %683 : vector<2x128xf32>
    %685 = vector.extract_strided_slice %684 {offsets = [0, 0], sizes = [2, 32], strides = [1, 1]} : vector<2x128xf32> to vector<2x32xf32>
    %686 = arith.negf %685 : vector<2x32xf32>
    %687 = math.exp %686 : vector<2x32xf32>
    %cst_187 = arith.constant 1.000000e+00 : f32
    %688 = vector.broadcast %cst_187 : f32 to vector<2x32xf32>
    %689 = arith.addf %688, %687 : vector<2x32xf32>
    %690 = arith.divf %688, %689 : vector<2x32xf32>
    %691 = vector.extract_strided_slice %684 {offsets = [0, 32], sizes = [2, 32], strides = [1, 1]} : vector<2x128xf32> to vector<2x32xf32>
    %692 = arith.negf %691 : vector<2x32xf32>
    %693 = math.exp %692 : vector<2x32xf32>
    %cst_188 = arith.constant 1.000000e+00 : f32
    %694 = vector.broadcast %cst_188 : f32 to vector<2x32xf32>
    %695 = arith.addf %694, %693 : vector<2x32xf32>
    %696 = arith.divf %694, %695 : vector<2x32xf32>
    %697 = vector.extract_strided_slice %684 {offsets = [0, 64], sizes = [2, 32], strides = [1, 1]} : vector<2x128xf32> to vector<2x32xf32>
    %698 = math.tanh %697 : vector<2x32xf32>
    %699 = vector.extract_strided_slice %684 {offsets = [0, 96], sizes = [2, 32], strides = [1, 1]} : vector<2x128xf32> to vector<2x32xf32>
    %700 = arith.negf %699 : vector<2x32xf32>
    %701 = math.exp %700 : vector<2x32xf32>
    %cst_189 = arith.constant 1.000000e+00 : f32
    %702 = vector.broadcast %cst_189 : f32 to vector<2x32xf32>
    %703 = arith.addf %702, %701 : vector<2x32xf32>
    %704 = arith.divf %702, %703 : vector<2x32xf32>
    %705 = arith.mulf %696, %676 : vector<2x32xf32>
    %706 = arith.mulf %690, %698 : vector<2x32xf32>
    %707 = arith.addf %705, %706 : vector<2x32xf32>
    %708 = math.tanh %707 : vector<2x32xf32>
    %709 = arith.mulf %704, %708 : vector<2x32xf32>
    %c5_i32_190 = arith.constant 5 : i32
    %c2_i32_191 = arith.constant 2 : i32
    %710 = arith.muli %c5_i32_190, %c2_i32_191 : i32
    %711 = tpu.assume_multiple %710, 2 : i32
    %712 = arith.index_cast %711 : i32 to index
    %c0_192 = arith.constant 0 : index
    %713 = vector.load %arg16[%712, %c0_192] : memref<16x128xf32, #tpu.memory_space<vmem>>, vector<2x128xf32>
    %cst_193 = arith.constant dense<0.000000e+00> : vector<2x128xf32>
    %714 = tpu.matmul %709, %553, %cst_193 {dimension_numbers = #tpu.dot_dimension_numbers<[1], [0], [0], [1], [0, 0, 1, 1], [], []>} : vector<2x32xf32>, vector<32x128xf32>, vector<2x128xf32> -> vector<2x128xf32>
    %715 = arith.addf %713, %714 : vector<2x128xf32>
    %716 = vector.extract_strided_slice %715 {offsets = [0, 0], sizes = [2, 32], strides = [1, 1]} : vector<2x128xf32> to vector<2x32xf32>
    %717 = arith.negf %716 : vector<2x32xf32>
    %718 = math.exp %717 : vector<2x32xf32>
    %cst_194 = arith.constant 1.000000e+00 : f32
    %719 = vector.broadcast %cst_194 : f32 to vector<2x32xf32>
    %720 = arith.addf %719, %718 : vector<2x32xf32>
    %721 = arith.divf %719, %720 : vector<2x32xf32>
    %722 = vector.extract_strided_slice %715 {offsets = [0, 32], sizes = [2, 32], strides = [1, 1]} : vector<2x128xf32> to vector<2x32xf32>
    %723 = arith.negf %722 : vector<2x32xf32>
    %724 = math.exp %723 : vector<2x32xf32>
    %cst_195 = arith.constant 1.000000e+00 : f32
    %725 = vector.broadcast %cst_195 : f32 to vector<2x32xf32>
    %726 = arith.addf %725, %724 : vector<2x32xf32>
    %727 = arith.divf %725, %726 : vector<2x32xf32>
    %728 = vector.extract_strided_slice %715 {offsets = [0, 64], sizes = [2, 32], strides = [1, 1]} : vector<2x128xf32> to vector<2x32xf32>
    %729 = math.tanh %728 : vector<2x32xf32>
    %730 = vector.extract_strided_slice %715 {offsets = [0, 96], sizes = [2, 32], strides = [1, 1]} : vector<2x128xf32> to vector<2x32xf32>
    %731 = arith.negf %730 : vector<2x32xf32>
    %732 = math.exp %731 : vector<2x32xf32>
    %cst_196 = arith.constant 1.000000e+00 : f32
    %733 = vector.broadcast %cst_196 : f32 to vector<2x32xf32>
    %734 = arith.addf %733, %732 : vector<2x32xf32>
    %735 = arith.divf %733, %734 : vector<2x32xf32>
    %736 = arith.mulf %727, %707 : vector<2x32xf32>
    %737 = arith.mulf %721, %729 : vector<2x32xf32>
    %738 = arith.addf %736, %737 : vector<2x32xf32>
    %739 = math.tanh %738 : vector<2x32xf32>
    %740 = arith.mulf %735, %739 : vector<2x32xf32>
    %c6_i32_197 = arith.constant 6 : i32
    %c2_i32_198 = arith.constant 2 : i32
    %741 = arith.muli %c6_i32_197, %c2_i32_198 : i32
    %742 = tpu.assume_multiple %741, 2 : i32
    %743 = arith.index_cast %742 : i32 to index
    %c0_199 = arith.constant 0 : index
    %744 = vector.load %arg16[%743, %c0_199] : memref<16x128xf32, #tpu.memory_space<vmem>>, vector<2x128xf32>
    %cst_200 = arith.constant dense<0.000000e+00> : vector<2x128xf32>
    %745 = tpu.matmul %740, %553, %cst_200 {dimension_numbers = #tpu.dot_dimension_numbers<[1], [0], [0], [1], [0, 0, 1, 1], [], []>} : vector<2x32xf32>, vector<32x128xf32>, vector<2x128xf32> -> vector<2x128xf32>
    %746 = arith.addf %744, %745 : vector<2x128xf32>
    %747 = vector.extract_strided_slice %746 {offsets = [0, 0], sizes = [2, 32], strides = [1, 1]} : vector<2x128xf32> to vector<2x32xf32>
    %748 = arith.negf %747 : vector<2x32xf32>
    %749 = math.exp %748 : vector<2x32xf32>
    %cst_201 = arith.constant 1.000000e+00 : f32
    %750 = vector.broadcast %cst_201 : f32 to vector<2x32xf32>
    %751 = arith.addf %750, %749 : vector<2x32xf32>
    %752 = arith.divf %750, %751 : vector<2x32xf32>
    %753 = vector.extract_strided_slice %746 {offsets = [0, 32], sizes = [2, 32], strides = [1, 1]} : vector<2x128xf32> to vector<2x32xf32>
    %754 = arith.negf %753 : vector<2x32xf32>
    %755 = math.exp %754 : vector<2x32xf32>
    %cst_202 = arith.constant 1.000000e+00 : f32
    %756 = vector.broadcast %cst_202 : f32 to vector<2x32xf32>
    %757 = arith.addf %756, %755 : vector<2x32xf32>
    %758 = arith.divf %756, %757 : vector<2x32xf32>
    %759 = vector.extract_strided_slice %746 {offsets = [0, 64], sizes = [2, 32], strides = [1, 1]} : vector<2x128xf32> to vector<2x32xf32>
    %760 = math.tanh %759 : vector<2x32xf32>
    %761 = vector.extract_strided_slice %746 {offsets = [0, 96], sizes = [2, 32], strides = [1, 1]} : vector<2x128xf32> to vector<2x32xf32>
    %762 = arith.negf %761 : vector<2x32xf32>
    %763 = math.exp %762 : vector<2x32xf32>
    %cst_203 = arith.constant 1.000000e+00 : f32
    %764 = vector.broadcast %cst_203 : f32 to vector<2x32xf32>
    %765 = arith.addf %764, %763 : vector<2x32xf32>
    %766 = arith.divf %764, %765 : vector<2x32xf32>
    %767 = arith.mulf %758, %738 : vector<2x32xf32>
    %768 = arith.mulf %752, %760 : vector<2x32xf32>
    %769 = arith.addf %767, %768 : vector<2x32xf32>
    %770 = math.tanh %769 : vector<2x32xf32>
    %771 = arith.mulf %766, %770 : vector<2x32xf32>
    %c7_i32_204 = arith.constant 7 : i32
    %c2_i32_205 = arith.constant 2 : i32
    %772 = arith.muli %c7_i32_204, %c2_i32_205 : i32
    %773 = tpu.assume_multiple %772, 2 : i32
    %774 = arith.index_cast %773 : i32 to index
    %c0_206 = arith.constant 0 : index
    %775 = vector.load %arg16[%774, %c0_206] : memref<16x128xf32, #tpu.memory_space<vmem>>, vector<2x128xf32>
    %cst_207 = arith.constant dense<0.000000e+00> : vector<2x128xf32>
    %776 = tpu.matmul %771, %553, %cst_207 {dimension_numbers = #tpu.dot_dimension_numbers<[1], [0], [0], [1], [0, 0, 1, 1], [], []>} : vector<2x32xf32>, vector<32x128xf32>, vector<2x128xf32> -> vector<2x128xf32>
    %777 = arith.addf %775, %776 : vector<2x128xf32>
    %778 = vector.extract_strided_slice %777 {offsets = [0, 0], sizes = [2, 32], strides = [1, 1]} : vector<2x128xf32> to vector<2x32xf32>
    %779 = arith.negf %778 : vector<2x32xf32>
    %780 = math.exp %779 : vector<2x32xf32>
    %cst_208 = arith.constant 1.000000e+00 : f32
    %781 = vector.broadcast %cst_208 : f32 to vector<2x32xf32>
    %782 = arith.addf %781, %780 : vector<2x32xf32>
    %783 = arith.divf %781, %782 : vector<2x32xf32>
    %784 = vector.extract_strided_slice %777 {offsets = [0, 32], sizes = [2, 32], strides = [1, 1]} : vector<2x128xf32> to vector<2x32xf32>
    %785 = arith.negf %784 : vector<2x32xf32>
    %786 = math.exp %785 : vector<2x32xf32>
    %cst_209 = arith.constant 1.000000e+00 : f32
    %787 = vector.broadcast %cst_209 : f32 to vector<2x32xf32>
    %788 = arith.addf %787, %786 : vector<2x32xf32>
    %789 = arith.divf %787, %788 : vector<2x32xf32>
    %790 = vector.extract_strided_slice %777 {offsets = [0, 64], sizes = [2, 32], strides = [1, 1]} : vector<2x128xf32> to vector<2x32xf32>
    %791 = math.tanh %790 : vector<2x32xf32>
    %792 = vector.extract_strided_slice %777 {offsets = [0, 96], sizes = [2, 32], strides = [1, 1]} : vector<2x128xf32> to vector<2x32xf32>
    %793 = arith.negf %792 : vector<2x32xf32>
    %794 = math.exp %793 : vector<2x32xf32>
    %cst_210 = arith.constant 1.000000e+00 : f32
    %795 = vector.broadcast %cst_210 : f32 to vector<2x32xf32>
    %796 = arith.addf %795, %794 : vector<2x32xf32>
    %797 = arith.divf %795, %796 : vector<2x32xf32>
    %798 = arith.mulf %789, %769 : vector<2x32xf32>
    %799 = arith.mulf %783, %791 : vector<2x32xf32>
    %800 = arith.addf %798, %799 : vector<2x32xf32>
    %801 = math.tanh %800 : vector<2x32xf32>
    %802 = arith.mulf %797, %801 : vector<2x32xf32>
    %c8_i32_211 = arith.constant 8 : i32
    %c0_212 = arith.constant 0 : index
    %c0_213 = arith.constant 0 : index
    %803 = vector.load %arg10[%c0_212, %c0_213] : memref<32x16xf32, #tpu.memory_space<vmem>>, vector<32x16xf32>
    %cst_214 = arith.constant dense<0.000000e+00> : vector<2x16xf32>
    %804 = tpu.matmul %802, %803, %cst_214 {dimension_numbers = #tpu.dot_dimension_numbers<[1], [0], [0], [1], [0, 0, 1, 1], [], []>} : vector<2x32xf32>, vector<32x16xf32>, vector<2x16xf32> -> vector<2x16xf32>
    %c0_215 = arith.constant 0 : index
    %c0_216 = arith.constant 0 : index
    %805 = vector.load %arg11[%c0_215, %c0_216] : memref<1x16xf32, #tpu.memory_space<vmem>>, vector<1x16xf32>
    %806 = vector.broadcast %805 : vector<1x16xf32> to vector<2x16xf32>
    %807 = arith.addf %804, %806 : vector<2x16xf32>
    %cst_217 = arith.constant 0.000000e+00 : f32
    %808 = vector.broadcast %cst_217 : f32 to vector<2x16xf32>
    %809 = arith.maximumf %807, %808 : vector<2x16xf32>
    %c0_218 = arith.constant 0 : index
    %c0_219 = arith.constant 0 : index
    %810 = vector.load %arg12[%c0_218, %c0_219] : memref<16x3xf32, #tpu.memory_space<vmem>>, vector<16x3xf32>
    %cst_220 = arith.constant dense<0.000000e+00> : vector<2x3xf32>
    %811 = tpu.matmul %809, %810, %cst_220 {dimension_numbers = #tpu.dot_dimension_numbers<[1], [0], [0], [1], [0, 0, 1, 1], [], []>} : vector<2x16xf32>, vector<16x3xf32>, vector<2x3xf32> -> vector<2x3xf32>
    %c0_221 = arith.constant 0 : index
    %c0_222 = arith.constant 0 : index
    %812 = vector.load %arg13[%c0_221, %c0_222] : memref<1x3xf32, #tpu.memory_space<vmem>>, vector<1x3xf32>
    %813 = vector.broadcast %812 : vector<1x3xf32> to vector<2x3xf32>
    %814 = arith.addf %811, %813 : vector<2x3xf32>
    %c0_223 = arith.constant 0 : index
    %c0_224 = arith.constant 0 : index
    %815 = vector.load %arg14[%c0_223, %c0_224] : memref<2x3xf32, #tpu.memory_space<vmem>>, vector<2x3xf32>
    tpu.vector_store %arg14[%c0_223, %c0_224], %814 {strides = array<i32>} : memref<2x3xf32, #tpu.memory_space<vmem>>, vector<2x3xf32>,
    return
  }
}

</mosaic_0001>

<llo_original>
// kernel: tpu_custom_call.1
$region0: #{tpu_custom_call.1}
  #allocation0 [shape = 'u32[]', space=smem, size = 0x4, offset = 0x4, fixed_abs, tag = 'smem constant byte address 0x4 - core index']
  #allocation1 [shape = 'u32[144,128]{1,0:T(1,128)}', space=vmem, size = 0x12000, scoped, tag = 'internal scratch']
  #allocation2 [shape = 'f32[16,32]{1,0:T(8,128)}', space=vmem, size = 0x2000, scoped, tag = 'scratch operand']
  #allocation3 [shape = 'f32[16,128]{1,0:T(8,128)}', space=vmem, size = 0x2000, scoped, tag = 'scratch operand']
  %s0 = inlined_call_operand.hbm [shape: f32[16,64], index: 0, kind: input, shape index: {}]
  %s1 = inlined_call_operand.vmem [shape: f32[64,128], index: 1, kind: input, shape index: {}]
  %s2 = inlined_call_operand.hbm [shape: f32[32,128], index: 2, kind: input, shape index: {}]
  %s3 = inlined_call_operand.hbm [shape: f32[1,128], index: 3, kind: input, shape index: {}]
  %s4 = inlined_call_operand.hbm [shape: f32[32,128], index: 4, kind: input, shape index: {}]
  %s5 = inlined_call_operand.hbm [shape: f32[32,128], index: 5, kind: input, shape index: {}]
  %s6 = inlined_call_operand.hbm [shape: f32[1,128], index: 6, kind: input, shape index: {}]
  %s7 = inlined_call_operand.hbm [shape: f32[32,128], index: 7, kind: input, shape index: {}]
  %s8 = inlined_call_operand.hbm [shape: f32[32,128], index: 8, kind: input, shape index: {}]
  %s9 = inlined_call_operand.hbm [shape: f32[1,128], index: 9, kind: input, shape index: {}]
  %s10 = inlined_call_operand.vmem [shape: f32[32,16], index: 10, kind: input, shape index: {}]
  %s11 = inlined_call_operand.vmem [shape: f32[1,16], index: 11, kind: input, shape index: {}]
  %s12 = inlined_call_operand.vmem [shape: f32[16,3], index: 12, kind: input, shape index: {}]
  %s13 = inlined_call_operand.vmem [shape: f32[1,3], index: 13, kind: input, shape index: {}]
  %s14 = inlined_call_operand.hbm [shape: f32[2,3], index: 14, kind: output, shape index: {}]
  %s15 = sld [smem:[#allocation0]]
  $region102: #{tpu_custom_call.1} parent=0
    _
  %s17 = ssub.s32 1, %s15
  %s18 = scalar_select 0, %s17, %s15
  $region1: #{tpu_custom_call.1} parent=0
    #allocation4 [shape = 'u8[8192]{0}', space=vmem, size = 0x2000, scoped, tag = 'input window, operand 0, single buffered']
    #allocation5 [shape = 's32[1]{0}', space=sflag, size = 0x4, scoped, tag = 'scoped memory for tpu_custom_call.1']
    #allocation6 [shape = 's32[1]{0}', space=sflag, size = 0x4, scoped, tag = 'scoped memory for tpu_custom_call.1']
    #allocation7 [shape = 'u8[16384]{0}', space=vmem, size = 0x4000, scoped, tag = 'input window, operand 2, single buffered']
    #allocation8 [shape = 's32[1]{0}', space=sflag, size = 0x4, scoped, tag = 'scoped memory for tpu_custom_call.1']
    #allocation9 [shape = 'u8[512]{0}', space=vmem, size = 0x400, scoped, tag = 'input window, operand 3, single buffered']
    #allocation10 [shape = 'u8[16384]{0}', space=vmem, size = 0x4000, scoped, tag = 'input window, operand 4, single buffered']
    #allocation11 [shape = 's32[1]{0}', space=sflag, size = 0x4, scoped, tag = 'scoped memory for tpu_custom_call.1']
    #allocation12 [shape = 'u8[16384]{0}', space=vmem, size = 0x4000, scoped, tag = 'input window, operand 5, single buffered']
    #allocation13 [shape = 'u8[512]{0}', space=vmem, size = 0x400, scoped, tag = 'input window, operand 6, single buffered']
    #allocation14 [shape = 's32[1]{0}', space=sflag, size = 0x4, scoped, tag = 'scoped memory for tpu_custom_call.1']
    #allocation15 [shape = 'u8[16384]{0}', space=vmem, size = 0x4000, scoped, tag = 'input window, operand 7, single buffered']
    #allocation16 [shape = 'u8[16384]{0}', space=vmem, size = 0x4000, scoped, tag = 'input window, operand 8, single buffered']
    #allocation17 [shape = 's32[1]{0}', space=sflag, size = 0x4, scoped, tag = 'scoped memory for tpu_custom_call.1']
    #allocation18 [shape = 'u8[512]{0}', space=vmem, size = 0x400, scoped, tag = 'input window, operand 9, single buffered']
    #allocation19 [shape = 'u8[1024]{0}', space=vmem, size = 0x400, scoped, tag = 'output window, operand 0, single buffered']
    %19 = vsyncpa [#allocation5], 0
    %20 = vsyncpa [#allocation8], 0
    %21 = vsyncpa [#allocation11], 0
    %22 = vsyncpa [#allocation14], 0
    %23 = vsyncpa [#allocation17], 0
    %24 = vsyncpa [#allocation6], 0
    // Predicated region
    $region2: #{tpu_custom_call.1} parent=1 // pred_check
      _
    $region3: #{tpu_custom_call.1} parent=1 // pred_check_branch
      %26 = sbr.rel (0) target = $region5
    $region4: #{tpu_custom_call.1} parent=1 // pred_region
      %s28 = ssub.s32 256, 256
      %29 = vsyncadd [#allocation5], %s28
      %s30 = sshll.u32 [#allocation4], 4
      %s31 = int_to_ptr.vmem [resolvable:$true] %s30
      %36 = dma.hbm_to_vmem [thread:$0]  %s0, 256, %s31, [#allocation5], 128, 128, 8
    $region5: #{tpu_custom_call.1} parent=1 // pred_fallthru
      _
    // Predicated region
    $region6: #{tpu_custom_call.1} parent=1 // pred_check
      _
    $region7: #{tpu_custom_call.1} parent=1 // pred_check_branch
      %38 = sbr.rel (0) target = $region9
    $region8: #{tpu_custom_call.1} parent=1 // pred_region
      _
    $region9: #{tpu_custom_call.1} parent=1 // pred_fallthru
      _
    // Predicated region
    $region10: #{tpu_custom_call.1} parent=1 // pred_check
      _
    $region11: #{tpu_custom_call.1} parent=1 // pred_check_branch
      %40 = sbr.rel (0) target = $region13
    $region12: #{tpu_custom_call.1} parent=1 // pred_region
      %s42 = ssub.s32 512, 512
      %43 = vsyncadd [#allocation8], %s42
      %s44 = sshll.u32 [#allocation7], 4
      %s45 = int_to_ptr.vmem [resolvable:$true] %s44
      %50 = dma.hbm_to_vmem [thread:$0]  %s2, 512, %s45, [#allocation8], 128, 128, 8
    $region13: #{tpu_custom_call.1} parent=1 // pred_fallthru
      _
    // Predicated region
    $region14: #{tpu_custom_call.1} parent=1 // pred_check
      _
    $region15: #{tpu_custom_call.1} parent=1 // pred_check_branch
      %52 = sbr.rel (0) target = $region17
    $region16: #{tpu_custom_call.1} parent=1 // pred_region
      %s54 = ssub.s32 16, 16
      %55 = vsyncadd [#allocation8], %s54
      %s57 = sshll.u32 [#allocation9], 4
      %s58 = int_to_ptr.vmem [resolvable:$true] %s57
      %60 = dma.hbm_to_vmem [thread:$0]  %s3, 16, %s58, [#allocation8]
    $region17: #{tpu_custom_call.1} parent=1 // pred_fallthru
      _
    // Predicated region
    $region18: #{tpu_custom_call.1} parent=1 // pred_check
      _
    $region19: #{tpu_custom_call.1} parent=1 // pred_check_branch
      %62 = sbr.rel (0) target = $region21
    $region20: #{tpu_custom_call.1} parent=1 // pred_region
      %s64 = ssub.s32 512, 512
      %65 = vsyncadd [#allocation11], %s64
      %s66 = sshll.u32 [#allocation10], 4
      %s67 = int_to_ptr.vmem [resolvable:$true] %s66
      %72 = dma.hbm_to_vmem [thread:$0]  %s4, 512, %s67, [#allocation11], 128, 128, 8
    $region21: #{tpu_custom_call.1} parent=1 // pred_fallthru
      _
    // Predicated region
    $region22: #{tpu_custom_call.1} parent=1 // pred_check
      _
    $region23: #{tpu_custom_call.1} parent=1 // pred_check_branch
      %74 = sbr.rel (0) target = $region25
    $region24: #{tpu_custom_call.1} parent=1 // pred_region
      %s76 = ssub.s32 512, 512
      %77 = vsyncadd [#allocation11], %s76
      %s78 = sshll.u32 [#allocation12], 4
      %s79 = int_to_ptr.vmem [resolvable:$true] %s78
      %84 = dma.hbm_to_vmem [thread:$0]  %s5, 512, %s79, [#allocation11], 128, 128, 8
    $region25: #{tpu_custom_call.1} parent=1 // pred_fallthru
      _
    // Predicated region
    $region26: #{tpu_custom_call.1} parent=1 // pred_check
      _
    $region27: #{tpu_custom_call.1} parent=1 // pred_check_branch
      %86 = sbr.rel (0) target = $region29
    $region28: #{tpu_custom_call.1} parent=1 // pred_region
      %s88 = ssub.s32 16, 16
      %89 = vsyncadd [#allocation14], %s88
      %s91 = sshll.u32 [#allocation13], 4
      %s92 = int_to_ptr.vmem [resolvable:$true] %s91
      %94 = dma.hbm_to_vmem [thread:$0]  %s6, 16, %s92, [#allocation14]
    $region29: #{tpu_custom_call.1} parent=1 // pred_fallthru
      _
    // Predicated region
    $region30: #{tpu_custom_call.1} parent=1 // pred_check
      _
    $region31: #{tpu_custom_call.1} parent=1 // pred_check_branch
      %96 = sbr.rel (0) target = $region33
    $region32: #{tpu_custom_call.1} parent=1 // pred_region
      %s98 = ssub.s32 512, 512
      %99 = vsyncadd [#allocation14], %s98
      %s100 = sshll.u32 [#allocation15], 4
      %s101 = int_to_ptr.vmem [resolvable:$true] %s100
      %106 = dma.hbm_to_vmem [thread:$0]  %s7, 512, %s101, [#allocation14], 128, 128, 8
    $region33: #{tpu_custom_call.1} parent=1 // pred_fallthru
      _
    // Predicated region
    $region34: #{tpu_custom_call.1} parent=1 // pred_check
      _
    $region35: #{tpu_custom_call.1} parent=1 // pred_check_branch
      %108 = sbr.rel (0) target = $region37
    $region36: #{tpu_custom_call.1} parent=1 // pred_region
      %s110 = ssub.s32 512, 512
      %111 = vsyncadd [#allocation17], %s110
      %s112 = sshll.u32 [#allocation16], 4
      %s113 = int_to_ptr.vmem [resolvable:$true] %s112
      %118 = dma.hbm_to_vmem [thread:$0]  %s8, 512, %s113, [#allocation17], 128, 128, 8
    $region37: #{tpu_custom_call.1} parent=1 // pred_fallthru
      _
    // Predicated region
    $region38: #{tpu_custom_call.1} parent=1 // pred_check
      _
    $region39: #{tpu_custom_call.1} parent=1 // pred_check_branch
      %120 = sbr.rel (0) target = $region41
    $region40: #{tpu_custom_call.1} parent=1 // pred_region
      %s122 = ssub.s32 16, 16
      %123 = vsyncadd [#allocation17], %s122
      %s125 = sshll.u32 [#allocation18], 4
      %s126 = int_to_ptr.vmem [resolvable:$true] %s125
      %128 = dma.hbm_to_vmem [thread:$0]  %s9, 16, %s126, [#allocation17]
    $region41: #{tpu_custom_call.1} parent=1 // pred_fallthru
      _
    // Predicated region
    $region42: #{tpu_custom_call.1} parent=1 // pred_check
      _
    $region43: #{tpu_custom_call.1} parent=1 // pred_check_branch
      %130 = sbr.rel (0) target = $region45
    $region44: #{tpu_custom_call.1} parent=1 // pred_region
      _
    $region45: #{tpu_custom_call.1} parent=1 // pred_fallthru
      _
    // Predicated region
    $region46: #{tpu_custom_call.1} parent=1 // pred_check
      _
    $region47: #{tpu_custom_call.1} parent=1 // pred_check_branch
      %132 = sbr.rel (0) target = $region49
    $region48: #{tpu_custom_call.1} parent=1 // pred_region
      _
    $region49: #{tpu_custom_call.1} parent=1 // pred_fallthru
      _
    // Predicated region
    $region50: #{tpu_custom_call.1} parent=1 // pred_check
      _
    $region51: #{tpu_custom_call.1} parent=1 // pred_check_branch
      %134 = sbr.rel (0) target = $region53
    $region52: #{tpu_custom_call.1} parent=1 // pred_region
      _
    $region53: #{tpu_custom_call.1} parent=1 // pred_fallthru
      _
    // Predicated region
    $region54: #{tpu_custom_call.1} parent=1 // pred_check
      _
    $region55: #{tpu_custom_call.1} parent=1 // pred_check_branch
      %136 = sbr.rel (0) target = $region57
    $region56: #{tpu_custom_call.1} parent=1 // pred_region
      _
    $region57: #{tpu_custom_call.1} parent=1 // pred_fallthru
      _
    // Predicated region
    $region58: #{tpu_custom_call.1} parent=1 // pred_check
      _
    $region59: #{tpu_custom_call.1} parent=1 // pred_check_branch
      %138 = sbr.rel (0) target = $region61
    $region60: #{tpu_custom_call.1} parent=1 // pred_region
      %139 = dma.done [#allocation5], 256
    $region61: #{tpu_custom_call.1} parent=1 // pred_fallthru
      _
    // Predicated region
    $region62: #{tpu_custom_call.1} parent=1 // pred_check
      _
    $region63: #{tpu_custom_call.1} parent=1 // pred_check_branch
      %141 = sbr.rel (0) target = $region65
    $region64: #{tpu_custom_call.1} parent=1 // pred_region
      %142 = dma.done [#allocation8], 512
    $region65: #{tpu_custom_call.1} parent=1 // pred_fallthru
      _
    // Predicated region
    $region66: #{tpu_custom_call.1} parent=1 // pred_check
      _
    $region67: #{tpu_custom_call.1} parent=1 // pred_check_branch
      %144 = sbr.rel (0) target = $region69
    $region68: #{tpu_custom_call.1} parent=1 // pred_region
      %145 = dma.done [#allocation8], 16
    $region69: #{tpu_custom_call.1} parent=1 // pred_fallthru
      _
    // Predicated region
    $region70: #{tpu_custom_call.1} parent=1 // pred_check
      _
    $region71: #{tpu_custom_call.1} parent=1 // pred_check_branch
      %147 = sbr.rel (0) target = $region73
    $region72: #{tpu_custom_call.1} parent=1 // pred_region
      %148 = dma.done [#allocation11], 512
    $region73: #{tpu_custom_call.1} parent=1 // pred_fallthru
      _
    // Predicated region
    $region74: #{tpu_custom_call.1} parent=1 // pred_check
      _
    $region75: #{tpu_custom_call.1} parent=1 // pred_check_branch
      %150 = sbr.rel (0) target = $region77
    $region76: #{tpu_custom_call.1} parent=1 // pred_region
      %151 = dma.done [#allocation11], 512
    $region77: #{tpu_custom_call.1} parent=1 // pred_fallthru
      _
    // Predicated region
    $region78: #{tpu_custom_call.1} parent=1 // pred_check
      _
    $region79: #{tpu_custom_call.1} parent=1 // pred_check_branch
      %153 = sbr.rel (0) target = $region81
    $region80: #{tpu_custom_call.1} parent=1 // pred_region
      %154 = dma.done [#allocation14], 16
    $region81: #{tpu_custom_call.1} parent=1 // pred_fallthru
      _
    // Predicated region
    $region82: #{tpu_custom_call.1} parent=1 // pred_check
      _
    $region83: #{tpu_custom_call.1} parent=1 // pred_check_branch
      %156 = sbr.rel (0) target = $region85
    $region84: #{tpu_custom_call.1} parent=1 // pred_region
      %157 = dma.done [#allocation14], 512
    $region85: #{tpu_custom_call.1} parent=1 // pred_fallthru
      _
    // Predicated region
    $region86: #{tpu_custom_call.1} parent=1 // pred_check
      _
    $region87: #{tpu_custom_call.1} parent=1 // pred_check_branch
      %159 = sbr.rel (0) target = $region89
    $region88: #{tpu_custom_call.1} parent=1 // pred_region
      %160 = dma.done [#allocation17], 512
    $region89: #{tpu_custom_call.1} parent=1 // pred_fallthru
      _
    // Predicated region
    $region90: #{tpu_custom_call.1} parent=1 // pred_check
      _
    $region91: #{tpu_custom_call.1} parent=1 // pred_check_branch
      %162 = sbr.rel (0) target = $region93
    $region92: #{tpu_custom_call.1} parent=1 // pred_region
      %163 = dma.done [#allocation17], 16
    $region93: #{tpu_custom_call.1} parent=1 // pred_fallthru
      _
    %v164 = vld [vmem:[#allocation4] sm:$0xff]
    %v165 = vld [vmem:[#allocation4 + $0x8] sm:$0xff]
    %v166 = vld [vmem:[%s1] sm:$0xff]
    %v167 = vld [vmem:[%s1 + $0x8] sm:$0xff]
    %v168 = vld [vmem:[%s1 + $0x10] sm:$0xff]
    %v169 = vld [vmem:[%s1 + $0x18] sm:$0xff]
    %v170 = vld [vmem:[%s1 + $0x20] sm:$0xff]
    %v171 = vld [vmem:[%s1 + $0x28] sm:$0xff]
    %v172 = vld [vmem:[%s1 + $0x30] sm:$0xff]
    %v173 = vld [vmem:[%s1 + $0x38] sm:$0xff]
    %v174 = vld [vmem:[#allocation9] sm:$0x1]
    %v176 = vlaneseq
    %v177 = vshrl.u32 %v176, 7
    %v178 = vsub.s32 0, %v177
    %v179 = vrot.slane %v174, %v178
    %vm181 = vcmask 523264
    %v183 = vsel %vm181, %v164, 0
    %v186 = vsel %vm181, %v165, 0
    %188 = vmatprep.subr.mxu0 0.0
    %189 = vmatpush1.msra.mxu0 0.0
    %190 = vmatprep.subr.mxu0 0.0
    %191 = vmatpush1.msra.mxu0 0.0
    %192 = vmatprep.subr.mxu0 0.0
    %193 = vmatpush1.msra.mxu0 0.0
    %194 = vmatprep.subr.mxu0 0.0
    %195 = vmatpush1.msra.mxu0 0.0
    %196 = vmatprep.subr.mxu0 0.0
    %197 = vmatpush1.msra.mxu0 0.0
    %198 = vmatprep.subr.mxu0 0.0
    %199 = vmatpush1.msra.mxu0 0.0
    %200 = vmatprep.subr.mxu0 0.0
    %201 = vmatpush1.msra.mxu0 0.0
    %202 = vmatprep.subr.mxu0 0.0
    %203 = vmatpush1.msra.mxu0 0.0
    %204 = vmatprep.subr.mxu0 0.0
    %205 = vmatpush1.msra.mxu0 %v173
    %206 = vmatprep.subr.mxu0 0.0
    %207 = vmatpush1.msra.mxu0 %v172
    %208 = vmatprep.subr.mxu0 0.0
    %209 = vmatpush1.msra.mxu0 %v171
    %210 = vmatprep.subr.mxu0 0.0
    %211 = vmatpush1.msra.mxu0 %v170
    %212 = vmatprep.subr.mxu0 0.0
    %213 = vmatpush1.msra.mxu0 %v169
    %214 = vmatprep.subr.mxu0 0.0
    %215 = vmatpush1.msra.mxu0 %v168
    %216 = vmatprep.subr.mxu0 0.0
    %217 = vmatpush1.msra.mxu0 %v167
    %218 = vmatprep.subr.mxu0 0.0
    %219 = vmatpush1.msra.mxu0 %v166
    %220 = vmatprep.subr.mxu0 0.0
    %221 = vmatpush2.msra.mxu0 0.0
    %222 = vmatprep.subr.mxu0 0.0
    %223 = vmatpush2.msra.mxu0 0.0
    %224 = vmatprep.subr.mxu0 0.0
    %225 = vmatpush2.msra.mxu0 0.0
    %226 = vmatprep.subr.mxu0 0.0
    %227 = vmatpush2.msra.mxu0 0.0
    %228 = vmatprep.subr.mxu0 0.0
    %229 = vmatpush2.msra.mxu0 0.0
    %230 = vmatprep.subr.mxu0 0.0
    %231 = vmatpush2.msra.mxu0 0.0
    %232 = vmatprep.subr.mxu0 0.0
    %233 = vmatpush2.msra.mxu0 0.0
    %234 = vmatprep.subr.mxu0 0.0
    %235 = vmatpush2.msra.mxu0 0.0
    %236 = vmatprep.subr.mxu0 0.0
    %237 = vmatpush2.msra.mxu0 0.0
    %238 = vmatprep.subr.mxu0 0.0
    %239 = vmatpush2.msra.mxu0 0.0
    %240 = vmatprep.subr.mxu0 0.0
    %241 = vmatpush2.msra.mxu0 0.0
    %242 = vmatprep.subr.mxu0 0.0
    %243 = vmatpush2.msra.mxu0 0.0
    %244 = vmatprep.subr.mxu0 0.0
    %245 = vmatpush2.msra.mxu0 0.0
    %246 = vmatprep.subr.mxu0 0.0
    %247 = vmatpush2.msra.mxu0 0.0
    %248 = vmatprep.subr.mxu0 0.0
    %249 = vmatpush2.msra.mxu0 0.0
    %250 = vmatprep.subr.mxu0 0.0
    %251 = vmatpush2.msra.mxu0 0.0
    %252 = vmatprep.mubr.f32.mxu0 0.0
    %253 = vmatmul.mubr.f32.gmra.mxu0 %v183
    %v254 = vpop.f32.mrf.mxu0
    %v255 = vadd.f32 %v179, %v254
    %v256 = vpop.f32.mrf.mxu0
    %257 = vmatprep.mubr.f32.mxu0 0.0
    %258 = vmatmul.mubr.f32.gmra.mxu0 %v186
    %v259 = vpop.f32.mrf.mxu0
    %v260 = vadd.f32 %v179, %v259
    %v261 = vpop.f32.mrf.mxu0
    %262 = vdwg.mxu0
    %263 = vst [vmem:[#allocation3] sm:$0xff] %v255
    %264 = vst [vmem:[#allocation3 + $0x8] sm:$0xff] %v260
    %v265 = vld [vmem:[#allocation7] sm:$0xff]
    %v266 = vld [vmem:[#allocation7 + $0x8] sm:$0xff]
    %v267 = vld [vmem:[#allocation7 + $0x10] sm:$0xff]
    %v268 = vld [vmem:[#allocation7 + $0x18] sm:$0xff]
    %v269 = vld [vmem:[#allocation3] sm:$0x3]
    %vm270 = vcmask 261120
    %v272 = vsel %vm270, 0.0, 0
    %274 = vmatprep.subr.mxu0 0.0
    %275 = vmatpush1.msra.mxu0 0.0
    %276 = vmatprep.subr.mxu0 0.0
    %277 = vmatpush1.msra.mxu0 0.0
    %278 = vmatprep.subr.mxu0 0.0
    %279 = vmatpush1.msra.mxu0 0.0
    %280 = vmatprep.subr.mxu0 0.0
    %281 = vmatpush1.msra.mxu0 0.0
    %282 = vmatprep.subr.mxu0 0.0
    %283 = vmatpush1.msra.mxu0 0.0
    %284 = vmatprep.subr.mxu0 0.0
    %285 = vmatpush1.msra.mxu0 0.0
    %286 = vmatprep.subr.mxu0 0.0
    %287 = vmatpush1.msra.mxu0 0.0
    %288 = vmatprep.subr.mxu0 0.0
    %289 = vmatpush1.msra.mxu0 0.0
    %290 = vmatprep.subr.mxu0 0.0
    %291 = vmatpush1.msra.mxu0 0.0
    %292 = vmatprep.subr.mxu0 0.0
    %293 = vmatpush1.msra.mxu0 0.0
    %294 = vmatprep.subr.mxu0 0.0
    %295 = vmatpush1.msra.mxu0 0.0
    %296 = vmatprep.subr.mxu0 0.0
    %297 = vmatpush1.msra.mxu0 0.0
    %298 = vmatprep.subr.mxu0 0.0
    %299 = vmatpush1.msra.mxu0 %v268
    %300 = vmatprep.subr.mxu0 0.0
    %301 = vmatpush1.msra.mxu0 %v267
    %302 = vmatprep.subr.mxu0 0.0
    %303 = vmatpush1.msra.mxu0 %v266
    %304 = vmatprep.subr.mxu0 0.0
    %305 = vmatpush1.msra.mxu0 %v265
    %306 = vmatprep.subr.mxu0 0.0
    %307 = vmatpush2.msra.mxu0 0.0
    %308 = vmatprep.subr.mxu0 0.0
    %309 = vmatpush2.msra.mxu0 0.0
    %310 = vmatprep.subr.mxu0 0.0
    %311 = vmatpush2.msra.mxu0 0.0
    %312 = vmatprep.subr.mxu0 0.0
    %313 = vmatpush2.msra.mxu0 0.0
    %314 = vmatprep.subr.mxu0 0.0
    %315 = vmatpush2.msra.mxu0 0.0
    %316 = vmatprep.subr.mxu0 0.0
    %317 = vmatpush2.msra.mxu0 0.0
    %318 = vmatprep.subr.mxu0 0.0
    %319 = vmatpush2.msra.mxu0 0.0
    %320 = vmatprep.subr.mxu0 0.0
    %321 = vmatpush2.msra.mxu0 0.0
    %322 = vmatprep.subr.mxu0 0.0
    %323 = vmatpush2.msra.mxu0 0.0
    %324 = vmatprep.subr.mxu0 0.0
    %325 = vmatpush2.msra.mxu0 0.0
    %326 = vmatprep.subr.mxu0 0.0
    %327 = vmatpush2.msra.mxu0 0.0
    %328 = vmatprep.subr.mxu0 0.0
    %329 = vmatpush2.msra.mxu0 0.0
    %330 = vmatprep.subr.mxu0 0.0
    %331 = vmatpush2.msra.mxu0 0.0
    %332 = vmatprep.subr.mxu0 0.0
    %333 = vmatpush2.msra.mxu0 0.0
    %334 = vmatprep.subr.mxu0 0.0
    %335 = vmatpush2.msra.mxu0 0.0
    %336 = vmatprep.subr.mxu0 0.0
    %337 = vmatpush2.msra.mxu0 0.0
    %338 = vmatprep.mubr.f32.mxu0 0.0
    %339 = vmatmul.mubr.f32.gmra.mxu0 %v272
    %v340 = vpop.f32.mrf.mxu0
    %v341 = vadd.f32 0.0, %v340
    %v342 = vpop.f32.mrf.mxu0
    %343 = vdwg.mxu0
    %v344 = vadd.f32 %v269, %v341
    %v345 = vxor.u32 %v344, 2147483648
    %v346 = vmul.f32 %v345, 1.442695
    %v347 = vpow.pop %v346
    %v348 = vadd.f32 %v347, 1.0
    %v349 = vrcp.pop %v348
    %v350 = vmul.f32 1.0, %v349
    %v351 = vtanh.pop %v344
    %v352 = vmul.f32 %v350, 0.0
    %354 = vrot.lane.b32.xlu0 %v351, 64
    %v355 = vpop.permute.xlu0 %354
    %v357 = vmul.f32 %v350, %v355
    %359 = vrot.lane.b32.xlu0 %v357, 32
    %v360 = vpop.permute.xlu0 %359
    %v362 = vadd.f32 %v352, %v360
    %v363 = vtanh.pop %v362
    %365 = vrot.lane.b32.xlu0 %v363, 64
    %v366 = vpop.permute.xlu0 %365
    %v368 = vmul.f32 %v350, %v366
    %370 = vrot.lane.b32.xlu0 %v368, 32
    %v371 = vpop.permute.xlu0 %370
    %vm373 = vcmask 254976
    %374 = vst.msk [vmem:[#allocation2] sm:$0x3] %vm373, %v371
    %s375 = scalar_lea.vmem [#allocation3], 2
    %v376 = vld [vmem:[%s375] sm:$0x3]
    %v377 = vsel %vm270, %v371, 0
    %379 = vmatprep.subr.mxu0 0.0
    %380 = vmatpush1.msra.mxu0 0.0
    %381 = vmatprep.subr.mxu0 0.0
    %382 = vmatpush1.msra.mxu0 0.0
    %383 = vmatprep.subr.mxu0 0.0
    %384 = vmatpush1.msra.mxu0 0.0
    %385 = vmatprep.subr.mxu0 0.0
    %386 = vmatpush1.msra.mxu0 0.0
    %387 = vmatprep.subr.mxu0 0.0
    %388 = vmatpush1.msra.mxu0 0.0
    %389 = vmatprep.subr.mxu0 0.0
    %390 = vmatpush1.msra.mxu0 0.0
    %391 = vmatprep.subr.mxu0 0.0
    %392 = vmatpush1.msra.mxu0 0.0
    %393 = vmatprep.subr.mxu0 0.0
    %394 = vmatpush1.msra.mxu0 0.0
    %395 = vmatprep.subr.mxu0 0.0
    %396 = vmatpush1.msra.mxu0 0.0
    %397 = vmatprep.subr.mxu0 0.0
    %398 = vmatpush1.msra.mxu0 0.0
    %399 = vmatprep.subr.mxu0 0.0
    %400 = vmatpush1.msra.mxu0 0.0
    %401 = vmatprep.subr.mxu0 0.0
    %402 = vmatpush1.msra.mxu0 0.0
    %403 = vmatprep.subr.mxu0 0.0
    %404 = vmatpush1.msra.mxu0 %v268
    %405 = vmatprep.subr.mxu0 0.0
    %406 = vmatpush1.msra.mxu0 %v267
    %407 = vmatprep.subr.mxu0 0.0
    %408 = vmatpush1.msra.mxu0 %v266
    %409 = vmatprep.subr.mxu0 0.0
    %410 = vmatpush1.msra.mxu0 %v265
    %411 = vmatprep.subr.mxu0 0.0
    %412 = vmatpush2.msra.mxu0 0.0
    %413 = vmatprep.subr.mxu0 0.0
    %414 = vmatpush2.msra.mxu0 0.0
    %415 = vmatprep.subr.mxu0 0.0
    %416 = vmatpush2.msra.mxu0 0.0
    %417 = vmatprep.subr.mxu0 0.0
    %418 = vmatpush2.msra.mxu0 0.0
    %419 = vmatprep.subr.mxu0 0.0
    %420 = vmatpush2.msra.mxu0 0.0
    %421 = vmatprep.subr.mxu0 0.0
    %422 = vmatpush2.msra.mxu0 0.0
    %423 = vmatprep.subr.mxu0 0.0
    %424 = vmatpush2.msra.mxu0 0.0
    %425 = vmatprep.subr.mxu0 0.0
    %426 = vmatpush2.msra.mxu0 0.0
    %427 = vmatprep.subr.mxu0 0.0
    %428 = vmatpush2.msra.mxu0 0.0
    %429 = vmatprep.subr.mxu0 0.0
    %430 = vmatpush2.msra.mxu0 0.0
    %431 = vmatprep.subr.mxu0 0.0
    %432 = vmatpush2.msra.mxu0 0.0
    %433 = vmatprep.subr.mxu0 0.0
    %434 = vmatpush2.msra.mxu0 0.0
    %435 = vmatprep.subr.mxu0 0.0
    %436 = vmatpush2.msra.mxu0 0.0
    %437 = vmatprep.subr.mxu0 0.0
    %438 = vmatpush2.msra.mxu0 0.0
    %439 = vmatprep.subr.mxu0 0.0
    %440 = vmatpush2.msra.mxu0 0.0
    %441 = vmatprep.subr.mxu0 0.0
    %442 = vmatpush2.msra.mxu0 0.0
    %443 = vmatprep.mubr.f32.mxu0 0.0
    %444 = vmatmul.mubr.f32.gmra.mxu0 %v377
    %v445 = vpop.f32.mrf.mxu0
    %v446 = vadd.f32 0.0, %v445
    %v447 = vpop.f32.mrf.mxu0
    %448 = vdwg.mxu0
    %v449 = vadd.f32 %v376, %v446
    %v450 = vxor.u32 %v449, 2147483648
    %v451 = vmul.f32 %v450, 1.442695
    %v452 = vpow.pop %v451
    %v453 = vadd.f32 %v452, 1.0
    %v454 = vrcp.pop %v453
    %v455 = vmul.f32 1.0, %v454
    %v456 = vtanh.pop %v449
    %v457 = vmul.f32 %v455, %v362
    %459 = vrot.lane.b32.xlu0 %v456, 64
    %v460 = vpop.permute.xlu0 %459
    %v462 = vmul.f32 %v455, %v460
    %464 = vrot.lane.b32.xlu0 %v462, 32
    %v465 = vpop.permute.xlu0 %464
    %v467 = vadd.f32 %v457, %v465
    %v468 = vtanh.pop %v467
    %470 = vrot.lane.b32.xlu0 %v468, 64
    %v471 = vpop.permute.xlu0 %470
    %v473 = vmul.f32 %v455, %v471
    %475 = vrot.lane.b32.xlu0 %v473, 32
    %v476 = vpop.permute.xlu0 %475
    %s478 = scalar_lea.vmem [#allocation2], 2
    %479 = vst.msk [vmem:[%s478] sm:$0x3] %vm373, %v476
    %s480 = scalar_lea.vmem [#allocation3], 4
    %v481 = vld [vmem:[%s480] sm:$0x3]
    %v482 = vsel %vm270, %v476, 0
    %484 = vmatprep.subr.mxu0 0.0
    %485 = vmatpush1.msra.mxu0 0.0
    %486 = vmatprep.subr.mxu0 0.0
    %487 = vmatpush1.msra.mxu0 0.0
    %488 = vmatprep.subr.mxu0 0.0
    %489 = vmatpush1.msra.mxu0 0.0
    %490 = vmatprep.subr.mxu0 0.0
    %491 = vmatpush1.msra.mxu0 0.0
    %492 = vmatprep.subr.mxu0 0.0
    %493 = vmatpush1.msra.mxu0 0.0
    %494 = vmatprep.subr.mxu0 0.0
    %495 = vmatpush1.msra.mxu0 0.0
    %496 = vmatprep.subr.mxu0 0.0
    %497 = vmatpush1.msra.mxu0 0.0
    %498 = vmatprep.subr.mxu0 0.0
    %499 = vmatpush1.msra.mxu0 0.0
    %500 = vmatprep.subr.mxu0 0.0
    %501 = vmatpush1.msra.mxu0 0.0
    %502 = vmatprep.subr.mxu0 0.0
    %503 = vmatpush1.msra.mxu0 0.0
    %504 = vmatprep.subr.mxu0 0.0
    %505 = vmatpush1.msra.mxu0 0.0
    %506 = vmatprep.subr.mxu0 0.0
    %507 = vmatpush1.msra.mxu0 0.0
    %508 = vmatprep.subr.mxu0 0.0
    %509 = vmatpush1.msra.mxu0 %v268
    %510 = vmatprep.subr.mxu0 0.0
    %511 = vmatpush1.msra.mxu0 %v267
    %512 = vmatprep.subr.mxu0 0.0
    %513 = vmatpush1.msra.mxu0 %v266
    %514 = vmatprep.subr.mxu0 0.0
    %515 = vmatpush1.msra.mxu0 %v265
    %516 = vmatprep.subr.mxu0 0.0
    %517 = vmatpush2.msra.mxu0 0.0
    %518 = vmatprep.subr.mxu0 0.0
    %519 = vmatpush2.msra.mxu0 0.0
    %520 = vmatprep.subr.mxu0 0.0
    %521 = vmatpush2.msra.mxu0 0.0
    %522 = vmatprep.subr.mxu0 0.0
    %523 = vmatpush2.msra.mxu0 0.0
    %524 = vmatprep.subr.mxu0 0.0
    %525 = vmatpush2.msra.mxu0 0.0
    %526 = vmatprep.subr.mxu0 0.0
    %527 = vmatpush2.msra.mxu0 0.0
    %528 = vmatprep.subr.mxu0 0.0
    %529 = vmatpush2.msra.mxu0 0.0
    %530 = vmatprep.subr.mxu0 0.0
    %531 = vmatpush2.msra.mxu0 0.0
    %532 = vmatprep.subr.mxu0 0.0
    %533 = vmatpush2.msra.mxu0 0.0
    %534 = vmatprep.subr.mxu0 0.0
    %535 = vmatpush2.msra.mxu0 0.0
    %536 = vmatprep.subr.mxu0 0.0
    %537 = vmatpush2.msra.mxu0 0.0
    %538 = vmatprep.subr.mxu0 0.0
    %539 = vmatpush2.msra.mxu0 0.0
    %540 = vmatprep.subr.mxu0 0.0
    %541 = vmatpush2.msra.mxu0 0.0
    %542 = vmatprep.subr.mxu0 0.0
    %543 = vmatpush2.msra.mxu0 0.0
    %544 = vmatprep.subr.mxu0 0.0
    %545 = vmatpush2.msra.mxu0 0.0
    %546 = vmatprep.subr.mxu0 0.0
    %547 = vmatpush2.msra.mxu0 0.0
    %548 = vmatprep.mubr.f32.mxu0 0.0
    %549 = vmatmul.mubr.f32.gmra.mxu0 %v482
    %v550 = vpop.f32.mrf.mxu0
    %v551 = vadd.f32 0.0, %v550
    %v552 = vpop.f32.mrf.mxu0
    %553 = vdwg.mxu0
    %v554 = vadd.f32 %v481, %v551
    %v555 = vxor.u32 %v554, 2147483648
    %v556 = vmul.f32 %v555, 1.442695
    %v557 = vpow.pop %v556
    %v558 = vadd.f32 %v557, 1.0
    %v559 = vrcp.pop %v558
    %v560 = vmul.f32 1.0, %v559
    %v561 = vtanh.pop %v554
    %v562 = vmul.f32 %v560, %v467
    %564 = vrot.lane.b32.xlu0 %v561, 64
    %v565 = vpop.permute.xlu0 %564
    %v567 = vmul.f32 %v560, %v565
    %569 = vrot.lane.b32.xlu0 %v567, 32
    %v570 = vpop.permute.xlu0 %569
    %v572 = vadd.f32 %v562, %v570
    %v573 = vtanh.pop %v572
    %575 = vrot.lane.b32.xlu0 %v573, 64
    %v576 = vpop.permute.xlu0 %575
    %v578 = vmul.f32 %v560, %v576
    %580 = vrot.lane.b32.xlu0 %v578, 32
    %v581 = vpop.permute.xlu0 %580
    %s583 = scalar_lea.vmem [#allocation2], 4
    %584 = vst.msk [vmem:[%s583] sm:$0x3] %vm373, %v581
    %s585 = scalar_lea.vmem [#allocation3], 6
    %v586 = vld [vmem:[%s585] sm:$0x3]
    %v587 = vsel %vm270, %v581, 0
    %589 = vmatprep.subr.mxu0 0.0
    %590 = vmatpush1.msra.mxu0 0.0
    %591 = vmatprep.subr.mxu0 0.0
    %592 = vmatpush1.msra.mxu0 0.0
    %593 = vmatprep.subr.mxu0 0.0
    %594 = vmatpush1.msra.mxu0 0.0
    %595 = vmatprep.subr.mxu0 0.0
    %596 = vmatpush1.msra.mxu0 0.0
    %597 = vmatprep.subr.mxu0 0.0
    %598 = vmatpush1.msra.mxu0 0.0
    %599 = vmatprep.subr.mxu0 0.0
    %600 = vmatpush1.msra.mxu0 0.0
    %601 = vmatprep.subr.mxu0 0.0
    %602 = vmatpush1.msra.mxu0 0.0
    %603 = vmatprep.subr.mxu0 0.0
    %604 = vmatpush1.msra.mxu0 0.0
    %605 = vmatprep.subr.mxu0 0.0
    %606 = vmatpush1.msra.mxu0 0.0
    %607 = vmatprep.subr.mxu0 0.0
    %608 = vmatpush1.msra.mxu0 0.0
    %609 = vmatprep.subr.mxu0 0.0
    %610 = vmatpush1.msra.mxu0 0.0
    %611 = vmatprep.subr.mxu0 0.0
    %612 = vmatpush1.msra.mxu0 0.0
    %613 = vmatprep.subr.mxu0 0.0
    %614 = vmatpush1.msra.mxu0 %v268
    %615 = vmatprep.subr.mxu0 0.0
    %616 = vmatpush1.msra.mxu0 %v267
    %617 = vmatprep.subr.mxu0 0.0
    %618 = vmatpush1.msra.mxu0 %v266
    %619 = vmatprep.subr.mxu0 0.0
    %620 = vmatpush1.msra.mxu0 %v265
    %621 = vmatprep.subr.mxu0 0.0
    %622 = vmatpush2.msra.mxu0 0.0
    %623 = vmatprep.subr.mxu0 0.0
    %624 = vmatpush2.msra.mxu0 0.0
    %625 = vmatprep.subr.mxu0 0.0
    %626 = vmatpush2.msra.mxu0 0.0
    %627 = vmatprep.subr.mxu0 0.0
    %628 = vmatpush2.msra.mxu0 0.0
    %629 = vmatprep.subr.mxu0 0.0
    %630 = vmatpush2.msra.mxu0 0.0
    %631 = vmatprep.subr.mxu0 0.0
    %632 = vmatpush2.msra.mxu0 0.0
    %633 = vmatprep.subr.mxu0 0.0
    %634 = vmatpush2.msra.mxu0 0.0
    %635 = vmatprep.subr.mxu0 0.0
    %636 = vmatpush2.msra.mxu0 0.0
    %637 = vmatprep.subr.mxu0 0.0
    %638 = vmatpush2.msra.mxu0 0.0
    %639 = vmatprep.subr.mxu0 0.0
    %640 = vmatpush2.msra.mxu0 0.0
    %641 = vmatprep.subr.mxu0 0.0
    %642 = vmatpush2.msra.mxu0 0.0
    %643 = vmatprep.subr.mxu0 0.0
    %644 = vmatpush2.msra.mxu0 0.0
    %645 = vmatprep.subr.mxu0 0.0
    %646 = vmatpush2.msra.mxu0 0.0
    %647 = vmatprep.subr.mxu0 0.0
    %648 = vmatpush2.msra.mxu0 0.0
    %649 = vmatprep.subr.mxu0 0.0
    %650 = vmatpush2.msra.mxu0 0.0
    %651 = vmatprep.subr.mxu0 0.0
    %652 = vmatpush2.msra.mxu0 0.0
    %653 = vmatprep.mubr.f32.mxu0 0.0
    %654 = vmatmul.mubr.f32.gmra.mxu0 %v587
    %v655 = vpop.f32.mrf.mxu0
    %v656 = vadd.f32 0.0, %v655
    %v657 = vpop.f32.mrf.mxu0
    %658 = vdwg.mxu0
    %v659 = vadd.f32 %v586, %v656
    %v660 = vxor.u32 %v659, 2147483648
    %v661 = vmul.f32 %v660, 1.442695
    %v662 = vpow.pop %v661
    %v663 = vadd.f32 %v662, 1.0
    %v664 = vrcp.pop %v663
    %v665 = vmul.f32 1.0, %v664
    %v666 = vtanh.pop %v659
    %v667 = vmul.f32 %v665, %v572
    %669 = vrot.lane.b32.xlu0 %v666, 64
    %v670 = vpop.permute.xlu0 %669
    %v672 = vmul.f32 %v665, %v670
    %674 = vrot.lane.b32.xlu0 %v672, 32
    %v675 = vpop.permute.xlu0 %674
    %v677 = vadd.f32 %v667, %v675
    %v678 = vtanh.pop %v677
    %680 = vrot.lane.b32.xlu0 %v678, 64
    %v681 = vpop.permute.xlu0 %680
    %v683 = vmul.f32 %v665, %v681
    %685 = vrot.lane.b32.xlu0 %v683, 32
    %v686 = vpop.permute.xlu0 %685
    %s688 = scalar_lea.vmem [#allocation2], 6
    %689 = vst.msk [vmem:[%s688] sm:$0x3] %vm373, %v686
    %s690 = scalar_lea.vmem [#allocation3], 8
    %v691 = vld [vmem:[%s690] sm:$0x3]
    %v692 = vsel %vm270, %v686, 0
    %694 = vmatprep.subr.mxu0 0.0
    %695 = vmatpush1.msra.mxu0 0.0
    %696 = vmatprep.subr.mxu0 0.0
    %697 = vmatpush1.msra.mxu0 0.0
    %698 = vmatprep.subr.mxu0 0.0
    %699 = vmatpush1.msra.mxu0 0.0
    %700 = vmatprep.subr.mxu0 0.0
    %701 = vmatpush1.msra.mxu0 0.0
    %702 = vmatprep.subr.mxu0 0.0
    %703 = vmatpush1.msra.mxu0 0.0
    %704 = vmatprep.subr.mxu0 0.0
    %705 = vmatpush1.msra.mxu0 0.0
    %706 = vmatprep.subr.mxu0 0.0
    %707 = vmatpush1.msra.mxu0 0.0
    %708 = vmatprep.subr.mxu0 0.0
    %709 = vmatpush1.msra.mxu0 0.0
    %710 = vmatprep.subr.mxu0 0.0
    %711 = vmatpush1.msra.mxu0 0.0
    %712 = vmatprep.subr.mxu0 0.0
    %713 = vmatpush1.msra.mxu0 0.0
    %714 = vmatprep.subr.mxu0 0.0
    %715 = vmatpush1.msra.mxu0 0.0
    %716 = vmatprep.subr.mxu0 0.0
    %717 = vmatpush1.msra.mxu0 0.0
    %718 = vmatprep.subr.mxu0 0.0
    %719 = vmatpush1.msra.mxu0 %v268
    %720 = vmatprep.subr.mxu0 0.0
    %721 = vmatpush1.msra.mxu0 %v267
    %722 = vmatprep.subr.mxu0 0.0
    %723 = vmatpush1.msra.mxu0 %v266
    %724 = vmatprep.subr.mxu0 0.0
    %725 = vmatpush1.msra.mxu0 %v265
    %726 = vmatprep.subr.mxu0 0.0
    %727 = vmatpush2.msra.mxu0 0.0
    %728 = vmatprep.subr.mxu0 0.0
    %729 = vmatpush2.msra.mxu0 0.0
    %730 = vmatprep.subr.mxu0 0.0
    %731 = vmatpush2.msra.mxu0 0.0
    %732 = vmatprep.subr.mxu0 0.0
    %733 = vmatpush2.msra.mxu0 0.0
    %734 = vmatprep.subr.mxu0 0.0
    %735 = vmatpush2.msra.mxu0 0.0
    %736 = vmatprep.subr.mxu0 0.0
    %737 = vmatpush2.msra.mxu0 0.0
    %738 = vmatprep.subr.mxu0 0.0
    %739 = vmatpush2.msra.mxu0 0.0
    %740 = vmatprep.subr.mxu0 0.0
    %741 = vmatpush2.msra.mxu0 0.0
    %742 = vmatprep.subr.mxu0 0.0
    %743 = vmatpush2.msra.mxu0 0.0
    %744 = vmatprep.subr.mxu0 0.0
    %745 = vmatpush2.msra.mxu0 0.0
    %746 = vmatprep.subr.mxu0 0.0
    %747 = vmatpush2.msra.mxu0 0.0
    %748 = vmatprep.subr.mxu0 0.0
    %749 = vmatpush2.msra.mxu0 0.0
    %750 = vmatprep.subr.mxu0 0.0
    %751 = vmatpush2.msra.mxu0 0.0
    %752 = vmatprep.subr.mxu0 0.0
    %753 = vmatpush2.msra.mxu0 0.0
    %754 = vmatprep.subr.mxu0 0.0
    %755 = vmatpush2.msra.mxu0 0.0
    %756 = vmatprep.subr.mxu0 0.0
    %757 = vmatpush2.msra.mxu0 0.0
    %758 = vmatprep.mubr.f32.mxu0 0.0
    %759 = vmatmul.mubr.f32.gmra.mxu0 %v692
    %v760 = vpop.f32.mrf.mxu0
    %v761 = vadd.f32 0.0, %v760
    %v762 = vpop.f32.mrf.mxu0
    %763 = vdwg.mxu0
    %v764 = vadd.f32 %v691, %v761
    %v765 = vxor.u32 %v764, 2147483648
    %v766 = vmul.f32 %v765, 1.442695
    %v767 = vpow.pop %v766
    %v768 = vadd.f32 %v767, 1.0
    %v769 = vrcp.pop %v768
    %v770 = vmul.f32 1.0, %v769
    %v771 = vtanh.pop %v764
    %v772 = vmul.f32 %v770, %v677
    %774 = vrot.lane.b32.xlu0 %v771, 64
    %v775 = vpop.permute.xlu0 %774
    %v777 = vmul.f32 %v770, %v775
    %779 = vrot.lane.b32.xlu0 %v777, 32
    %v780 = vpop.permute.xlu0 %779
    %v782 = vadd.f32 %v772, %v780
    %v783 = vtanh.pop %v782
    %785 = vrot.lane.b32.xlu0 %v783, 64
    %v786 = vpop.permute.xlu0 %785
    %v788 = vmul.f32 %v770, %v786
    %790 = vrot.lane.b32.xlu0 %v788, 32
    %v791 = vpop.permute.xlu0 %790
    %s793 = scalar_lea.vmem [#allocation2], 8
    %794 = vst.msk [vmem:[%s793] sm:$0x3] %vm373, %v791
    %s795 = scalar_lea.vmem [#allocation3], 10
    %v796 = vld [vmem:[%s795] sm:$0x3]
    %v797 = vsel %vm270, %v791, 0
    %799 = vmatprep.subr.mxu0 0.0
    %800 = vmatpush1.msra.mxu0 0.0
    %801 = vmatprep.subr.mxu0 0.0
    %802 = vmatpush1.msra.mxu0 0.0
    %803 = vmatprep.subr.mxu0 0.0
    %804 = vmatpush1.msra.mxu0 0.0
    %805 = vmatprep.subr.mxu0 0.0
    %806 = vmatpush1.msra.mxu0 0.0
    %807 = vmatprep.subr.mxu0 0.0
    %808 = vmatpush1.msra.mxu0 0.0
    %809 = vmatprep.subr.mxu0 0.0
    %810 = vmatpush1.msra.mxu0 0.0
    %811 = vmatprep.subr.mxu0 0.0
    %812 = vmatpush1.msra.mxu0 0.0
    %813 = vmatprep.subr.mxu0 0.0
    %814 = vmatpush1.msra.mxu0 0.0
    %815 = vmatprep.subr.mxu0 0.0
    %816 = vmatpush1.msra.mxu0 0.0
    %817 = vmatprep.subr.mxu0 0.0
    %818 = vmatpush1.msra.mxu0 0.0
    %819 = vmatprep.subr.mxu0 0.0
    %820 = vmatpush1.msra.mxu0 0.0
    %821 = vmatprep.subr.mxu0 0.0
    %822 = vmatpush1.msra.mxu0 0.0
    %823 = vmatprep.subr.mxu0 0.0
    %824 = vmatpush1.msra.mxu0 %v268
    %825 = vmatprep.subr.mxu0 0.0
    %826 = vmatpush1.msra.mxu0 %v267
    %827 = vmatprep.subr.mxu0 0.0
    %828 = vmatpush1.msra.mxu0 %v266
    %829 = vmatprep.subr.mxu0 0.0
    %830 = vmatpush1.msra.mxu0 %v265
    %831 = vmatprep.subr.mxu0 0.0
    %832 = vmatpush2.msra.mxu0 0.0
    %833 = vmatprep.subr.mxu0 0.0
    %834 = vmatpush2.msra.mxu0 0.0
    %835 = vmatprep.subr.mxu0 0.0
    %836 = vmatpush2.msra.mxu0 0.0
    %837 = vmatprep.subr.mxu0 0.0
    %838 = vmatpush2.msra.mxu0 0.0
    %839 = vmatprep.subr.mxu0 0.0
    %840 = vmatpush2.msra.mxu0 0.0
    %841 = vmatprep.subr.mxu0 0.0
    %842 = vmatpush2.msra.mxu0 0.0
    %843 = vmatprep.subr.mxu0 0.0
    %844 = vmatpush2.msra.mxu0 0.0
    %845 = vmatprep.subr.mxu0 0.0
    %846 = vmatpush2.msra.mxu0 0.0
    %847 = vmatprep.subr.mxu0 0.0
    %848 = vmatpush2.msra.mxu0 0.0
    %849 = vmatprep.subr.mxu0 0.0
    %850 = vmatpush2.msra.mxu0 0.0
    %851 = vmatprep.subr.mxu0 0.0
    %852 = vmatpush2.msra.mxu0 0.0
    %853 = vmatprep.subr.mxu0 0.0
    %854 = vmatpush2.msra.mxu0 0.0
    %855 = vmatprep.subr.mxu0 0.0
    %856 = vmatpush2.msra.mxu0 0.0
    %857 = vmatprep.subr.mxu0 0.0
    %858 = vmatpush2.msra.mxu0 0.0
    %859 = vmatprep.subr.mxu0 0.0
    %860 = vmatpush2.msra.mxu0 0.0
    %861 = vmatprep.subr.mxu0 0.0
    %862 = vmatpush2.msra.mxu0 0.0
    %863 = vmatprep.mubr.f32.mxu0 0.0
    %864 = vmatmul.mubr.f32.gmra.mxu0 %v797
    %v865 = vpop.f32.mrf.mxu0
    %v866 = vadd.f32 0.0, %v865
    %v867 = vpop.f32.mrf.mxu0
    %868 = vdwg.mxu0
    %v869 = vadd.f32 %v796, %v866
    %v870 = vxor.u32 %v869, 2147483648
    %v871 = vmul.f32 %v870, 1.442695
    %v872 = vpow.pop %v871
    %v873 = vadd.f32 %v872, 1.0
    %v874 = vrcp.pop %v873
    %v875 = vmul.f32 1.0, %v874
    %v876 = vtanh.pop %v869
    %v877 = vmul.f32 %v875, %v782
    %879 = vrot.lane.b32.xlu0 %v876, 64
    %v880 = vpop.permute.xlu0 %879
    %v882 = vmul.f32 %v875, %v880
    %884 = vrot.lane.b32.xlu0 %v882, 32
    %v885 = vpop.permute.xlu0 %884
    %v887 = vadd.f32 %v877, %v885
    %v888 = vtanh.pop %v887
    %890 = vrot.lane.b32.xlu0 %v888, 64
    %v891 = vpop.permute.xlu0 %890
    %v893 = vmul.f32 %v875, %v891
    %895 = vrot.lane.b32.xlu0 %v893, 32
    %v896 = vpop.permute.xlu0 %895
    %s898 = scalar_lea.vmem [#allocation2], 10
    %899 = vst.msk [vmem:[%s898] sm:$0x3] %vm373, %v896
    %s900 = scalar_lea.vmem [#allocation3], 12
    %v901 = vld [vmem:[%s900] sm:$0x3]
    %v902 = vsel %vm270, %v896, 0
    %904 = vmatprep.subr.mxu0 0.0
    %905 = vmatpush1.msra.mxu0 0.0
    %906 = vmatprep.subr.mxu0 0.0
    %907 = vmatpush1.msra.mxu0 0.0
    %908 = vmatprep.subr.mxu0 0.0
    %909 = vmatpush1.msra.mxu0 0.0
    %910 = vmatprep.subr.mxu0 0.0
    %911 = vmatpush1.msra.mxu0 0.0
    %912 = vmatprep.subr.mxu0 0.0
    %913 = vmatpush1.msra.mxu0 0.0
    %914 = vmatprep.subr.mxu0 0.0
    %915 = vmatpush1.msra.mxu0 0.0
    %916 = vmatprep.subr.mxu0 0.0
    %917 = vmatpush1.msra.mxu0 0.0
    %918 = vmatprep.subr.mxu0 0.0
    %919 = vmatpush1.msra.mxu0 0.0
    %920 = vmatprep.subr.mxu0 0.0
    %921 = vmatpush1.msra.mxu0 0.0
    %922 = vmatprep.subr.mxu0 0.0
    %923 = vmatpush1.msra.mxu0 0.0
    %924 = vmatprep.subr.mxu0 0.0
    %925 = vmatpush1.msra.mxu0 0.0
    %926 = vmatprep.subr.mxu0 0.0
    %927 = vmatpush1.msra.mxu0 0.0
    %928 = vmatprep.subr.mxu0 0.0
    %929 = vmatpush1.msra.mxu0 %v268
    %930 = vmatprep.subr.mxu0 0.0
    %931 = vmatpush1.msra.mxu0 %v267
    %932 = vmatprep.subr.mxu0 0.0
    %933 = vmatpush1.msra.mxu0 %v266
    %934 = vmatprep.subr.mxu0 0.0
    %935 = vmatpush1.msra.mxu0 %v265
    %936 = vmatprep.subr.mxu0 0.0
    %937 = vmatpush2.msra.mxu0 0.0
    %938 = vmatprep.subr.mxu0 0.0
    %939 = vmatpush2.msra.mxu0 0.0
    %940 = vmatprep.subr.mxu0 0.0
    %941 = vmatpush2.msra.mxu0 0.0
    %942 = vmatprep.subr.mxu0 0.0
    %943 = vmatpush2.msra.mxu0 0.0
    %944 = vmatprep.subr.mxu0 0.0
    %945 = vmatpush2.msra.mxu0 0.0
    %946 = vmatprep.subr.mxu0 0.0
    %947 = vmatpush2.msra.mxu0 0.0
    %948 = vmatprep.subr.mxu0 0.0
    %949 = vmatpush2.msra.mxu0 0.0
    %950 = vmatprep.subr.mxu0 0.0
    %951 = vmatpush2.msra.mxu0 0.0
    %952 = vmatprep.subr.mxu0 0.0
    %953 = vmatpush2.msra.mxu0 0.0
    %954 = vmatprep.subr.mxu0 0.0
    %955 = vmatpush2.msra.mxu0 0.0
    %956 = vmatprep.subr.mxu0 0.0
    %957 = vmatpush2.msra.mxu0 0.0
    %958 = vmatprep.subr.mxu0 0.0
    %959 = vmatpush2.msra.mxu0 0.0
    %960 = vmatprep.subr.mxu0 0.0
    %961 = vmatpush2.msra.mxu0 0.0
    %962 = vmatprep.subr.mxu0 0.0
    %963 = vmatpush2.msra.mxu0 0.0
    %964 = vmatprep.subr.mxu0 0.0
    %965 = vmatpush2.msra.mxu0 0.0
    %966 = vmatprep.subr.mxu0 0.0
    %967 = vmatpush2.msra.mxu0 0.0
    %968 = vmatprep.mubr.f32.mxu0 0.0
    %969 = vmatmul.mubr.f32.gmra.mxu0 %v902
    %v970 = vpop.f32.mrf.mxu0
    %v971 = vadd.f32 0.0, %v970
    %v972 = vpop.f32.mrf.mxu0
    %973 = vdwg.mxu0
    %v974 = vadd.f32 %v901, %v971
    %v975 = vxor.u32 %v974, 2147483648
    %v976 = vmul.f32 %v975, 1.442695
    %v977 = vpow.pop %v976
    %v978 = vadd.f32 %v977, 1.0
    %v979 = vrcp.pop %v978
    %v980 = vmul.f32 1.0, %v979
    %v981 = vtanh.pop %v974
    %v982 = vmul.f32 %v980, %v887
    %984 = vrot.lane.b32.xlu0 %v981, 64
    %v985 = vpop.permute.xlu0 %984
    %v987 = vmul.f32 %v980, %v985
    %989 = vrot.lane.b32.xlu0 %v987, 32
    %v990 = vpop.permute.xlu0 %989
    %v992 = vadd.f32 %v982, %v990
    %v993 = vtanh.pop %v992
    %995 = vrot.lane.b32.xlu0 %v993, 64
    %v996 = vpop.permute.xlu0 %995
    %v998 = vmul.f32 %v980, %v996
    %1000 = vrot.lane.b32.xlu0 %v998, 32
    %v1001 = vpop.permute.xlu0 %1000
    %s1003 = scalar_lea.vmem [#allocation2], 12
    %1004 = vst.msk [vmem:[%s1003] sm:$0x3] %vm373, %v1001
    %s1005 = scalar_lea.vmem [#allocation3], 14
    %v1006 = vld [vmem:[%s1005] sm:$0x3]
    %v1007 = vsel %vm270, %v1001, 0
    %1009 = vmatprep.subr.mxu0 0.0
    %1010 = vmatpush1.msra.mxu0 0.0
    %1011 = vmatprep.subr.mxu0 0.0
    %1012 = vmatpush1.msra.mxu0 0.0
    %1013 = vmatprep.subr.mxu0 0.0
    %1014 = vmatpush1.msra.mxu0 0.0
    %1015 = vmatprep.subr.mxu0 0.0
    %1016 = vmatpush1.msra.mxu0 0.0
    %1017 = vmatprep.subr.mxu0 0.0
    %1018 = vmatpush1.msra.mxu0 0.0
    %1019 = vmatprep.subr.mxu0 0.0
    %1020 = vmatpush1.msra.mxu0 0.0
    %1021 = vmatprep.subr.mxu0 0.0
    %1022 = vmatpush1.msra.mxu0 0.0
    %1023 = vmatprep.subr.mxu0 0.0
    %1024 = vmatpush1.msra.mxu0 0.0
    %1025 = vmatprep.subr.mxu0 0.0
    %1026 = vmatpush1.msra.mxu0 0.0
    %1027 = vmatprep.subr.mxu0 0.0
    %1028 = vmatpush1.msra.mxu0 0.0
    %1029 = vmatprep.subr.mxu0 0.0
    %1030 = vmatpush1.msra.mxu0 0.0
    %1031 = vmatprep.subr.mxu0 0.0
    %1032 = vmatpush1.msra.mxu0 0.0
    %1033 = vmatprep.subr.mxu0 0.0
    %1034 = vmatpush1.msra.mxu0 %v268
    %1035 = vmatprep.subr.mxu0 0.0
    %1036 = vmatpush1.msra.mxu0 %v267
    %1037 = vmatprep.subr.mxu0 0.0
    %1038 = vmatpush1.msra.mxu0 %v266
    %1039 = vmatprep.subr.mxu0 0.0
    %1040 = vmatpush1.msra.mxu0 %v265
    %1041 = vmatprep.subr.mxu0 0.0
    %1042 = vmatpush2.msra.mxu0 0.0
    %1043 = vmatprep.subr.mxu0 0.0
    %1044 = vmatpush2.msra.mxu0 0.0
    %1045 = vmatprep.subr.mxu0 0.0
    %1046 = vmatpush2.msra.mxu0 0.0
    %1047 = vmatprep.subr.mxu0 0.0
    %1048 = vmatpush2.msra.mxu0 0.0
    %1049 = vmatprep.subr.mxu0 0.0
    %1050 = vmatpush2.msra.mxu0 0.0
    %1051 = vmatprep.subr.mxu0 0.0
    %1052 = vmatpush2.msra.mxu0 0.0
    %1053 = vmatprep.subr.mxu0 0.0
    %1054 = vmatpush2.msra.mxu0 0.0
    %1055 = vmatprep.subr.mxu0 0.0
    %1056 = vmatpush2.msra.mxu0 0.0
    %1057 = vmatprep.subr.mxu0 0.0
    %1058 = vmatpush2.msra.mxu0 0.0
    %1059 = vmatprep.subr.mxu0 0.0
    %1060 = vmatpush2.msra.mxu0 0.0
    %1061 = vmatprep.subr.mxu0 0.0
    %1062 = vmatpush2.msra.mxu0 0.0
    %1063 = vmatprep.subr.mxu0 0.0
    %1064 = vmatpush2.msra.mxu0 0.0
    %1065 = vmatprep.subr.mxu0 0.0
    %1066 = vmatpush2.msra.mxu0 0.0
    %1067 = vmatprep.subr.mxu0 0.0
    %1068 = vmatpush2.msra.mxu0 0.0
    %1069 = vmatprep.subr.mxu0 0.0
    %1070 = vmatpush2.msra.mxu0 0.0
    %1071 = vmatprep.subr.mxu0 0.0
    %1072 = vmatpush2.msra.mxu0 0.0
    %1073 = vmatprep.mubr.f32.mxu0 0.0
    %1074 = vmatmul.mubr.f32.gmra.mxu0 %v1007
    %v1075 = vpop.f32.mrf.mxu0
    %v1076 = vadd.f32 0.0, %v1075
    %v1077 = vpop.f32.mrf.mxu0
    %1078 = vdwg.mxu0
    %v1079 = vadd.f32 %v1006, %v1076
    %v1080 = vxor.u32 %v1079, 2147483648
    %v1081 = vmul.f32 %v1080, 1.442695
    %v1082 = vpow.pop %v1081
    %v1083 = vadd.f32 %v1082, 1.0
    %v1084 = vrcp.pop %v1083
    %v1085 = vmul.f32 1.0, %v1084
    %v1086 = vtanh.pop %v1079
    %v1087 = vmul.f32 %v1085, %v992
    %1089 = vrot.lane.b32.xlu0 %v1086, 64
    %v1090 = vpop.permute.xlu0 %1089
    %v1092 = vmul.f32 %v1085, %v1090
    %1094 = vrot.lane.b32.xlu0 %v1092, 32
    %v1095 = vpop.permute.xlu0 %1094
    %v1097 = vadd.f32 %v1087, %v1095
    %v1098 = vtanh.pop %v1097
    %1100 = vrot.lane.b32.xlu0 %v1098, 64
    %v1101 = vpop.permute.xlu0 %1100
    %v1103 = vmul.f32 %v1085, %v1101
    %1105 = vrot.lane.b32.xlu0 %v1103, 32
    %v1106 = vpop.permute.xlu0 %1105
    %s1108 = scalar_lea.vmem [#allocation2], 14
    %1109 = vst.msk [vmem:[%s1108] sm:$0x3] %vm373, %v1106
    %v1110 = vld [vmem:[#allocation2] sm:$0xff]
    %v1111 = vld [vmem:[#allocation2 + $0x8] sm:$0xff]
    %v1112 = vld [vmem:[#allocation10] sm:$0xff]
    %v1113 = vld [vmem:[#allocation10 + $0x8] sm:$0xff]
    %v1114 = vld [vmem:[#allocation10 + $0x10] sm:$0xff]
    %v1115 = vld [vmem:[#allocation10 + $0x18] sm:$0xff]
    %v1116 = vld [vmem:[#allocation13] sm:$0x1]
    %v1118 = vlaneseq
    %v1119 = vshrl.u32 %v1118, 7
    %v1120 = vsub.s32 0, %v1119
    %v1121 = vrot.slane %v1116, %v1120
    %v1124 = vsel %vm270, %v1110, 0
    %v1127 = vsel %vm270, %v1111, 0
    %1129 = vmatprep.subr.mxu0 0.0
    %1130 = vmatpush1.msra.mxu0 0.0
    %1131 = vmatprep.subr.mxu0 0.0
    %1132 = vmatpush1.msra.mxu0 0.0
    %1133 = vmatprep.subr.mxu0 0.0
    %1134 = vmatpush1.msra.mxu0 0.0
    %1135 = vmatprep.subr.mxu0 0.0
    %1136 = vmatpush1.msra.mxu0 0.0
    %1137 = vmatprep.subr.mxu0 0.0
    %1138 = vmatpush1.msra.mxu0 0.0
    %1139 = vmatprep.subr.mxu0 0.0
    %1140 = vmatpush1.msra.mxu0 0.0
    %1141 = vmatprep.subr.mxu0 0.0
    %1142 = vmatpush1.msra.mxu0 0.0
    %1143 = vmatprep.subr.mxu0 0.0
    %1144 = vmatpush1.msra.mxu0 0.0
    %1145 = vmatprep.subr.mxu0 0.0
    %1146 = vmatpush1.msra.mxu0 0.0
    %1147 = vmatprep.subr.mxu0 0.0
    %1148 = vmatpush1.msra.mxu0 0.0
    %1149 = vmatprep.subr.mxu0 0.0
    %1150 = vmatpush1.msra.mxu0 0.0
    %1151 = vmatprep.subr.mxu0 0.0
    %1152 = vmatpush1.msra.mxu0 0.0
    %1153 = vmatprep.subr.mxu0 0.0
    %1154 = vmatpush1.msra.mxu0 %v1115
    %1155 = vmatprep.subr.mxu0 0.0
    %1156 = vmatpush1.msra.mxu0 %v1114
    %1157 = vmatprep.subr.mxu0 0.0
    %1158 = vmatpush1.msra.mxu0 %v1113
    %1159 = vmatprep.subr.mxu0 0.0
    %1160 = vmatpush1.msra.mxu0 %v1112
    %1161 = vmatprep.subr.mxu0 0.0
    %1162 = vmatpush2.msra.mxu0 0.0
    %1163 = vmatprep.subr.mxu0 0.0
    %1164 = vmatpush2.msra.mxu0 0.0
    %1165 = vmatprep.subr.mxu0 0.0
    %1166 = vmatpush2.msra.mxu0 0.0
    %1167 = vmatprep.subr.mxu0 0.0
    %1168 = vmatpush2.msra.mxu0 0.0
    %1169 = vmatprep.subr.mxu0 0.0
    %1170 = vmatpush2.msra.mxu0 0.0
    %1171 = vmatprep.subr.mxu0 0.0
    %1172 = vmatpush2.msra.mxu0 0.0
    %1173 = vmatprep.subr.mxu0 0.0
    %1174 = vmatpush2.msra.mxu0 0.0
    %1175 = vmatprep.subr.mxu0 0.0
    %1176 = vmatpush2.msra.mxu0 0.0
    %1177 = vmatprep.subr.mxu0 0.0
    %1178 = vmatpush2.msra.mxu0 0.0
    %1179 = vmatprep.subr.mxu0 0.0
    %1180 = vmatpush2.msra.mxu0 0.0
    %1181 = vmatprep.subr.mxu0 0.0
    %1182 = vmatpush2.msra.mxu0 0.0
    %1183 = vmatprep.subr.mxu0 0.0
    %1184 = vmatpush2.msra.mxu0 0.0
    %1185 = vmatprep.subr.mxu0 0.0
    %1186 = vmatpush2.msra.mxu0 0.0
    %1187 = vmatprep.subr.mxu0 0.0
    %1188 = vmatpush2.msra.mxu0 0.0
    %1189 = vmatprep.subr.mxu0 0.0
    %1190 = vmatpush2.msra.mxu0 0.0
    %1191 = vmatprep.subr.mxu0 0.0
    %1192 = vmatpush2.msra.mxu0 0.0
    %1193 = vmatprep.mubr.f32.mxu0 0.0
    %1194 = vmatmul.mubr.f32.gmra.mxu0 %v1124
    %v1195 = vpop.f32.mrf.mxu0
    %v1196 = vadd.f32 %v1121, %v1195
    %v1197 = vpop.f32.mrf.mxu0
    %1198 = vmatprep.mubr.f32.mxu0 0.0
    %1199 = vmatmul.mubr.f32.gmra.mxu0 %v1127
    %v1200 = vpop.f32.mrf.mxu0
    %v1201 = vadd.f32 %v1121, %v1200
    %v1202 = vpop.f32.mrf.mxu0
    %1203 = vdwg.mxu0
    %1204 = vst [vmem:[#allocation3] sm:$0xff] %v1196
    %1205 = vst [vmem:[#allocation3 + $0x8] sm:$0xff] %v1201
    %v1206 = vld [vmem:[#allocation12] sm:$0xff]
    %v1207 = vld [vmem:[#allocation12 + $0x8] sm:$0xff]
    %v1208 = vld [vmem:[#allocation12 + $0x10] sm:$0xff]
    %v1209 = vld [vmem:[#allocation12 + $0x18] sm:$0xff]
    %v1210 = vld [vmem:[#allocation3] sm:$0x3]
    %1211 = vmatprep.subr.mxu0 0.0
    %1212 = vmatpush1.msra.mxu0 0.0
    %1213 = vmatprep.subr.mxu0 0.0
    %1214 = vmatpush1.msra.mxu0 0.0
    %1215 = vmatprep.subr.mxu0 0.0
    %1216 = vmatpush1.msra.mxu0 0.0
    %1217 = vmatprep.subr.mxu0 0.0
    %1218 = vmatpush1.msra.mxu0 0.0
    %1219 = vmatprep.subr.mxu0 0.0
    %1220 = vmatpush1.msra.mxu0 0.0
    %1221 = vmatprep.subr.mxu0 0.0
    %1222 = vmatpush1.msra.mxu0 0.0
    %1223 = vmatprep.subr.mxu0 0.0
    %1224 = vmatpush1.msra.mxu0 0.0
    %1225 = vmatprep.subr.mxu0 0.0
    %1226 = vmatpush1.msra.mxu0 0.0
    %1227 = vmatprep.subr.mxu0 0.0
    %1228 = vmatpush1.msra.mxu0 0.0
    %1229 = vmatprep.subr.mxu0 0.0
    %1230 = vmatpush1.msra.mxu0 0.0
    %1231 = vmatprep.subr.mxu0 0.0
    %1232 = vmatpush1.msra.mxu0 0.0
    %1233 = vmatprep.subr.mxu0 0.0
    %1234 = vmatpush1.msra.mxu0 0.0
    %1235 = vmatprep.subr.mxu0 0.0
    %1236 = vmatpush1.msra.mxu0 %v1209
    %1237 = vmatprep.subr.mxu0 0.0
    %1238 = vmatpush1.msra.mxu0 %v1208
    %1239 = vmatprep.subr.mxu0 0.0
    %1240 = vmatpush1.msra.mxu0 %v1207
    %1241 = vmatprep.subr.mxu0 0.0
    %1242 = vmatpush1.msra.mxu0 %v1206
    %1243 = vmatprep.subr.mxu0 0.0
    %1244 = vmatpush2.msra.mxu0 0.0
    %1245 = vmatprep.subr.mxu0 0.0
    %1246 = vmatpush2.msra.mxu0 0.0
    %1247 = vmatprep.subr.mxu0 0.0
    %1248 = vmatpush2.msra.mxu0 0.0
    %1249 = vmatprep.subr.mxu0 0.0
    %1250 = vmatpush2.msra.mxu0 0.0
    %1251 = vmatprep.subr.mxu0 0.0
    %1252 = vmatpush2.msra.mxu0 0.0
    %1253 = vmatprep.subr.mxu0 0.0
    %1254 = vmatpush2.msra.mxu0 0.0
    %1255 = vmatprep.subr.mxu0 0.0
    %1256 = vmatpush2.msra.mxu0 0.0
    %1257 = vmatprep.subr.mxu0 0.0
    %1258 = vmatpush2.msra.mxu0 0.0
    %1259 = vmatprep.subr.mxu0 0.0
    %1260 = vmatpush2.msra.mxu0 0.0
    %1261 = vmatprep.subr.mxu0 0.0
    %1262 = vmatpush2.msra.mxu0 0.0
    %1263 = vmatprep.subr.mxu0 0.0
    %1264 = vmatpush2.msra.mxu0 0.0
    %1265 = vmatprep.subr.mxu0 0.0
    %1266 = vmatpush2.msra.mxu0 0.0
    %1267 = vmatprep.subr.mxu0 0.0
    %1268 = vmatpush2.msra.mxu0 0.0
    %1269 = vmatprep.subr.mxu0 0.0
    %1270 = vmatpush2.msra.mxu0 0.0
    %1271 = vmatprep.subr.mxu0 0.0
    %1272 = vmatpush2.msra.mxu0 0.0
    %1273 = vmatprep.subr.mxu0 0.0
    %1274 = vmatpush2.msra.mxu0 0.0
    %1275 = vmatprep.mubr.f32.mxu0 0.0
    %1276 = vmatmul.mubr.f32.gmra.mxu0 %v272
    %v1277 = vpop.f32.mrf.mxu0
    %v1278 = vadd.f32 0.0, %v1277
    %v1279 = vpop.f32.mrf.mxu0
    %1280 = vdwg.mxu0
    %v1281 = vadd.f32 %v1210, %v1278
    %v1282 = vxor.u32 %v1281, 2147483648
    %v1283 = vmul.f32 %v1282, 1.442695
    %v1284 = vpow.pop %v1283
    %v1285 = vadd.f32 %v1284, 1.0
    %v1286 = vrcp.pop %v1285
    %v1287 = vmul.f32 1.0, %v1286
    %v1288 = vtanh.pop %v1281
    %v1289 = vmul.f32 %v1287, 0.0
    %1291 = vrot.lane.b32.xlu0 %v1288, 64
    %v1292 = vpop.permute.xlu0 %1291
    %v1294 = vmul.f32 %v1287, %v1292
    %1296 = vrot.lane.b32.xlu0 %v1294, 32
    %v1297 = vpop.permute.xlu0 %1296
    %v1299 = vadd.f32 %v1289, %v1297
    %v1300 = vtanh.pop %v1299
    %1302 = vrot.lane.b32.xlu0 %v1300, 64
    %v1303 = vpop.permute.xlu0 %1302
    %v1305 = vmul.f32 %v1287, %v1303
    %1307 = vrot.lane.b32.xlu0 %v1305, 32
    %v1308 = vpop.permute.xlu0 %1307
    %1310 = vst.msk [vmem:[#allocation2] sm:$0x3] %vm373, %v1308
    %v1311 = vld [vmem:[%s375] sm:$0x3]
    %v1312 = vsel %vm270, %v1308, 0
    %1314 = vmatprep.subr.mxu0 0.0
    %1315 = vmatpush1.msra.mxu0 0.0
    %1316 = vmatprep.subr.mxu0 0.0
    %1317 = vmatpush1.msra.mxu0 0.0
    %1318 = vmatprep.subr.mxu0 0.0
    %1319 = vmatpush1.msra.mxu0 0.0
    %1320 = vmatprep.subr.mxu0 0.0
    %1321 = vmatpush1.msra.mxu0 0.0
    %1322 = vmatprep.subr.mxu0 0.0
    %1323 = vmatpush1.msra.mxu0 0.0
    %1324 = vmatprep.subr.mxu0 0.0
    %1325 = vmatpush1.msra.mxu0 0.0
    %1326 = vmatprep.subr.mxu0 0.0
    %1327 = vmatpush1.msra.mxu0 0.0
    %1328 = vmatprep.subr.mxu0 0.0
    %1329 = vmatpush1.msra.mxu0 0.0
    %1330 = vmatprep.subr.mxu0 0.0
    %1331 = vmatpush1.msra.mxu0 0.0
    %1332 = vmatprep.subr.mxu0 0.0
    %1333 = vmatpush1.msra.mxu0 0.0
    %1334 = vmatprep.subr.mxu0 0.0
    %1335 = vmatpush1.msra.mxu0 0.0
    %1336 = vmatprep.subr.mxu0 0.0
    %1337 = vmatpush1.msra.mxu0 0.0
    %1338 = vmatprep.subr.mxu0 0.0
    %1339 = vmatpush1.msra.mxu0 %v1209
    %1340 = vmatprep.subr.mxu0 0.0
    %1341 = vmatpush1.msra.mxu0 %v1208
    %1342 = vmatprep.subr.mxu0 0.0
    %1343 = vmatpush1.msra.mxu0 %v1207
    %1344 = vmatprep.subr.mxu0 0.0
    %1345 = vmatpush1.msra.mxu0 %v1206
    %1346 = vmatprep.subr.mxu0 0.0
    %1347 = vmatpush2.msra.mxu0 0.0
    %1348 = vmatprep.subr.mxu0 0.0
    %1349 = vmatpush2.msra.mxu0 0.0
    %1350 = vmatprep.subr.mxu0 0.0
    %1351 = vmatpush2.msra.mxu0 0.0
    %1352 = vmatprep.subr.mxu0 0.0
    %1353 = vmatpush2.msra.mxu0 0.0
    %1354 = vmatprep.subr.mxu0 0.0
    %1355 = vmatpush2.msra.mxu0 0.0
    %1356 = vmatprep.subr.mxu0 0.0
    %1357 = vmatpush2.msra.mxu0 0.0
    %1358 = vmatprep.subr.mxu0 0.0
    %1359 = vmatpush2.msra.mxu0 0.0
    %1360 = vmatprep.subr.mxu0 0.0
    %1361 = vmatpush2.msra.mxu0 0.0
    %1362 = vmatprep.subr.mxu0 0.0
    %1363 = vmatpush2.msra.mxu0 0.0
    %1364 = vmatprep.subr.mxu0 0.0
    %1365 = vmatpush2.msra.mxu0 0.0
    %1366 = vmatprep.subr.mxu0 0.0
    %1367 = vmatpush2.msra.mxu0 0.0
    %1368 = vmatprep.subr.mxu0 0.0
    %1369 = vmatpush2.msra.mxu0 0.0
    %1370 = vmatprep.subr.mxu0 0.0
    %1371 = vmatpush2.msra.mxu0 0.0
    %1372 = vmatprep.subr.mxu0 0.0
    %1373 = vmatpush2.msra.mxu0 0.0
    %1374 = vmatprep.subr.mxu0 0.0
    %1375 = vmatpush2.msra.mxu0 0.0
    %1376 = vmatprep.subr.mxu0 0.0
    %1377 = vmatpush2.msra.mxu0 0.0
    %1378 = vmatprep.mubr.f32.mxu0 0.0
    %1379 = vmatmul.mubr.f32.gmra.mxu0 %v1312
    %v1380 = vpop.f32.mrf.mxu0
    %v1381 = vadd.f32 0.0, %v1380
    %v1382 = vpop.f32.mrf.mxu0
    %1383 = vdwg.mxu0
    %v1384 = vadd.f32 %v1311, %v1381
    %v1385 = vxor.u32 %v1384, 2147483648
    %v1386 = vmul.f32 %v1385, 1.442695
    %v1387 = vpow.pop %v1386
    %v1388 = vadd.f32 %v1387, 1.0
    %v1389 = vrcp.pop %v1388
    %v1390 = vmul.f32 1.0, %v1389
    %v1391 = vtanh.pop %v1384
    %v1392 = vmul.f32 %v1390, %v1299
    %1394 = vrot.lane.b32.xlu0 %v1391, 64
    %v1395 = vpop.permute.xlu0 %1394
    %v1397 = vmul.f32 %v1390, %v1395
    %1399 = vrot.lane.b32.xlu0 %v1397, 32
    %v1400 = vpop.permute.xlu0 %1399
    %v1402 = vadd.f32 %v1392, %v1400
    %v1403 = vtanh.pop %v1402
    %1405 = vrot.lane.b32.xlu0 %v1403, 64
    %v1406 = vpop.permute.xlu0 %1405
    %v1408 = vmul.f32 %v1390, %v1406
    %1410 = vrot.lane.b32.xlu0 %v1408, 32
    %v1411 = vpop.permute.xlu0 %1410
    %1413 = vst.msk [vmem:[%s478] sm:$0x3] %vm373, %v1411
    %v1414 = vld [vmem:[%s480] sm:$0x3]
    %v1415 = vsel %vm270, %v1411, 0
    %1417 = vmatprep.subr.mxu0 0.0
    %1418 = vmatpush1.msra.mxu0 0.0
    %1419 = vmatprep.subr.mxu0 0.0
    %1420 = vmatpush1.msra.mxu0 0.0
    %1421 = vmatprep.subr.mxu0 0.0
    %1422 = vmatpush1.msra.mxu0 0.0
    %1423 = vmatprep.subr.mxu0 0.0
    %1424 = vmatpush1.msra.mxu0 0.0
    %1425 = vmatprep.subr.mxu0 0.0
    %1426 = vmatpush1.msra.mxu0 0.0
    %1427 = vmatprep.subr.mxu0 0.0
    %1428 = vmatpush1.msra.mxu0 0.0
    %1429 = vmatprep.subr.mxu0 0.0
    %1430 = vmatpush1.msra.mxu0 0.0
    %1431 = vmatprep.subr.mxu0 0.0
    %1432 = vmatpush1.msra.mxu0 0.0
    %1433 = vmatprep.subr.mxu0 0.0
    %1434 = vmatpush1.msra.mxu0 0.0
    %1435 = vmatprep.subr.mxu0 0.0
    %1436 = vmatpush1.msra.mxu0 0.0
    %1437 = vmatprep.subr.mxu0 0.0
    %1438 = vmatpush1.msra.mxu0 0.0
    %1439 = vmatprep.subr.mxu0 0.0
    %1440 = vmatpush1.msra.mxu0 0.0
    %1441 = vmatprep.subr.mxu0 0.0
    %1442 = vmatpush1.msra.mxu0 %v1209
    %1443 = vmatprep.subr.mxu0 0.0
    %1444 = vmatpush1.msra.mxu0 %v1208
    %1445 = vmatprep.subr.mxu0 0.0
    %1446 = vmatpush1.msra.mxu0 %v1207
    %1447 = vmatprep.subr.mxu0 0.0
    %1448 = vmatpush1.msra.mxu0 %v1206
    %1449 = vmatprep.subr.mxu0 0.0
    %1450 = vmatpush2.msra.mxu0 0.0
    %1451 = vmatprep.subr.mxu0 0.0
    %1452 = vmatpush2.msra.mxu0 0.0
    %1453 = vmatprep.subr.mxu0 0.0
    %1454 = vmatpush2.msra.mxu0 0.0
    %1455 = vmatprep.subr.mxu0 0.0
    %1456 = vmatpush2.msra.mxu0 0.0
    %1457 = vmatprep.subr.mxu0 0.0
    %1458 = vmatpush2.msra.mxu0 0.0
    %1459 = vmatprep.subr.mxu0 0.0
    %1460 = vmatpush2.msra.mxu0 0.0
    %1461 = vmatprep.subr.mxu0 0.0
    %1462 = vmatpush2.msra.mxu0 0.0
    %1463 = vmatprep.subr.mxu0 0.0
    %1464 = vmatpush2.msra.mxu0 0.0
    %1465 = vmatprep.subr.mxu0 0.0
    %1466 = vmatpush2.msra.mxu0 0.0
    %1467 = vmatprep.subr.mxu0 0.0
    %1468 = vmatpush2.msra.mxu0 0.0
    %1469 = vmatprep.subr.mxu0 0.0
    %1470 = vmatpush2.msra.mxu0 0.0
    %1471 = vmatprep.subr.mxu0 0.0
    %1472 = vmatpush2.msra.mxu0 0.0
    %1473 = vmatprep.subr.mxu0 0.0
    %1474 = vmatpush2.msra.mxu0 0.0
    %1475 = vmatprep.subr.mxu0 0.0
    %1476 = vmatpush2.msra.mxu0 0.0
    %1477 = vmatprep.subr.mxu0 0.0
    %1478 = vmatpush2.msra.mxu0 0.0
    %1479 = vmatprep.subr.mxu0 0.0
    %1480 = vmatpush2.msra.mxu0 0.0
    %1481 = vmatprep.mubr.f32.mxu0 0.0
    %1482 = vmatmul.mubr.f32.gmra.mxu0 %v1415
    %v1483 = vpop.f32.mrf.mxu0
    %v1484 = vadd.f32 0.0, %v1483
    %v1485 = vpop.f32.mrf.mxu0
    %1486 = vdwg.mxu0
    %v1487 = vadd.f32 %v1414, %v1484
    %v1488 = vxor.u32 %v1487, 2147483648
    %v1489 = vmul.f32 %v1488, 1.442695
    %v1490 = vpow.pop %v1489
    %v1491 = vadd.f32 %v1490, 1.0
    %v1492 = vrcp.pop %v1491
    %v1493 = vmul.f32 1.0, %v1492
    %v1494 = vtanh.pop %v1487
    %v1495 = vmul.f32 %v1493, %v1402
    %1497 = vrot.lane.b32.xlu0 %v1494, 64
    %v1498 = vpop.permute.xlu0 %1497
    %v1500 = vmul.f32 %v1493, %v1498
    %1502 = vrot.lane.b32.xlu0 %v1500, 32
    %v1503 = vpop.permute.xlu0 %1502
    %v1505 = vadd.f32 %v1495, %v1503
    %v1506 = vtanh.pop %v1505
    %1508 = vrot.lane.b32.xlu0 %v1506, 64
    %v1509 = vpop.permute.xlu0 %1508
    %v1511 = vmul.f32 %v1493, %v1509
    %1513 = vrot.lane.b32.xlu0 %v1511, 32
    %v1514 = vpop.permute.xlu0 %1513
    %1516 = vst.msk [vmem:[%s583] sm:$0x3] %vm373, %v1514
    %v1517 = vld [vmem:[%s585] sm:$0x3]
    %v1518 = vsel %vm270, %v1514, 0
    %1520 = vmatprep.subr.mxu0 0.0
    %1521 = vmatpush1.msra.mxu0 0.0
    %1522 = vmatprep.subr.mxu0 0.0
    %1523 = vmatpush1.msra.mxu0 0.0
    %1524 = vmatprep.subr.mxu0 0.0
    %1525 = vmatpush1.msra.mxu0 0.0
    %1526 = vmatprep.subr.mxu0 0.0
    %1527 = vmatpush1.msra.mxu0 0.0
    %1528 = vmatprep.subr.mxu0 0.0
    %1529 = vmatpush1.msra.mxu0 0.0
    %1530 = vmatprep.subr.mxu0 0.0
    %1531 = vmatpush1.msra.mxu0 0.0
    %1532 = vmatprep.subr.mxu0 0.0
    %1533 = vmatpush1.msra.mxu0 0.0
    %1534 = vmatprep.subr.mxu0 0.0
    %1535 = vmatpush1.msra.mxu0 0.0
    %1536 = vmatprep.subr.mxu0 0.0
    %1537 = vmatpush1.msra.mxu0 0.0
    %1538 = vmatprep.subr.mxu0 0.0
    %1539 = vmatpush1.msra.mxu0 0.0
    %1540 = vmatprep.subr.mxu0 0.0
    %1541 = vmatpush1.msra.mxu0 0.0
    %1542 = vmatprep.subr.mxu0 0.0
    %1543 = vmatpush1.msra.mxu0 0.0
    %1544 = vmatprep.subr.mxu0 0.0
    %1545 = vmatpush1.msra.mxu0 %v1209
    %1546 = vmatprep.subr.mxu0 0.0
    %1547 = vmatpush1.msra.mxu0 %v1208
    %1548 = vmatprep.subr.mxu0 0.0
    %1549 = vmatpush1.msra.mxu0 %v1207
    %1550 = vmatprep.subr.mxu0 0.0
    %1551 = vmatpush1.msra.mxu0 %v1206
    %1552 = vmatprep.subr.mxu0 0.0
    %1553 = vmatpush2.msra.mxu0 0.0
    %1554 = vmatprep.subr.mxu0 0.0
    %1555 = vmatpush2.msra.mxu0 0.0
    %1556 = vmatprep.subr.mxu0 0.0
    %1557 = vmatpush2.msra.mxu0 0.0
    %1558 = vmatprep.subr.mxu0 0.0
    %1559 = vmatpush2.msra.mxu0 0.0
    %1560 = vmatprep.subr.mxu0 0.0
    %1561 = vmatpush2.msra.mxu0 0.0
    %1562 = vmatprep.subr.mxu0 0.0
    %1563 = vmatpush2.msra.mxu0 0.0
    %1564 = vmatprep.subr.mxu0 0.0
    %1565 = vmatpush2.msra.mxu0 0.0
    %1566 = vmatprep.subr.mxu0 0.0
    %1567 = vmatpush2.msra.mxu0 0.0
    %1568 = vmatprep.subr.mxu0 0.0
    %1569 = vmatpush2.msra.mxu0 0.0
    %1570 = vmatprep.subr.mxu0 0.0
    %1571 = vmatpush2.msra.mxu0 0.0
    %1572 = vmatprep.subr.mxu0 0.0
    %1573 = vmatpush2.msra.mxu0 0.0
    %1574 = vmatprep.subr.mxu0 0.0
    %1575 = vmatpush2.msra.mxu0 0.0
    %1576 = vmatprep.subr.mxu0 0.0
    %1577 = vmatpush2.msra.mxu0 0.0
    %1578 = vmatprep.subr.mxu0 0.0
    %1579 = vmatpush2.msra.mxu0 0.0
    %1580 = vmatprep.subr.mxu0 0.0
    %1581 = vmatpush2.msra.mxu0 0.0
    %1582 = vmatprep.subr.mxu0 0.0
    %1583 = vmatpush2.msra.mxu0 0.0
    %1584 = vmatprep.mubr.f32.mxu0 0.0
    %1585 = vmatmul.mubr.f32.gmra.mxu0 %v1518
    %v1586 = vpop.f32.mrf.mxu0
    %v1587 = vadd.f32 0.0, %v1586
    %v1588 = vpop.f32.mrf.mxu0
    %1589 = vdwg.mxu0
    %v1590 = vadd.f32 %v1517, %v1587
    %v1591 = vxor.u32 %v1590, 2147483648
    %v1592 = vmul.f32 %v1591, 1.442695
    %v1593 = vpow.pop %v1592
    %v1594 = vadd.f32 %v1593, 1.0
    %v1595 = vrcp.pop %v1594
    %v1596 = vmul.f32 1.0, %v1595
    %v1597 = vtanh.pop %v1590
    %v1598 = vmul.f32 %v1596, %v1505
    %1600 = vrot.lane.b32.xlu0 %v1597, 64
    %v1601 = vpop.permute.xlu0 %1600
    %v1603 = vmul.f32 %v1596, %v1601
    %1605 = vrot.lane.b32.xlu0 %v1603, 32
    %v1606 = vpop.permute.xlu0 %1605
    %v1608 = vadd.f32 %v1598, %v1606
    %v1609 = vtanh.pop %v1608
    %1611 = vrot.lane.b32.xlu0 %v1609, 64
    %v1612 = vpop.permute.xlu0 %1611
    %v1614 = vmul.f32 %v1596, %v1612
    %1616 = vrot.lane.b32.xlu0 %v1614, 32
    %v1617 = vpop.permute.xlu0 %1616
    %1619 = vst.msk [vmem:[%s688] sm:$0x3] %vm373, %v1617
    %v1620 = vld [vmem:[%s690] sm:$0x3]
    %v1621 = vsel %vm270, %v1617, 0
    %1623 = vmatprep.subr.mxu0 0.0
    %1624 = vmatpush1.msra.mxu0 0.0
    %1625 = vmatprep.subr.mxu0 0.0
    %1626 = vmatpush1.msra.mxu0 0.0
    %1627 = vmatprep.subr.mxu0 0.0
    %1628 = vmatpush1.msra.mxu0 0.0
    %1629 = vmatprep.subr.mxu0 0.0
    %1630 = vmatpush1.msra.mxu0 0.0
    %1631 = vmatprep.subr.mxu0 0.0
    %1632 = vmatpush1.msra.mxu0 0.0
    %1633 = vmatprep.subr.mxu0 0.0
    %1634 = vmatpush1.msra.mxu0 0.0
    %1635 = vmatprep.subr.mxu0 0.0
    %1636 = vmatpush1.msra.mxu0 0.0
    %1637 = vmatprep.subr.mxu0 0.0
    %1638 = vmatpush1.msra.mxu0 0.0
    %1639 = vmatprep.subr.mxu0 0.0
    %1640 = vmatpush1.msra.mxu0 0.0
    %1641 = vmatprep.subr.mxu0 0.0
    %1642 = vmatpush1.msra.mxu0 0.0
    %1643 = vmatprep.subr.mxu0 0.0
    %1644 = vmatpush1.msra.mxu0 0.0
    %1645 = vmatprep.subr.mxu0 0.0
    %1646 = vmatpush1.msra.mxu0 0.0
    %1647 = vmatprep.subr.mxu0 0.0
    %1648 = vmatpush1.msra.mxu0 %v1209
    %1649 = vmatprep.subr.mxu0 0.0
    %1650 = vmatpush1.msra.mxu0 %v1208
    %1651 = vmatprep.subr.mxu0 0.0
    %1652 = vmatpush1.msra.mxu0 %v1207
    %1653 = vmatprep.subr.mxu0 0.0
    %1654 = vmatpush1.msra.mxu0 %v1206
    %1655 = vmatprep.subr.mxu0 0.0
    %1656 = vmatpush2.msra.mxu0 0.0
    %1657 = vmatprep.subr.mxu0 0.0
    %1658 = vmatpush2.msra.mxu0 0.0
    %1659 = vmatprep.subr.mxu0 0.0
    %1660 = vmatpush2.msra.mxu0 0.0
    %1661 = vmatprep.subr.mxu0 0.0
    %1662 = vmatpush2.msra.mxu0 0.0
    %1663 = vmatprep.subr.mxu0 0.0
    %1664 = vmatpush2.msra.mxu0 0.0
    %1665 = vmatprep.subr.mxu0 0.0
    %1666 = vmatpush2.msra.mxu0 0.0
    %1667 = vmatprep.subr.mxu0 0.0
    %1668 = vmatpush2.msra.mxu0 0.0
    %1669 = vmatprep.subr.mxu0 0.0
    %1670 = vmatpush2.msra.mxu0 0.0
    %1671 = vmatprep.subr.mxu0 0.0
    %1672 = vmatpush2.msra.mxu0 0.0
    %1673 = vmatprep.subr.mxu0 0.0
    %1674 = vmatpush2.msra.mxu0 0.0
    %1675 = vmatprep.subr.mxu0 0.0
    %1676 = vmatpush2.msra.mxu0 0.0
    %1677 = vmatprep.subr.mxu0 0.0
    %1678 = vmatpush2.msra.mxu0 0.0
    %1679 = vmatprep.subr.mxu0 0.0
    %1680 = vmatpush2.msra.mxu0 0.0
    %1681 = vmatprep.subr.mxu0 0.0
    %1682 = vmatpush2.msra.mxu0 0.0
    %1683 = vmatprep.subr.mxu0 0.0
    %1684 = vmatpush2.msra.mxu0 0.0
    %1685 = vmatprep.subr.mxu0 0.0
    %1686 = vmatpush2.msra.mxu0 0.0
    %1687 = vmatprep.mubr.f32.mxu0 0.0
    %1688 = vmatmul.mubr.f32.gmra.mxu0 %v1621
    %v1689 = vpop.f32.mrf.mxu0
    %v1690 = vadd.f32 0.0, %v1689
    %v1691 = vpop.f32.mrf.mxu0
    %1692 = vdwg.mxu0
    %v1693 = vadd.f32 %v1620, %v1690
    %v1694 = vxor.u32 %v1693, 2147483648
    %v1695 = vmul.f32 %v1694, 1.442695
    %v1696 = vpow.pop %v1695
    %v1697 = vadd.f32 %v1696, 1.0
    %v1698 = vrcp.pop %v1697
    %v1699 = vmul.f32 1.0, %v1698
    %v1700 = vtanh.pop %v1693
    %v1701 = vmul.f32 %v1699, %v1608
    %1703 = vrot.lane.b32.xlu0 %v1700, 64
    %v1704 = vpop.permute.xlu0 %1703
    %v1706 = vmul.f32 %v1699, %v1704
    %1708 = vrot.lane.b32.xlu0 %v1706, 32
    %v1709 = vpop.permute.xlu0 %1708
    %v1711 = vadd.f32 %v1701, %v1709
    %v1712 = vtanh.pop %v1711
    %1714 = vrot.lane.b32.xlu0 %v1712, 64
    %v1715 = vpop.permute.xlu0 %1714
    %v1717 = vmul.f32 %v1699, %v1715
    %1719 = vrot.lane.b32.xlu0 %v1717, 32
    %v1720 = vpop.permute.xlu0 %1719
    %1722 = vst.msk [vmem:[%s793] sm:$0x3] %vm373, %v1720
    %v1723 = vld [vmem:[%s795] sm:$0x3]
    %v1724 = vsel %vm270, %v1720, 0
    %1726 = vmatprep.subr.mxu0 0.0
    %1727 = vmatpush1.msra.mxu0 0.0
    %1728 = vmatprep.subr.mxu0 0.0
    %1729 = vmatpush1.msra.mxu0 0.0
    %1730 = vmatprep.subr.mxu0 0.0
    %1731 = vmatpush1.msra.mxu0 0.0
    %1732 = vmatprep.subr.mxu0 0.0
    %1733 = vmatpush1.msra.mxu0 0.0
    %1734 = vmatprep.subr.mxu0 0.0
    %1735 = vmatpush1.msra.mxu0 0.0
    %1736 = vmatprep.subr.mxu0 0.0
    %1737 = vmatpush1.msra.mxu0 0.0
    %1738 = vmatprep.subr.mxu0 0.0
    %1739 = vmatpush1.msra.mxu0 0.0
    %1740 = vmatprep.subr.mxu0 0.0
    %1741 = vmatpush1.msra.mxu0 0.0
    %1742 = vmatprep.subr.mxu0 0.0
    %1743 = vmatpush1.msra.mxu0 0.0
    %1744 = vmatprep.subr.mxu0 0.0
    %1745 = vmatpush1.msra.mxu0 0.0
    %1746 = vmatprep.subr.mxu0 0.0
    %1747 = vmatpush1.msra.mxu0 0.0
    %1748 = vmatprep.subr.mxu0 0.0
    %1749 = vmatpush1.msra.mxu0 0.0
    %1750 = vmatprep.subr.mxu0 0.0
    %1751 = vmatpush1.msra.mxu0 %v1209
    %1752 = vmatprep.subr.mxu0 0.0
    %1753 = vmatpush1.msra.mxu0 %v1208
    %1754 = vmatprep.subr.mxu0 0.0
    %1755 = vmatpush1.msra.mxu0 %v1207
    %1756 = vmatprep.subr.mxu0 0.0
    %1757 = vmatpush1.msra.mxu0 %v1206
    %1758 = vmatprep.subr.mxu0 0.0
    %1759 = vmatpush2.msra.mxu0 0.0
    %1760 = vmatprep.subr.mxu0 0.0
    %1761 = vmatpush2.msra.mxu0 0.0
    %1762 = vmatprep.subr.mxu0 0.0
    %1763 = vmatpush2.msra.mxu0 0.0
    %1764 = vmatprep.subr.mxu0 0.0
    %1765 = vmatpush2.msra.mxu0 0.0
    %1766 = vmatprep.subr.mxu0 0.0
    %1767 = vmatpush2.msra.mxu0 0.0
    %1768 = vmatprep.subr.mxu0 0.0
    %1769 = vmatpush2.msra.mxu0 0.0
    %1770 = vmatprep.subr.mxu0 0.0
    %1771 = vmatpush2.msra.mxu0 0.0
    %1772 = vmatprep.subr.mxu0 0.0
    %1773 = vmatpush2.msra.mxu0 0.0
    %1774 = vmatprep.subr.mxu0 0.0
    %1775 = vmatpush2.msra.mxu0 0.0
    %1776 = vmatprep.subr.mxu0 0.0
    %1777 = vmatpush2.msra.mxu0 0.0
    %1778 = vmatprep.subr.mxu0 0.0
    %1779 = vmatpush2.msra.mxu0 0.0
    %1780 = vmatprep.subr.mxu0 0.0
    %1781 = vmatpush2.msra.mxu0 0.0
    %1782 = vmatprep.subr.mxu0 0.0
    %1783 = vmatpush2.msra.mxu0 0.0
    %1784 = vmatprep.subr.mxu0 0.0
    %1785 = vmatpush2.msra.mxu0 0.0
    %1786 = vmatprep.subr.mxu0 0.0
    %1787 = vmatpush2.msra.mxu0 0.0
    %1788 = vmatprep.subr.mxu0 0.0
    %1789 = vmatpush2.msra.mxu0 0.0
    %1790 = vmatprep.mubr.f32.mxu0 0.0
    %1791 = vmatmul.mubr.f32.gmra.mxu0 %v1724
    %v1792 = vpop.f32.mrf.mxu0
    %v1793 = vadd.f32 0.0, %v1792
    %v1794 = vpop.f32.mrf.mxu0
    %1795 = vdwg.mxu0
    %v1796 = vadd.f32 %v1723, %v1793
    %v1797 = vxor.u32 %v1796, 2147483648
    %v1798 = vmul.f32 %v1797, 1.442695
    %v1799 = vpow.pop %v1798
    %v1800 = vadd.f32 %v1799, 1.0
    %v1801 = vrcp.pop %v1800
    %v1802 = vmul.f32 1.0, %v1801
    %v1803 = vtanh.pop %v1796
    %v1804 = vmul.f32 %v1802, %v1711
    %1806 = vrot.lane.b32.xlu0 %v1803, 64
    %v1807 = vpop.permute.xlu0 %1806
    %v1809 = vmul.f32 %v1802, %v1807
    %1811 = vrot.lane.b32.xlu0 %v1809, 32
    %v1812 = vpop.permute.xlu0 %1811
    %v1814 = vadd.f32 %v1804, %v1812
    %v1815 = vtanh.pop %v1814
    %1817 = vrot.lane.b32.xlu0 %v1815, 64
    %v1818 = vpop.permute.xlu0 %1817
    %v1820 = vmul.f32 %v1802, %v1818
    %1822 = vrot.lane.b32.xlu0 %v1820, 32
    %v1823 = vpop.permute.xlu0 %1822
    %1825 = vst.msk [vmem:[%s898] sm:$0x3] %vm373, %v1823
    %v1826 = vld [vmem:[%s900] sm:$0x3]
    %v1827 = vsel %vm270, %v1823, 0
    %1829 = vmatprep.subr.mxu0 0.0
    %1830 = vmatpush1.msra.mxu0 0.0
    %1831 = vmatprep.subr.mxu0 0.0
    %1832 = vmatpush1.msra.mxu0 0.0
    %1833 = vmatprep.subr.mxu0 0.0
    %1834 = vmatpush1.msra.mxu0 0.0
    %1835 = vmatprep.subr.mxu0 0.0
    %1836 = vmatpush1.msra.mxu0 0.0
    %1837 = vmatprep.subr.mxu0 0.0
    %1838 = vmatpush1.msra.mxu0 0.0
    %1839 = vmatprep.subr.mxu0 0.0
    %1840 = vmatpush1.msra.mxu0 0.0
    %1841 = vmatprep.subr.mxu0 0.0
    %1842 = vmatpush1.msra.mxu0 0.0
    %1843 = vmatprep.subr.mxu0 0.0
    %1844 = vmatpush1.msra.mxu0 0.0
    %1845 = vmatprep.subr.mxu0 0.0
    %1846 = vmatpush1.msra.mxu0 0.0
    %1847 = vmatprep.subr.mxu0 0.0
    %1848 = vmatpush1.msra.mxu0 0.0
    %1849 = vmatprep.subr.mxu0 0.0
    %1850 = vmatpush1.msra.mxu0 0.0
    %1851 = vmatprep.subr.mxu0 0.0
    %1852 = vmatpush1.msra.mxu0 0.0
    %1853 = vmatprep.subr.mxu0 0.0
    %1854 = vmatpush1.msra.mxu0 %v1209
    %1855 = vmatprep.subr.mxu0 0.0
    %1856 = vmatpush1.msra.mxu0 %v1208
    %1857 = vmatprep.subr.mxu0 0.0
    %1858 = vmatpush1.msra.mxu0 %v1207
    %1859 = vmatprep.subr.mxu0 0.0
    %1860 = vmatpush1.msra.mxu0 %v1206
    %1861 = vmatprep.subr.mxu0 0.0
    %1862 = vmatpush2.msra.mxu0 0.0
    %1863 = vmatprep.subr.mxu0 0.0
    %1864 = vmatpush2.msra.mxu0 0.0
    %1865 = vmatprep.subr.mxu0 0.0
    %1866 = vmatpush2.msra.mxu0 0.0
    %1867 = vmatprep.subr.mxu0 0.0
    %1868 = vmatpush2.msra.mxu0 0.0
    %1869 = vmatprep.subr.mxu0 0.0
    %1870 = vmatpush2.msra.mxu0 0.0
    %1871 = vmatprep.subr.mxu0 0.0
    %1872 = vmatpush2.msra.mxu0 0.0
    %1873 = vmatprep.subr.mxu0 0.0
    %1874 = vmatpush2.msra.mxu0 0.0
    %1875 = vmatprep.subr.mxu0 0.0
    %1876 = vmatpush2.msra.mxu0 0.0
    %1877 = vmatprep.subr.mxu0 0.0
    %1878 = vmatpush2.msra.mxu0 0.0
    %1879 = vmatprep.subr.mxu0 0.0
    %1880 = vmatpush2.msra.mxu0 0.0
    %1881 = vmatprep.subr.mxu0 0.0
    %1882 = vmatpush2.msra.mxu0 0.0
    %1883 = vmatprep.subr.mxu0 0.0
    %1884 = vmatpush2.msra.mxu0 0.0
    %1885 = vmatprep.subr.mxu0 0.0
    %1886 = vmatpush2.msra.mxu0 0.0
    %1887 = vmatprep.subr.mxu0 0.0
    %1888 = vmatpush2.msra.mxu0 0.0
    %1889 = vmatprep.subr.mxu0 0.0
    %1890 = vmatpush2.msra.mxu0 0.0
    %1891 = vmatprep.subr.mxu0 0.0
    %1892 = vmatpush2.msra.mxu0 0.0
    %1893 = vmatprep.mubr.f32.mxu0 0.0
    %1894 = vmatmul.mubr.f32.gmra.mxu0 %v1827
    %v1895 = vpop.f32.mrf.mxu0
    %v1896 = vadd.f32 0.0, %v1895
    %v1897 = vpop.f32.mrf.mxu0
    %1898 = vdwg.mxu0
    %v1899 = vadd.f32 %v1826, %v1896
    %v1900 = vxor.u32 %v1899, 2147483648
    %v1901 = vmul.f32 %v1900, 1.442695
    %v1902 = vpow.pop %v1901
    %v1903 = vadd.f32 %v1902, 1.0
    %v1904 = vrcp.pop %v1903
    %v1905 = vmul.f32 1.0, %v1904
    %v1906 = vtanh.pop %v1899
    %v1907 = vmul.f32 %v1905, %v1814
    %1909 = vrot.lane.b32.xlu0 %v1906, 64
    %v1910 = vpop.permute.xlu0 %1909
    %v1912 = vmul.f32 %v1905, %v1910
    %1914 = vrot.lane.b32.xlu0 %v1912, 32
    %v1915 = vpop.permute.xlu0 %1914
    %v1917 = vadd.f32 %v1907, %v1915
    %v1918 = vtanh.pop %v1917
    %1920 = vrot.lane.b32.xlu0 %v1918, 64
    %v1921 = vpop.permute.xlu0 %1920
    %v1923 = vmul.f32 %v1905, %v1921
    %1925 = vrot.lane.b32.xlu0 %v1923, 32
    %v1926 = vpop.permute.xlu0 %1925
    %1928 = vst.msk [vmem:[%s1003] sm:$0x3] %vm373, %v1926
    %v1929 = vld [vmem:[%s1005] sm:$0x3]
    %v1930 = vsel %vm270, %v1926, 0
    %1932 = vmatprep.subr.mxu0 0.0
    %1933 = vmatpush1.msra.mxu0 0.0
    %1934 = vmatprep.subr.mxu0 0.0
    %1935 = vmatpush1.msra.mxu0 0.0
    %1936 = vmatprep.subr.mxu0 0.0
    %1937 = vmatpush1.msra.mxu0 0.0
    %1938 = vmatprep.subr.mxu0 0.0
    %1939 = vmatpush1.msra.mxu0 0.0
    %1940 = vmatprep.subr.mxu0 0.0
    %1941 = vmatpush1.msra.mxu0 0.0
    %1942 = vmatprep.subr.mxu0 0.0
    %1943 = vmatpush1.msra.mxu0 0.0
    %1944 = vmatprep.subr.mxu0 0.0
    %1945 = vmatpush1.msra.mxu0 0.0
    %1946 = vmatprep.subr.mxu0 0.0
    %1947 = vmatpush1.msra.mxu0 0.0
    %1948 = vmatprep.subr.mxu0 0.0
    %1949 = vmatpush1.msra.mxu0 0.0
    %1950 = vmatprep.subr.mxu0 0.0
    %1951 = vmatpush1.msra.mxu0 0.0
    %1952 = vmatprep.subr.mxu0 0.0
    %1953 = vmatpush1.msra.mxu0 0.0
    %1954 = vmatprep.subr.mxu0 0.0
    %1955 = vmatpush1.msra.mxu0 0.0
    %1956 = vmatprep.subr.mxu0 0.0
    %1957 = vmatpush1.msra.mxu0 %v1209
    %1958 = vmatprep.subr.mxu0 0.0
    %1959 = vmatpush1.msra.mxu0 %v1208
    %1960 = vmatprep.subr.mxu0 0.0
    %1961 = vmatpush1.msra.mxu0 %v1207
    %1962 = vmatprep.subr.mxu0 0.0
    %1963 = vmatpush1.msra.mxu0 %v1206
    %1964 = vmatprep.subr.mxu0 0.0
    %1965 = vmatpush2.msra.mxu0 0.0
    %1966 = vmatprep.subr.mxu0 0.0
    %1967 = vmatpush2.msra.mxu0 0.0
    %1968 = vmatprep.subr.mxu0 0.0
    %1969 = vmatpush2.msra.mxu0 0.0
    %1970 = vmatprep.subr.mxu0 0.0
    %1971 = vmatpush2.msra.mxu0 0.0
    %1972 = vmatprep.subr.mxu0 0.0
    %1973 = vmatpush2.msra.mxu0 0.0
    %1974 = vmatprep.subr.mxu0 0.0
    %1975 = vmatpush2.msra.mxu0 0.0
    %1976 = vmatprep.subr.mxu0 0.0
    %1977 = vmatpush2.msra.mxu0 0.0
    %1978 = vmatprep.subr.mxu0 0.0
    %1979 = vmatpush2.msra.mxu0 0.0
    %1980 = vmatprep.subr.mxu0 0.0
    %1981 = vmatpush2.msra.mxu0 0.0
    %1982 = vmatprep.subr.mxu0 0.0
    %1983 = vmatpush2.msra.mxu0 0.0
    %1984 = vmatprep.subr.mxu0 0.0
    %1985 = vmatpush2.msra.mxu0 0.0
    %1986 = vmatprep.subr.mxu0 0.0
    %1987 = vmatpush2.msra.mxu0 0.0
    %1988 = vmatprep.subr.mxu0 0.0
    %1989 = vmatpush2.msra.mxu0 0.0
    %1990 = vmatprep.subr.mxu0 0.0
    %1991 = vmatpush2.msra.mxu0 0.0
    %1992 = vmatprep.subr.mxu0 0.0
    %1993 = vmatpush2.msra.mxu0 0.0
    %1994 = vmatprep.subr.mxu0 0.0
    %1995 = vmatpush2.msra.mxu0 0.0
    %1996 = vmatprep.mubr.f32.mxu0 0.0
    %1997 = vmatmul.mubr.f32.gmra.mxu0 %v1930
    %v1998 = vpop.f32.mrf.mxu0
    %v1999 = vadd.f32 0.0, %v1998
    %v2000 = vpop.f32.mrf.mxu0
    %2001 = vdwg.mxu0
    %v2002 = vadd.f32 %v1929, %v1999
    %v2003 = vxor.u32 %v2002, 2147483648
    %v2004 = vmul.f32 %v2003, 1.442695
    %v2005 = vpow.pop %v2004
    %v2006 = vadd.f32 %v2005, 1.0
    %v2007 = vrcp.pop %v2006
    %v2008 = vmul.f32 1.0, %v2007
    %v2009 = vtanh.pop %v2002
    %v2010 = vmul.f32 %v2008, %v1917
    %2012 = vrot.lane.b32.xlu0 %v2009, 64
    %v2013 = vpop.permute.xlu0 %2012
    %v2015 = vmul.f32 %v2008, %v2013
    %2017 = vrot.lane.b32.xlu0 %v2015, 32
    %v2018 = vpop.permute.xlu0 %2017
    %v2020 = vadd.f32 %v2010, %v2018
    %v2021 = vtanh.pop %v2020
    %2023 = vrot.lane.b32.xlu0 %v2021, 64
    %v2024 = vpop.permute.xlu0 %2023
    %v2026 = vmul.f32 %v2008, %v2024
    %2028 = vrot.lane.b32.xlu0 %v2026, 32
    %v2029 = vpop.permute.xlu0 %2028
    %2031 = vst.msk [vmem:[%s1108] sm:$0x3] %vm373, %v2029
    %v2032 = vld [vmem:[#allocation2] sm:$0xff]
    %v2033 = vld [vmem:[#allocation2 + $0x8] sm:$0xff]
    %v2034 = vld [vmem:[#allocation15] sm:$0xff]
    %v2035 = vld [vmem:[#allocation15 + $0x8] sm:$0xff]
    %v2036 = vld [vmem:[#allocation15 + $0x10] sm:$0xff]
    %v2037 = vld [vmem:[#allocation15 + $0x18] sm:$0xff]
    %v2038 = vld [vmem:[#allocation18] sm:$0x1]
    %v2040 = vlaneseq
    %v2041 = vshrl.u32 %v2040, 7
    %v2042 = vsub.s32 0, %v2041
    %v2043 = vrot.slane %v2038, %v2042
    %v2046 = vsel %vm270, %v2032, 0
    %v2049 = vsel %vm270, %v2033, 0
    %2051 = vmatprep.subr.mxu0 0.0
    %2052 = vmatpush1.msra.mxu0 0.0
    %2053 = vmatprep.subr.mxu0 0.0
    %2054 = vmatpush1.msra.mxu0 0.0
    %2055 = vmatprep.subr.mxu0 0.0
    %2056 = vmatpush1.msra.mxu0 0.0
    %2057 = vmatprep.subr.mxu0 0.0
    %2058 = vmatpush1.msra.mxu0 0.0
    %2059 = vmatprep.subr.mxu0 0.0
    %2060 = vmatpush1.msra.mxu0 0.0
    %2061 = vmatprep.subr.mxu0 0.0
    %2062 = vmatpush1.msra.mxu0 0.0
    %2063 = vmatprep.subr.mxu0 0.0
    %2064 = vmatpush1.msra.mxu0 0.0
    %2065 = vmatprep.subr.mxu0 0.0
    %2066 = vmatpush1.msra.mxu0 0.0
    %2067 = vmatprep.subr.mxu0 0.0
    %2068 = vmatpush1.msra.mxu0 0.0
    %2069 = vmatprep.subr.mxu0 0.0
    %2070 = vmatpush1.msra.mxu0 0.0
    %2071 = vmatprep.subr.mxu0 0.0
    %2072 = vmatpush1.msra.mxu0 0.0
    %2073 = vmatprep.subr.mxu0 0.0
    %2074 = vmatpush1.msra.mxu0 0.0
    %2075 = vmatprep.subr.mxu0 0.0
    %2076 = vmatpush1.msra.mxu0 %v2037
    %2077 = vmatprep.subr.mxu0 0.0
    %2078 = vmatpush1.msra.mxu0 %v2036
    %2079 = vmatprep.subr.mxu0 0.0
    %2080 = vmatpush1.msra.mxu0 %v2035
    %2081 = vmatprep.subr.mxu0 0.0
    %2082 = vmatpush1.msra.mxu0 %v2034
    %2083 = vmatprep.subr.mxu0 0.0
    %2084 = vmatpush2.msra.mxu0 0.0
    %2085 = vmatprep.subr.mxu0 0.0
    %2086 = vmatpush2.msra.mxu0 0.0
    %2087 = vmatprep.subr.mxu0 0.0
    %2088 = vmatpush2.msra.mxu0 0.0
    %2089 = vmatprep.subr.mxu0 0.0
    %2090 = vmatpush2.msra.mxu0 0.0
    %2091 = vmatprep.subr.mxu0 0.0
    %2092 = vmatpush2.msra.mxu0 0.0
    %2093 = vmatprep.subr.mxu0 0.0
    %2094 = vmatpush2.msra.mxu0 0.0
    %2095 = vmatprep.subr.mxu0 0.0
    %2096 = vmatpush2.msra.mxu0 0.0
    %2097 = vmatprep.subr.mxu0 0.0
    %2098 = vmatpush2.msra.mxu0 0.0
    %2099 = vmatprep.subr.mxu0 0.0
    %2100 = vmatpush2.msra.mxu0 0.0
    %2101 = vmatprep.subr.mxu0 0.0
    %2102 = vmatpush2.msra.mxu0 0.0
    %2103 = vmatprep.subr.mxu0 0.0
    %2104 = vmatpush2.msra.mxu0 0.0
    %2105 = vmatprep.subr.mxu0 0.0
    %2106 = vmatpush2.msra.mxu0 0.0
    %2107 = vmatprep.subr.mxu0 0.0
    %2108 = vmatpush2.msra.mxu0 0.0
    %2109 = vmatprep.subr.mxu0 0.0
    %2110 = vmatpush2.msra.mxu0 0.0
    %2111 = vmatprep.subr.mxu0 0.0
    %2112 = vmatpush2.msra.mxu0 0.0
    %2113 = vmatprep.subr.mxu0 0.0
    %2114 = vmatpush2.msra.mxu0 0.0
    %2115 = vmatprep.mubr.f32.mxu0 0.0
    %2116 = vmatmul.mubr.f32.gmra.mxu0 %v2046
    %v2117 = vpop.f32.mrf.mxu0
    %v2118 = vadd.f32 %v2043, %v2117
    %v2119 = vpop.f32.mrf.mxu0
    %2120 = vmatprep.mubr.f32.mxu0 0.0
    %2121 = vmatmul.mubr.f32.gmra.mxu0 %v2049
    %v2122 = vpop.f32.mrf.mxu0
    %v2123 = vadd.f32 %v2043, %v2122
    %v2124 = vpop.f32.mrf.mxu0
    %2125 = vdwg.mxu0
    %2126 = vst [vmem:[#allocation3] sm:$0xff] %v2118
    %2127 = vst [vmem:[#allocation3 + $0x8] sm:$0xff] %v2123
    %v2128 = vld [vmem:[#allocation16] sm:$0xff]
    %v2129 = vld [vmem:[#allocation16 + $0x8] sm:$0xff]
    %v2130 = vld [vmem:[#allocation16 + $0x10] sm:$0xff]
    %v2131 = vld [vmem:[#allocation16 + $0x18] sm:$0xff]
    %v2132 = vld [vmem:[#allocation3] sm:$0x3]
    %2133 = vmatprep.subr.mxu0 0.0
    %2134 = vmatpush1.msra.mxu0 0.0
    %2135 = vmatprep.subr.mxu0 0.0
    %2136 = vmatpush1.msra.mxu0 0.0
    %2137 = vmatprep.subr.mxu0 0.0
    %2138 = vmatpush1.msra.mxu0 0.0
    %2139 = vmatprep.subr.mxu0 0.0
    %2140 = vmatpush1.msra.mxu0 0.0
    %2141 = vmatprep.subr.mxu0 0.0
    %2142 = vmatpush1.msra.mxu0 0.0
    %2143 = vmatprep.subr.mxu0 0.0
    %2144 = vmatpush1.msra.mxu0 0.0
    %2145 = vmatprep.subr.mxu0 0.0
    %2146 = vmatpush1.msra.mxu0 0.0
    %2147 = vmatprep.subr.mxu0 0.0
    %2148 = vmatpush1.msra.mxu0 0.0
    %2149 = vmatprep.subr.mxu0 0.0
    %2150 = vmatpush1.msra.mxu0 0.0
    %2151 = vmatprep.subr.mxu0 0.0
    %2152 = vmatpush1.msra.mxu0 0.0
    %2153 = vmatprep.subr.mxu0 0.0
    %2154 = vmatpush1.msra.mxu0 0.0
    %2155 = vmatprep.subr.mxu0 0.0
    %2156 = vmatpush1.msra.mxu0 0.0
    %2157 = vmatprep.subr.mxu0 0.0
    %2158 = vmatpush1.msra.mxu0 %v2131
    %2159 = vmatprep.subr.mxu0 0.0
    %2160 = vmatpush1.msra.mxu0 %v2130
    %2161 = vmatprep.subr.mxu0 0.0
    %2162 = vmatpush1.msra.mxu0 %v2129
    %2163 = vmatprep.subr.mxu0 0.0
    %2164 = vmatpush1.msra.mxu0 %v2128
    %2165 = vmatprep.subr.mxu0 0.0
    %2166 = vmatpush2.msra.mxu0 0.0
    %2167 = vmatprep.subr.mxu0 0.0
    %2168 = vmatpush2.msra.mxu0 0.0
    %2169 = vmatprep.subr.mxu0 0.0
    %2170 = vmatpush2.msra.mxu0 0.0
    %2171 = vmatprep.subr.mxu0 0.0
    %2172 = vmatpush2.msra.mxu0 0.0
    %2173 = vmatprep.subr.mxu0 0.0
    %2174 = vmatpush2.msra.mxu0 0.0
    %2175 = vmatprep.subr.mxu0 0.0
    %2176 = vmatpush2.msra.mxu0 0.0
    %2177 = vmatprep.subr.mxu0 0.0
    %2178 = vmatpush2.msra.mxu0 0.0
    %2179 = vmatprep.subr.mxu0 0.0
    %2180 = vmatpush2.msra.mxu0 0.0
    %2181 = vmatprep.subr.mxu0 0.0
    %2182 = vmatpush2.msra.mxu0 0.0
    %2183 = vmatprep.subr.mxu0 0.0
    %2184 = vmatpush2.msra.mxu0 0.0
    %2185 = vmatprep.subr.mxu0 0.0
    %2186 = vmatpush2.msra.mxu0 0.0
    %2187 = vmatprep.subr.mxu0 0.0
    %2188 = vmatpush2.msra.mxu0 0.0
    %2189 = vmatprep.subr.mxu0 0.0
    %2190 = vmatpush2.msra.mxu0 0.0
    %2191 = vmatprep.subr.mxu0 0.0
    %2192 = vmatpush2.msra.mxu0 0.0
    %2193 = vmatprep.subr.mxu0 0.0
    %2194 = vmatpush2.msra.mxu0 0.0
    %2195 = vmatprep.subr.mxu0 0.0
    %2196 = vmatpush2.msra.mxu0 0.0
    %2197 = vmatprep.mubr.f32.mxu0 0.0
    %2198 = vmatmul.mubr.f32.gmra.mxu0 %v272
    %v2199 = vpop.f32.mrf.mxu0
    %v2200 = vadd.f32 0.0, %v2199
    %v2201 = vpop.f32.mrf.mxu0
    %2202 = vdwg.mxu0
    %v2203 = vadd.f32 %v2132, %v2200
    %v2204 = vxor.u32 %v2203, 2147483648
    %v2205 = vmul.f32 %v2204, 1.442695
    %v2206 = vpow.pop %v2205
    %v2207 = vadd.f32 %v2206, 1.0
    %v2208 = vrcp.pop %v2207
    %v2209 = vmul.f32 1.0, %v2208
    %v2210 = vtanh.pop %v2203
    %v2211 = vmul.f32 %v2209, 0.0
    %2213 = vrot.lane.b32.xlu0 %v2210, 64
    %v2214 = vpop.permute.xlu0 %2213
    %v2216 = vmul.f32 %v2209, %v2214
    %2218 = vrot.lane.b32.xlu0 %v2216, 32
    %v2219 = vpop.permute.xlu0 %2218
    %v2221 = vadd.f32 %v2211, %v2219
    %v2222 = vtanh.pop %v2221
    %2224 = vrot.lane.b32.xlu0 %v2222, 64
    %v2225 = vpop.permute.xlu0 %2224
    %v2227 = vmul.f32 %v2209, %v2225
    %v2228 = vld [vmem:[%s375] sm:$0x3]
    %2230 = vrot.lane.b32.xlu0 %v2227, 32
    %v2231 = vpop.permute.xlu0 %2230
    %v2232 = vsel %vm270, %v2231, 0
    %2234 = vmatprep.subr.mxu0 0.0
    %2235 = vmatpush1.msra.mxu0 0.0
    %2236 = vmatprep.subr.mxu0 0.0
    %2237 = vmatpush1.msra.mxu0 0.0
    %2238 = vmatprep.subr.mxu0 0.0
    %2239 = vmatpush1.msra.mxu0 0.0
    %2240 = vmatprep.subr.mxu0 0.0
    %2241 = vmatpush1.msra.mxu0 0.0
    %2242 = vmatprep.subr.mxu0 0.0
    %2243 = vmatpush1.msra.mxu0 0.0
    %2244 = vmatprep.subr.mxu0 0.0
    %2245 = vmatpush1.msra.mxu0 0.0
    %2246 = vmatprep.subr.mxu0 0.0
    %2247 = vmatpush1.msra.mxu0 0.0
    %2248 = vmatprep.subr.mxu0 0.0
    %2249 = vmatpush1.msra.mxu0 0.0
    %2250 = vmatprep.subr.mxu0 0.0
    %2251 = vmatpush1.msra.mxu0 0.0
    %2252 = vmatprep.subr.mxu0 0.0
    %2253 = vmatpush1.msra.mxu0 0.0
    %2254 = vmatprep.subr.mxu0 0.0
    %2255 = vmatpush1.msra.mxu0 0.0
    %2256 = vmatprep.subr.mxu0 0.0
    %2257 = vmatpush1.msra.mxu0 0.0
    %2258 = vmatprep.subr.mxu0 0.0
    %2259 = vmatpush1.msra.mxu0 %v2131
    %2260 = vmatprep.subr.mxu0 0.0
    %2261 = vmatpush1.msra.mxu0 %v2130
    %2262 = vmatprep.subr.mxu0 0.0
    %2263 = vmatpush1.msra.mxu0 %v2129
    %2264 = vmatprep.subr.mxu0 0.0
    %2265 = vmatpush1.msra.mxu0 %v2128
    %2266 = vmatprep.subr.mxu0 0.0
    %2267 = vmatpush2.msra.mxu0 0.0
    %2268 = vmatprep.subr.mxu0 0.0
    %2269 = vmatpush2.msra.mxu0 0.0
    %2270 = vmatprep.subr.mxu0 0.0
    %2271 = vmatpush2.msra.mxu0 0.0
    %2272 = vmatprep.subr.mxu0 0.0
    %2273 = vmatpush2.msra.mxu0 0.0
    %2274 = vmatprep.subr.mxu0 0.0
    %2275 = vmatpush2.msra.mxu0 0.0
    %2276 = vmatprep.subr.mxu0 0.0
    %2277 = vmatpush2.msra.mxu0 0.0
    %2278 = vmatprep.subr.mxu0 0.0
    %2279 = vmatpush2.msra.mxu0 0.0
    %2280 = vmatprep.subr.mxu0 0.0
    %2281 = vmatpush2.msra.mxu0 0.0
    %2282 = vmatprep.subr.mxu0 0.0
    %2283 = vmatpush2.msra.mxu0 0.0
    %2284 = vmatprep.subr.mxu0 0.0
    %2285 = vmatpush2.msra.mxu0 0.0
    %2286 = vmatprep.subr.mxu0 0.0
    %2287 = vmatpush2.msra.mxu0 0.0
    %2288 = vmatprep.subr.mxu0 0.0
    %2289 = vmatpush2.msra.mxu0 0.0
    %2290 = vmatprep.subr.mxu0 0.0
    %2291 = vmatpush2.msra.mxu0 0.0
    %2292 = vmatprep.subr.mxu0 0.0
    %2293 = vmatpush2.msra.mxu0 0.0
    %2294 = vmatprep.subr.mxu0 0.0
    %2295 = vmatpush2.msra.mxu0 0.0
    %2296 = vmatprep.subr.mxu0 0.0
    %2297 = vmatpush2.msra.mxu0 0.0
    %2298 = vmatprep.mubr.f32.mxu0 0.0
    %2299 = vmatmul.mubr.f32.gmra.mxu0 %v2232
    %v2300 = vpop.f32.mrf.mxu0
    %v2301 = vadd.f32 0.0, %v2300
    %v2302 = vpop.f32.mrf.mxu0
    %2303 = vdwg.mxu0
    %v2304 = vadd.f32 %v2228, %v2301
    %v2305 = vxor.u32 %v2304, 2147483648
    %v2306 = vmul.f32 %v2305, 1.442695
    %v2307 = vpow.pop %v2306
    %v2308 = vadd.f32 %v2307, 1.0
    %v2309 = vrcp.pop %v2308
    %v2310 = vmul.f32 1.0, %v2309
    %v2311 = vtanh.pop %v2304
    %v2312 = vmul.f32 %v2310, %v2221
    %2314 = vrot.lane.b32.xlu0 %v2311, 64
    %v2315 = vpop.permute.xlu0 %2314
    %v2317 = vmul.f32 %v2310, %v2315
    %2319 = vrot.lane.b32.xlu0 %v2317, 32
    %v2320 = vpop.permute.xlu0 %2319
    %v2322 = vadd.f32 %v2312, %v2320
    %v2323 = vtanh.pop %v2322
    %2325 = vrot.lane.b32.xlu0 %v2323, 64
    %v2326 = vpop.permute.xlu0 %2325
    %v2328 = vmul.f32 %v2310, %v2326
    %v2329 = vld [vmem:[%s480] sm:$0x3]
    %2331 = vrot.lane.b32.xlu0 %v2328, 32
    %v2332 = vpop.permute.xlu0 %2331
    %v2333 = vsel %vm270, %v2332, 0
    %2335 = vmatprep.subr.mxu0 0.0
    %2336 = vmatpush1.msra.mxu0 0.0
    %2337 = vmatprep.subr.mxu0 0.0
    %2338 = vmatpush1.msra.mxu0 0.0
    %2339 = vmatprep.subr.mxu0 0.0
    %2340 = vmatpush1.msra.mxu0 0.0
    %2341 = vmatprep.subr.mxu0 0.0
    %2342 = vmatpush1.msra.mxu0 0.0
    %2343 = vmatprep.subr.mxu0 0.0
    %2344 = vmatpush1.msra.mxu0 0.0
    %2345 = vmatprep.subr.mxu0 0.0
    %2346 = vmatpush1.msra.mxu0 0.0
    %2347 = vmatprep.subr.mxu0 0.0
    %2348 = vmatpush1.msra.mxu0 0.0
    %2349 = vmatprep.subr.mxu0 0.0
    %2350 = vmatpush1.msra.mxu0 0.0
    %2351 = vmatprep.subr.mxu0 0.0
    %2352 = vmatpush1.msra.mxu0 0.0
    %2353 = vmatprep.subr.mxu0 0.0
    %2354 = vmatpush1.msra.mxu0 0.0
    %2355 = vmatprep.subr.mxu0 0.0
    %2356 = vmatpush1.msra.mxu0 0.0
    %2357 = vmatprep.subr.mxu0 0.0
    %2358 = vmatpush1.msra.mxu0 0.0
    %2359 = vmatprep.subr.mxu0 0.0
    %2360 = vmatpush1.msra.mxu0 %v2131
    %2361 = vmatprep.subr.mxu0 0.0
    %2362 = vmatpush1.msra.mxu0 %v2130
    %2363 = vmatprep.subr.mxu0 0.0
    %2364 = vmatpush1.msra.mxu0 %v2129
    %2365 = vmatprep.subr.mxu0 0.0
    %2366 = vmatpush1.msra.mxu0 %v2128
    %2367 = vmatprep.subr.mxu0 0.0
    %2368 = vmatpush2.msra.mxu0 0.0
    %2369 = vmatprep.subr.mxu0 0.0
    %2370 = vmatpush2.msra.mxu0 0.0
    %2371 = vmatprep.subr.mxu0 0.0
    %2372 = vmatpush2.msra.mxu0 0.0
    %2373 = vmatprep.subr.mxu0 0.0
    %2374 = vmatpush2.msra.mxu0 0.0
    %2375 = vmatprep.subr.mxu0 0.0
    %2376 = vmatpush2.msra.mxu0 0.0
    %2377 = vmatprep.subr.mxu0 0.0
    %2378 = vmatpush2.msra.mxu0 0.0
    %2379 = vmatprep.subr.mxu0 0.0
    %2380 = vmatpush2.msra.mxu0 0.0
    %2381 = vmatprep.subr.mxu0 0.0
    %2382 = vmatpush2.msra.mxu0 0.0
    %2383 = vmatprep.subr.mxu0 0.0
    %2384 = vmatpush2.msra.mxu0 0.0
    %2385 = vmatprep.subr.mxu0 0.0
    %2386 = vmatpush2.msra.mxu0 0.0
    %2387 = vmatprep.subr.mxu0 0.0
    %2388 = vmatpush2.msra.mxu0 0.0
    %2389 = vmatprep.subr.mxu0 0.0
    %2390 = vmatpush2.msra.mxu0 0.0
    %2391 = vmatprep.subr.mxu0 0.0
    %2392 = vmatpush2.msra.mxu0 0.0
    %2393 = vmatprep.subr.mxu0 0.0
    %2394 = vmatpush2.msra.mxu0 0.0
    %2395 = vmatprep.subr.mxu0 0.0
    %2396 = vmatpush2.msra.mxu0 0.0
    %2397 = vmatprep.subr.mxu0 0.0
    %2398 = vmatpush2.msra.mxu0 0.0
    %2399 = vmatprep.mubr.f32.mxu0 0.0
    %2400 = vmatmul.mubr.f32.gmra.mxu0 %v2333
    %v2401 = vpop.f32.mrf.mxu0
    %v2402 = vadd.f32 0.0, %v2401
    %v2403 = vpop.f32.mrf.mxu0
    %2404 = vdwg.mxu0
    %v2405 = vadd.f32 %v2329, %v2402
    %v2406 = vxor.u32 %v2405, 2147483648
    %v2407 = vmul.f32 %v2406, 1.442695
    %v2408 = vpow.pop %v2407
    %v2409 = vadd.f32 %v2408, 1.0
    %v2410 = vrcp.pop %v2409
    %v2411 = vmul.f32 1.0, %v2410
    %v2412 = vtanh.pop %v2405
    %v2413 = vmul.f32 %v2411, %v2322
    %2415 = vrot.lane.b32.xlu0 %v2412, 64
    %v2416 = vpop.permute.xlu0 %2415
    %v2418 = vmul.f32 %v2411, %v2416
    %2420 = vrot.lane.b32.xlu0 %v2418, 32
    %v2421 = vpop.permute.xlu0 %2420
    %v2423 = vadd.f32 %v2413, %v2421
    %v2424 = vtanh.pop %v2423
    %2426 = vrot.lane.b32.xlu0 %v2424, 64
    %v2427 = vpop.permute.xlu0 %2426
    %v2429 = vmul.f32 %v2411, %v2427
    %v2430 = vld [vmem:[%s585] sm:$0x3]
    %2432 = vrot.lane.b32.xlu0 %v2429, 32
    %v2433 = vpop.permute.xlu0 %2432
    %v2434 = vsel %vm270, %v2433, 0
    %2436 = vmatprep.subr.mxu0 0.0
    %2437 = vmatpush1.msra.mxu0 0.0
    %2438 = vmatprep.subr.mxu0 0.0
    %2439 = vmatpush1.msra.mxu0 0.0
    %2440 = vmatprep.subr.mxu0 0.0
    %2441 = vmatpush1.msra.mxu0 0.0
    %2442 = vmatprep.subr.mxu0 0.0
    %2443 = vmatpush1.msra.mxu0 0.0
    %2444 = vmatprep.subr.mxu0 0.0
    %2445 = vmatpush1.msra.mxu0 0.0
    %2446 = vmatprep.subr.mxu0 0.0
    %2447 = vmatpush1.msra.mxu0 0.0
    %2448 = vmatprep.subr.mxu0 0.0
    %2449 = vmatpush1.msra.mxu0 0.0
    %2450 = vmatprep.subr.mxu0 0.0
    %2451 = vmatpush1.msra.mxu0 0.0
    %2452 = vmatprep.subr.mxu0 0.0
    %2453 = vmatpush1.msra.mxu0 0.0
    %2454 = vmatprep.subr.mxu0 0.0
    %2455 = vmatpush1.msra.mxu0 0.0
    %2456 = vmatprep.subr.mxu0 0.0
    %2457 = vmatpush1.msra.mxu0 0.0
    %2458 = vmatprep.subr.mxu0 0.0
    %2459 = vmatpush1.msra.mxu0 0.0
    %2460 = vmatprep.subr.mxu0 0.0
    %2461 = vmatpush1.msra.mxu0 %v2131
    %2462 = vmatprep.subr.mxu0 0.0
    %2463 = vmatpush1.msra.mxu0 %v2130
    %2464 = vmatprep.subr.mxu0 0.0
    %2465 = vmatpush1.msra.mxu0 %v2129
    %2466 = vmatprep.subr.mxu0 0.0
    %2467 = vmatpush1.msra.mxu0 %v2128
    %2468 = vmatprep.subr.mxu0 0.0
    %2469 = vmatpush2.msra.mxu0 0.0
    %2470 = vmatprep.subr.mxu0 0.0
    %2471 = vmatpush2.msra.mxu0 0.0
    %2472 = vmatprep.subr.mxu0 0.0
    %2473 = vmatpush2.msra.mxu0 0.0
    %2474 = vmatprep.subr.mxu0 0.0
    %2475 = vmatpush2.msra.mxu0 0.0
    %2476 = vmatprep.subr.mxu0 0.0
    %2477 = vmatpush2.msra.mxu0 0.0
    %2478 = vmatprep.subr.mxu0 0.0
    %2479 = vmatpush2.msra.mxu0 0.0
    %2480 = vmatprep.subr.mxu0 0.0
    %2481 = vmatpush2.msra.mxu0 0.0
    %2482 = vmatprep.subr.mxu0 0.0
    %2483 = vmatpush2.msra.mxu0 0.0
    %2484 = vmatprep.subr.mxu0 0.0
    %2485 = vmatpush2.msra.mxu0 0.0
    %2486 = vmatprep.subr.mxu0 0.0
    %2487 = vmatpush2.msra.mxu0 0.0
    %2488 = vmatprep.subr.mxu0 0.0
    %2489 = vmatpush2.msra.mxu0 0.0
    %2490 = vmatprep.subr.mxu0 0.0
    %2491 = vmatpush2.msra.mxu0 0.0
    %2492 = vmatprep.subr.mxu0 0.0
    %2493 = vmatpush2.msra.mxu0 0.0
    %2494 = vmatprep.subr.mxu0 0.0
    %2495 = vmatpush2.msra.mxu0 0.0
    %2496 = vmatprep.subr.mxu0 0.0
    %2497 = vmatpush2.msra.mxu0 0.0
    %2498 = vmatprep.subr.mxu0 0.0
    %2499 = vmatpush2.msra.mxu0 0.0
    %2500 = vmatprep.mubr.f32.mxu0 0.0
    %2501 = vmatmul.mubr.f32.gmra.mxu0 %v2434
    %v2502 = vpop.f32.mrf.mxu0
    %v2503 = vadd.f32 0.0, %v2502
    %v2504 = vpop.f32.mrf.mxu0
    %2505 = vdwg.mxu0
    %v2506 = vadd.f32 %v2430, %v2503
    %v2507 = vxor.u32 %v2506, 2147483648
    %v2508 = vmul.f32 %v2507, 1.442695
    %v2509 = vpow.pop %v2508
    %v2510 = vadd.f32 %v2509, 1.0
    %v2511 = vrcp.pop %v2510
    %v2512 = vmul.f32 1.0, %v2511
    %v2513 = vtanh.pop %v2506
    %v2514 = vmul.f32 %v2512, %v2423
    %2516 = vrot.lane.b32.xlu0 %v2513, 64
    %v2517 = vpop.permute.xlu0 %2516
    %v2519 = vmul.f32 %v2512, %v2517
    %2521 = vrot.lane.b32.xlu0 %v2519, 32
    %v2522 = vpop.permute.xlu0 %2521
    %v2524 = vadd.f32 %v2514, %v2522
    %v2525 = vtanh.pop %v2524
    %2527 = vrot.lane.b32.xlu0 %v2525, 64
    %v2528 = vpop.permute.xlu0 %2527
    %v2530 = vmul.f32 %v2512, %v2528
    %v2531 = vld [vmem:[%s690] sm:$0x3]
    %2533 = vrot.lane.b32.xlu0 %v2530, 32
    %v2534 = vpop.permute.xlu0 %2533
    %v2535 = vsel %vm270, %v2534, 0
    %2537 = vmatprep.subr.mxu0 0.0
    %2538 = vmatpush1.msra.mxu0 0.0
    %2539 = vmatprep.subr.mxu0 0.0
    %2540 = vmatpush1.msra.mxu0 0.0
    %2541 = vmatprep.subr.mxu0 0.0
    %2542 = vmatpush1.msra.mxu0 0.0
    %2543 = vmatprep.subr.mxu0 0.0
    %2544 = vmatpush1.msra.mxu0 0.0
    %2545 = vmatprep.subr.mxu0 0.0
    %2546 = vmatpush1.msra.mxu0 0.0
    %2547 = vmatprep.subr.mxu0 0.0
    %2548 = vmatpush1.msra.mxu0 0.0
    %2549 = vmatprep.subr.mxu0 0.0
    %2550 = vmatpush1.msra.mxu0 0.0
    %2551 = vmatprep.subr.mxu0 0.0
    %2552 = vmatpush1.msra.mxu0 0.0
    %2553 = vmatprep.subr.mxu0 0.0
    %2554 = vmatpush1.msra.mxu0 0.0
    %2555 = vmatprep.subr.mxu0 0.0
    %2556 = vmatpush1.msra.mxu0 0.0
    %2557 = vmatprep.subr.mxu0 0.0
    %2558 = vmatpush1.msra.mxu0 0.0
    %2559 = vmatprep.subr.mxu0 0.0
    %2560 = vmatpush1.msra.mxu0 0.0
    %2561 = vmatprep.subr.mxu0 0.0
    %2562 = vmatpush1.msra.mxu0 %v2131
    %2563 = vmatprep.subr.mxu0 0.0
    %2564 = vmatpush1.msra.mxu0 %v2130
    %2565 = vmatprep.subr.mxu0 0.0
    %2566 = vmatpush1.msra.mxu0 %v2129
    %2567 = vmatprep.subr.mxu0 0.0
    %2568 = vmatpush1.msra.mxu0 %v2128
    %2569 = vmatprep.subr.mxu0 0.0
    %2570 = vmatpush2.msra.mxu0 0.0
    %2571 = vmatprep.subr.mxu0 0.0
    %2572 = vmatpush2.msra.mxu0 0.0
    %2573 = vmatprep.subr.mxu0 0.0
    %2574 = vmatpush2.msra.mxu0 0.0
    %2575 = vmatprep.subr.mxu0 0.0
    %2576 = vmatpush2.msra.mxu0 0.0
    %2577 = vmatprep.subr.mxu0 0.0
    %2578 = vmatpush2.msra.mxu0 0.0
    %2579 = vmatprep.subr.mxu0 0.0
    %2580 = vmatpush2.msra.mxu0 0.0
    %2581 = vmatprep.subr.mxu0 0.0
    %2582 = vmatpush2.msra.mxu0 0.0
    %2583 = vmatprep.subr.mxu0 0.0
    %2584 = vmatpush2.msra.mxu0 0.0
    %2585 = vmatprep.subr.mxu0 0.0
    %2586 = vmatpush2.msra.mxu0 0.0
    %2587 = vmatprep.subr.mxu0 0.0
    %2588 = vmatpush2.msra.mxu0 0.0
    %2589 = vmatprep.subr.mxu0 0.0
    %2590 = vmatpush2.msra.mxu0 0.0
    %2591 = vmatprep.subr.mxu0 0.0
    %2592 = vmatpush2.msra.mxu0 0.0
    %2593 = vmatprep.subr.mxu0 0.0
    %2594 = vmatpush2.msra.mxu0 0.0
    %2595 = vmatprep.subr.mxu0 0.0
    %2596 = vmatpush2.msra.mxu0 0.0
    %2597 = vmatprep.subr.mxu0 0.0
    %2598 = vmatpush2.msra.mxu0 0.0
    %2599 = vmatprep.subr.mxu0 0.0
    %2600 = vmatpush2.msra.mxu0 0.0
    %2601 = vmatprep.mubr.f32.mxu0 0.0
    %2602 = vmatmul.mubr.f32.gmra.mxu0 %v2535
    %v2603 = vpop.f32.mrf.mxu0
    %v2604 = vadd.f32 0.0, %v2603
    %v2605 = vpop.f32.mrf.mxu0
    %2606 = vdwg.mxu0
    %v2607 = vadd.f32 %v2531, %v2604
    %v2608 = vxor.u32 %v2607, 2147483648
    %v2609 = vmul.f32 %v2608, 1.442695
    %v2610 = vpow.pop %v2609
    %v2611 = vadd.f32 %v2610, 1.0
    %v2612 = vrcp.pop %v2611
    %v2613 = vmul.f32 1.0, %v2612
    %v2614 = vtanh.pop %v2607
    %v2615 = vmul.f32 %v2613, %v2524
    %2617 = vrot.lane.b32.xlu0 %v2614, 64
    %v2618 = vpop.permute.xlu0 %2617
    %v2620 = vmul.f32 %v2613, %v2618
    %2622 = vrot.lane.b32.xlu0 %v2620, 32
    %v2623 = vpop.permute.xlu0 %2622
    %v2625 = vadd.f32 %v2615, %v2623
    %v2626 = vtanh.pop %v2625
    %2628 = vrot.lane.b32.xlu0 %v2626, 64
    %v2629 = vpop.permute.xlu0 %2628
    %v2631 = vmul.f32 %v2613, %v2629
    %v2632 = vld [vmem:[%s795] sm:$0x3]
    %2634 = vrot.lane.b32.xlu0 %v2631, 32
    %v2635 = vpop.permute.xlu0 %2634
    %v2636 = vsel %vm270, %v2635, 0
    %2638 = vmatprep.subr.mxu0 0.0
    %2639 = vmatpush1.msra.mxu0 0.0
    %2640 = vmatprep.subr.mxu0 0.0
    %2641 = vmatpush1.msra.mxu0 0.0
    %2642 = vmatprep.subr.mxu0 0.0
    %2643 = vmatpush1.msra.mxu0 0.0
    %2644 = vmatprep.subr.mxu0 0.0
    %2645 = vmatpush1.msra.mxu0 0.0
    %2646 = vmatprep.subr.mxu0 0.0
    %2647 = vmatpush1.msra.mxu0 0.0
    %2648 = vmatprep.subr.mxu0 0.0
    %2649 = vmatpush1.msra.mxu0 0.0
    %2650 = vmatprep.subr.mxu0 0.0
    %2651 = vmatpush1.msra.mxu0 0.0
    %2652 = vmatprep.subr.mxu0 0.0
    %2653 = vmatpush1.msra.mxu0 0.0
    %2654 = vmatprep.subr.mxu0 0.0
    %2655 = vmatpush1.msra.mxu0 0.0
    %2656 = vmatprep.subr.mxu0 0.0
    %2657 = vmatpush1.msra.mxu0 0.0
    %2658 = vmatprep.subr.mxu0 0.0
    %2659 = vmatpush1.msra.mxu0 0.0
    %2660 = vmatprep.subr.mxu0 0.0
    %2661 = vmatpush1.msra.mxu0 0.0
    %2662 = vmatprep.subr.mxu0 0.0
    %2663 = vmatpush1.msra.mxu0 %v2131
    %2664 = vmatprep.subr.mxu0 0.0
    %2665 = vmatpush1.msra.mxu0 %v2130
    %2666 = vmatprep.subr.mxu0 0.0
    %2667 = vmatpush1.msra.mxu0 %v2129
    %2668 = vmatprep.subr.mxu0 0.0
    %2669 = vmatpush1.msra.mxu0 %v2128
    %2670 = vmatprep.subr.mxu0 0.0
    %2671 = vmatpush2.msra.mxu0 0.0
    %2672 = vmatprep.subr.mxu0 0.0
    %2673 = vmatpush2.msra.mxu0 0.0
    %2674 = vmatprep.subr.mxu0 0.0
    %2675 = vmatpush2.msra.mxu0 0.0
    %2676 = vmatprep.subr.mxu0 0.0
    %2677 = vmatpush2.msra.mxu0 0.0
    %2678 = vmatprep.subr.mxu0 0.0
    %2679 = vmatpush2.msra.mxu0 0.0
    %2680 = vmatprep.subr.mxu0 0.0
    %2681 = vmatpush2.msra.mxu0 0.0
    %2682 = vmatprep.subr.mxu0 0.0
    %2683 = vmatpush2.msra.mxu0 0.0
    %2684 = vmatprep.subr.mxu0 0.0
    %2685 = vmatpush2.msra.mxu0 0.0
    %2686 = vmatprep.subr.mxu0 0.0
    %2687 = vmatpush2.msra.mxu0 0.0
    %2688 = vmatprep.subr.mxu0 0.0
    %2689 = vmatpush2.msra.mxu0 0.0
    %2690 = vmatprep.subr.mxu0 0.0
    %2691 = vmatpush2.msra.mxu0 0.0
    %2692 = vmatprep.subr.mxu0 0.0
    %2693 = vmatpush2.msra.mxu0 0.0
    %2694 = vmatprep.subr.mxu0 0.0
    %2695 = vmatpush2.msra.mxu0 0.0
    %2696 = vmatprep.subr.mxu0 0.0
    %2697 = vmatpush2.msra.mxu0 0.0
    %2698 = vmatprep.subr.mxu0 0.0
    %2699 = vmatpush2.msra.mxu0 0.0
    %2700 = vmatprep.subr.mxu0 0.0
    %2701 = vmatpush2.msra.mxu0 0.0
    %2702 = vmatprep.mubr.f32.mxu0 0.0
    %2703 = vmatmul.mubr.f32.gmra.mxu0 %v2636
    %v2704 = vpop.f32.mrf.mxu0
    %v2705 = vadd.f32 0.0, %v2704
    %v2706 = vpop.f32.mrf.mxu0
    %2707 = vdwg.mxu0
    %v2708 = vadd.f32 %v2632, %v2705
    %v2709 = vxor.u32 %v2708, 2147483648
    %v2710 = vmul.f32 %v2709, 1.442695
    %v2711 = vpow.pop %v2710
    %v2712 = vadd.f32 %v2711, 1.0
    %v2713 = vrcp.pop %v2712
    %v2714 = vmul.f32 1.0, %v2713
    %v2715 = vtanh.pop %v2708
    %v2716 = vmul.f32 %v2714, %v2625
    %2718 = vrot.lane.b32.xlu0 %v2715, 64
    %v2719 = vpop.permute.xlu0 %2718
    %v2721 = vmul.f32 %v2714, %v2719
    %2723 = vrot.lane.b32.xlu0 %v2721, 32
    %v2724 = vpop.permute.xlu0 %2723
    %v2726 = vadd.f32 %v2716, %v2724
    %v2727 = vtanh.pop %v2726
    %2729 = vrot.lane.b32.xlu0 %v2727, 64
    %v2730 = vpop.permute.xlu0 %2729
    %v2732 = vmul.f32 %v2714, %v2730
    %v2733 = vld [vmem:[%s900] sm:$0x3]
    %2735 = vrot.lane.b32.xlu0 %v2732, 32
    %v2736 = vpop.permute.xlu0 %2735
    %v2737 = vsel %vm270, %v2736, 0
    %2739 = vmatprep.subr.mxu0 0.0
    %2740 = vmatpush1.msra.mxu0 0.0
    %2741 = vmatprep.subr.mxu0 0.0
    %2742 = vmatpush1.msra.mxu0 0.0
    %2743 = vmatprep.subr.mxu0 0.0
    %2744 = vmatpush1.msra.mxu0 0.0
    %2745 = vmatprep.subr.mxu0 0.0
    %2746 = vmatpush1.msra.mxu0 0.0
    %2747 = vmatprep.subr.mxu0 0.0
    %2748 = vmatpush1.msra.mxu0 0.0
    %2749 = vmatprep.subr.mxu0 0.0
    %2750 = vmatpush1.msra.mxu0 0.0
    %2751 = vmatprep.subr.mxu0 0.0
    %2752 = vmatpush1.msra.mxu0 0.0
    %2753 = vmatprep.subr.mxu0 0.0
    %2754 = vmatpush1.msra.mxu0 0.0
    %2755 = vmatprep.subr.mxu0 0.0
    %2756 = vmatpush1.msra.mxu0 0.0
    %2757 = vmatprep.subr.mxu0 0.0
    %2758 = vmatpush1.msra.mxu0 0.0
    %2759 = vmatprep.subr.mxu0 0.0
    %2760 = vmatpush1.msra.mxu0 0.0
    %2761 = vmatprep.subr.mxu0 0.0
    %2762 = vmatpush1.msra.mxu0 0.0
    %2763 = vmatprep.subr.mxu0 0.0
    %2764 = vmatpush1.msra.mxu0 %v2131
    %2765 = vmatprep.subr.mxu0 0.0
    %2766 = vmatpush1.msra.mxu0 %v2130
    %2767 = vmatprep.subr.mxu0 0.0
    %2768 = vmatpush1.msra.mxu0 %v2129
    %2769 = vmatprep.subr.mxu0 0.0
    %2770 = vmatpush1.msra.mxu0 %v2128
    %2771 = vmatprep.subr.mxu0 0.0
    %2772 = vmatpush2.msra.mxu0 0.0
    %2773 = vmatprep.subr.mxu0 0.0
    %2774 = vmatpush2.msra.mxu0 0.0
    %2775 = vmatprep.subr.mxu0 0.0
    %2776 = vmatpush2.msra.mxu0 0.0
    %2777 = vmatprep.subr.mxu0 0.0
    %2778 = vmatpush2.msra.mxu0 0.0
    %2779 = vmatprep.subr.mxu0 0.0
    %2780 = vmatpush2.msra.mxu0 0.0
    %2781 = vmatprep.subr.mxu0 0.0
    %2782 = vmatpush2.msra.mxu0 0.0
    %2783 = vmatprep.subr.mxu0 0.0
    %2784 = vmatpush2.msra.mxu0 0.0
    %2785 = vmatprep.subr.mxu0 0.0
    %2786 = vmatpush2.msra.mxu0 0.0
    %2787 = vmatprep.subr.mxu0 0.0
    %2788 = vmatpush2.msra.mxu0 0.0
    %2789 = vmatprep.subr.mxu0 0.0
    %2790 = vmatpush2.msra.mxu0 0.0
    %2791 = vmatprep.subr.mxu0 0.0
    %2792 = vmatpush2.msra.mxu0 0.0
    %2793 = vmatprep.subr.mxu0 0.0
    %2794 = vmatpush2.msra.mxu0 0.0
    %2795 = vmatprep.subr.mxu0 0.0
    %2796 = vmatpush2.msra.mxu0 0.0
    %2797 = vmatprep.subr.mxu0 0.0
    %2798 = vmatpush2.msra.mxu0 0.0
    %2799 = vmatprep.subr.mxu0 0.0
    %2800 = vmatpush2.msra.mxu0 0.0
    %2801 = vmatprep.subr.mxu0 0.0
    %2802 = vmatpush2.msra.mxu0 0.0
    %2803 = vmatprep.mubr.f32.mxu0 0.0
    %2804 = vmatmul.mubr.f32.gmra.mxu0 %v2737
    %v2805 = vpop.f32.mrf.mxu0
    %v2806 = vadd.f32 0.0, %v2805
    %v2807 = vpop.f32.mrf.mxu0
    %2808 = vdwg.mxu0
    %v2809 = vadd.f32 %v2733, %v2806
    %v2810 = vxor.u32 %v2809, 2147483648
    %v2811 = vmul.f32 %v2810, 1.442695
    %v2812 = vpow.pop %v2811
    %v2813 = vadd.f32 %v2812, 1.0
    %v2814 = vrcp.pop %v2813
    %v2815 = vmul.f32 1.0, %v2814
    %v2816 = vtanh.pop %v2809
    %v2817 = vmul.f32 %v2815, %v2726
    %2819 = vrot.lane.b32.xlu0 %v2816, 64
    %v2820 = vpop.permute.xlu0 %2819
    %v2822 = vmul.f32 %v2815, %v2820
    %2824 = vrot.lane.b32.xlu0 %v2822, 32
    %v2825 = vpop.permute.xlu0 %2824
    %v2827 = vadd.f32 %v2817, %v2825
    %v2828 = vtanh.pop %v2827
    %2830 = vrot.lane.b32.xlu0 %v2828, 64
    %v2831 = vpop.permute.xlu0 %2830
    %v2833 = vmul.f32 %v2815, %v2831
    %v2834 = vld [vmem:[%s1005] sm:$0x3]
    %2836 = vrot.lane.b32.xlu0 %v2833, 32
    %v2837 = vpop.permute.xlu0 %2836
    %v2838 = vsel %vm270, %v2837, 0
    %2840 = vmatprep.subr.mxu0 0.0
    %2841 = vmatpush1.msra.mxu0 0.0
    %2842 = vmatprep.subr.mxu0 0.0
    %2843 = vmatpush1.msra.mxu0 0.0
    %2844 = vmatprep.subr.mxu0 0.0
    %2845 = vmatpush1.msra.mxu0 0.0
    %2846 = vmatprep.subr.mxu0 0.0
    %2847 = vmatpush1.msra.mxu0 0.0
    %2848 = vmatprep.subr.mxu0 0.0
    %2849 = vmatpush1.msra.mxu0 0.0
    %2850 = vmatprep.subr.mxu0 0.0
    %2851 = vmatpush1.msra.mxu0 0.0
    %2852 = vmatprep.subr.mxu0 0.0
    %2853 = vmatpush1.msra.mxu0 0.0
    %2854 = vmatprep.subr.mxu0 0.0
    %2855 = vmatpush1.msra.mxu0 0.0
    %2856 = vmatprep.subr.mxu0 0.0
    %2857 = vmatpush1.msra.mxu0 0.0
    %2858 = vmatprep.subr.mxu0 0.0
    %2859 = vmatpush1.msra.mxu0 0.0
    %2860 = vmatprep.subr.mxu0 0.0
    %2861 = vmatpush1.msra.mxu0 0.0
    %2862 = vmatprep.subr.mxu0 0.0
    %2863 = vmatpush1.msra.mxu0 0.0
    %2864 = vmatprep.subr.mxu0 0.0
    %2865 = vmatpush1.msra.mxu0 %v2131
    %2866 = vmatprep.subr.mxu0 0.0
    %2867 = vmatpush1.msra.mxu0 %v2130
    %2868 = vmatprep.subr.mxu0 0.0
    %2869 = vmatpush1.msra.mxu0 %v2129
    %2870 = vmatprep.subr.mxu0 0.0
    %2871 = vmatpush1.msra.mxu0 %v2128
    %2872 = vmatprep.subr.mxu0 0.0
    %2873 = vmatpush2.msra.mxu0 0.0
    %2874 = vmatprep.subr.mxu0 0.0
    %2875 = vmatpush2.msra.mxu0 0.0
    %2876 = vmatprep.subr.mxu0 0.0
    %2877 = vmatpush2.msra.mxu0 0.0
    %2878 = vmatprep.subr.mxu0 0.0
    %2879 = vmatpush2.msra.mxu0 0.0
    %2880 = vmatprep.subr.mxu0 0.0
    %2881 = vmatpush2.msra.mxu0 0.0
    %2882 = vmatprep.subr.mxu0 0.0
    %2883 = vmatpush2.msra.mxu0 0.0
    %2884 = vmatprep.subr.mxu0 0.0
    %2885 = vmatpush2.msra.mxu0 0.0
    %2886 = vmatprep.subr.mxu0 0.0
    %2887 = vmatpush2.msra.mxu0 0.0
    %2888 = vmatprep.subr.mxu0 0.0
    %2889 = vmatpush2.msra.mxu0 0.0
    %2890 = vmatprep.subr.mxu0 0.0
    %2891 = vmatpush2.msra.mxu0 0.0
    %2892 = vmatprep.subr.mxu0 0.0
    %2893 = vmatpush2.msra.mxu0 0.0
    %2894 = vmatprep.subr.mxu0 0.0
    %2895 = vmatpush2.msra.mxu0 0.0
    %2896 = vmatprep.subr.mxu0 0.0
    %2897 = vmatpush2.msra.mxu0 0.0
    %2898 = vmatprep.subr.mxu0 0.0
    %2899 = vmatpush2.msra.mxu0 0.0
    %2900 = vmatprep.subr.mxu0 0.0
    %2901 = vmatpush2.msra.mxu0 0.0
    %2902 = vmatprep.subr.mxu0 0.0
    %2903 = vmatpush2.msra.mxu0 0.0
    %2904 = vmatprep.mubr.f32.mxu0 0.0
    %2905 = vmatmul.mubr.f32.gmra.mxu0 %v2838
    %v2906 = vpop.f32.mrf.mxu0
    %v2907 = vadd.f32 0.0, %v2906
    %v2908 = vpop.f32.mrf.mxu0
    %2909 = vdwg.mxu0
    %v2910 = vadd.f32 %v2834, %v2907
    %v2911 = vxor.u32 %v2910, 2147483648
    %v2912 = vmul.f32 %v2911, 1.442695
    %v2913 = vpow.pop %v2912
    %v2914 = vadd.f32 %v2913, 1.0
    %v2915 = vrcp.pop %v2914
    %v2916 = vmul.f32 1.0, %v2915
    %v2917 = vtanh.pop %v2910
    %v2918 = vmul.f32 %v2916, %v2827
    %2920 = vrot.lane.b32.xlu0 %v2917, 64
    %v2921 = vpop.permute.xlu0 %2920
    %v2923 = vmul.f32 %v2916, %v2921
    %2925 = vrot.lane.b32.xlu0 %v2923, 32
    %v2926 = vpop.permute.xlu0 %2925
    %v2928 = vadd.f32 %v2918, %v2926
    %v2929 = vtanh.pop %v2928
    %2931 = vrot.lane.b32.xlu0 %v2929, 64
    %v2932 = vpop.permute.xlu0 %2931
    %v2934 = vmul.f32 %v2916, %v2932
    %v2935 = vld [vmem:[%s10] sm:$0xff]
    %v2936 = vld [vmem:[%s10 + $0x8] sm:$0xff]
    %v2937 = vld [vmem:[%s10 + $0x10] sm:$0xff]
    %v2938 = vld [vmem:[%s10 + $0x18] sm:$0xff]
    %v2939 = vld [vmem:[%s11] sm:$0x1]
    %v2941 = vlaneseq
    %v2942 = vshrl.u32 %v2941, 7
    %v2943 = vsub.s32 0, %v2942
    %v2944 = vrot.slane %v2939, %v2943
    %2947 = vrot.lane.b32.xlu0 %v2934, 32
    %v2948 = vpop.permute.xlu0 %2947
    %v2949 = vsel %vm270, %v2948, 0
    %2951 = vmatprep.subr.mxu0 0.0
    %2952 = vmatpush1.msra.mxu0 0.0
    %2953 = vmatprep.subr.mxu0 0.0
    %2954 = vmatpush1.msra.mxu0 0.0
    %2955 = vmatprep.subr.mxu0 0.0
    %2956 = vmatpush1.msra.mxu0 0.0
    %2957 = vmatprep.subr.mxu0 0.0
    %2958 = vmatpush1.msra.mxu0 0.0
    %2959 = vmatprep.subr.mxu0 0.0
    %2960 = vmatpush1.msra.mxu0 0.0
    %2961 = vmatprep.subr.mxu0 0.0
    %2962 = vmatpush1.msra.mxu0 0.0
    %2963 = vmatprep.subr.mxu0 0.0
    %2964 = vmatpush1.msra.mxu0 0.0
    %2965 = vmatprep.subr.mxu0 0.0
    %2966 = vmatpush1.msra.mxu0 0.0
    %2967 = vmatprep.subr.mxu0 0.0
    %2968 = vmatpush1.msra.mxu0 0.0
    %2969 = vmatprep.subr.mxu0 0.0
    %2970 = vmatpush1.msra.mxu0 0.0
    %2971 = vmatprep.subr.mxu0 0.0
    %2972 = vmatpush1.msra.mxu0 0.0
    %2973 = vmatprep.subr.mxu0 0.0
    %2974 = vmatpush1.msra.mxu0 0.0
    %2975 = vmatprep.subr.mxu0 0.0
    %2976 = vmatpush1.msra.mxu0 %v2938
    %2977 = vmatprep.subr.mxu0 0.0
    %2978 = vmatpush1.msra.mxu0 %v2937
    %2979 = vmatprep.subr.mxu0 0.0
    %2980 = vmatpush1.msra.mxu0 %v2936
    %2981 = vmatprep.subr.mxu0 0.0
    %2982 = vmatpush1.msra.mxu0 %v2935
    %2983 = vmatprep.subr.mxu0 0.0
    %2984 = vmatpush2.msra.mxu0 0.0
    %2985 = vmatprep.subr.mxu0 0.0
    %2986 = vmatpush2.msra.mxu0 0.0
    %2987 = vmatprep.subr.mxu0 0.0
    %2988 = vmatpush2.msra.mxu0 0.0
    %2989 = vmatprep.subr.mxu0 0.0
    %2990 = vmatpush2.msra.mxu0 0.0
    %2991 = vmatprep.subr.mxu0 0.0
    %2992 = vmatpush2.msra.mxu0 0.0
    %2993 = vmatprep.subr.mxu0 0.0
    %2994 = vmatpush2.msra.mxu0 0.0
    %2995 = vmatprep.subr.mxu0 0.0
    %2996 = vmatpush2.msra.mxu0 0.0
    %2997 = vmatprep.subr.mxu0 0.0
    %2998 = vmatpush2.msra.mxu0 0.0
    %2999 = vmatprep.subr.mxu0 0.0
    %3000 = vmatpush2.msra.mxu0 0.0
    %3001 = vmatprep.subr.mxu0 0.0
    %3002 = vmatpush2.msra.mxu0 0.0
    %3003 = vmatprep.subr.mxu0 0.0
    %3004 = vmatpush2.msra.mxu0 0.0
    %3005 = vmatprep.subr.mxu0 0.0
    %3006 = vmatpush2.msra.mxu0 0.0
    %3007 = vmatprep.subr.mxu0 0.0
    %3008 = vmatpush2.msra.mxu0 0.0
    %3009 = vmatprep.subr.mxu0 0.0
    %3010 = vmatpush2.msra.mxu0 0.0
    %3011 = vmatprep.subr.mxu0 0.0
    %3012 = vmatpush2.msra.mxu0 0.0
    %3013 = vmatprep.subr.mxu0 0.0
    %3014 = vmatpush2.msra.mxu0 0.0
    %3015 = vmatprep.mubr.f32.mxu0 0.0
    %3016 = vmatmul.mubr.f32.gmra.mxu0 %v2949
    %v3017 = vpop.f32.mrf.mxu0
    %v3018 = vadd.f32 %v2944, %v3017
    %v3019 = vpop.f32.mrf.mxu0
    %3020 = vdwg.mxu0
    %v3021 = vmax.f32 %v3018, 0.0
    %v3022 = vld [vmem:[%s12] sm:$0xff]
    %v3023 = vld [vmem:[%s12 + $0x8] sm:$0xff]
    %v3024 = vld [vmem:[%s13] sm:$0x1]
    %v3026 = vlaneseq
    %v3027 = vshrl.u32 %v3026, 7
    %v3028 = vsub.s32 0, %v3027
    %v3029 = vrot.slane %v3024, %v3028
    %vm3031 = vcmask 130048
    %v3033 = vsel %vm3031, %v3021, 0
    %3035 = vmatprep.subr.mxu0 0.0
    %3036 = vmatpush1.msra.mxu0 0.0
    %3037 = vmatprep.subr.mxu0 0.0
    %3038 = vmatpush1.msra.mxu0 0.0
    %3039 = vmatprep.subr.mxu0 0.0
    %3040 = vmatpush1.msra.mxu0 0.0
    %3041 = vmatprep.subr.mxu0 0.0
    %3042 = vmatpush1.msra.mxu0 0.0
    %3043 = vmatprep.subr.mxu0 0.0
    %3044 = vmatpush1.msra.mxu0 0.0
    %3045 = vmatprep.subr.mxu0 0.0
    %3046 = vmatpush1.msra.mxu0 0.0
    %3047 = vmatprep.subr.mxu0 0.0
    %3048 = vmatpush1.msra.mxu0 0.0
    %3049 = vmatprep.subr.mxu0 0.0
    %3050 = vmatpush1.msra.mxu0 0.0
    %3051 = vmatprep.subr.mxu0 0.0
    %3052 = vmatpush1.msra.mxu0 0.0
    %3053 = vmatprep.subr.mxu0 0.0
    %3054 = vmatpush1.msra.mxu0 0.0
    %3055 = vmatprep.subr.mxu0 0.0
    %3056 = vmatpush1.msra.mxu0 0.0
    %3057 = vmatprep.subr.mxu0 0.0
    %3058 = vmatpush1.msra.mxu0 0.0
    %3059 = vmatprep.subr.mxu0 0.0
    %3060 = vmatpush1.msra.mxu0 0.0
    %3061 = vmatprep.subr.mxu0 0.0
    %3062 = vmatpush1.msra.mxu0 0.0
    %3063 = vmatprep.subr.mxu0 0.0
    %3064 = vmatpush1.msra.mxu0 %v3023
    %3065 = vmatprep.subr.mxu0 0.0
    %3066 = vmatpush1.msra.mxu0 %v3022
    %3067 = vmatprep.subr.mxu0 0.0
    %3068 = vmatpush2.msra.mxu0 0.0
    %3069 = vmatprep.subr.mxu0 0.0
    %3070 = vmatpush2.msra.mxu0 0.0
    %3071 = vmatprep.subr.mxu0 0.0
    %3072 = vmatpush2.msra.mxu0 0.0
    %3073 = vmatprep.subr.mxu0 0.0
    %3074 = vmatpush2.msra.mxu0 0.0
    %3075 = vmatprep.subr.mxu0 0.0
    %3076 = vmatpush2.msra.mxu0 0.0
    %3077 = vmatprep.subr.mxu0 0.0
    %3078 = vmatpush2.msra.mxu0 0.0
    %3079 = vmatprep.subr.mxu0 0.0
    %3080 = vmatpush2.msra.mxu0 0.0
    %3081 = vmatprep.subr.mxu0 0.0
    %3082 = vmatpush2.msra.mxu0 0.0
    %3083 = vmatprep.subr.mxu0 0.0
    %3084 = vmatpush2.msra.mxu0 0.0
    %3085 = vmatprep.subr.mxu0 0.0
    %3086 = vmatpush2.msra.mxu0 0.0
    %3087 = vmatprep.subr.mxu0 0.0
    %3088 = vmatpush2.msra.mxu0 0.0
    %3089 = vmatprep.subr.mxu0 0.0
    %3090 = vmatpush2.msra.mxu0 0.0
    %3091 = vmatprep.subr.mxu0 0.0
    %3092 = vmatpush2.msra.mxu0 0.0
    %3093 = vmatprep.subr.mxu0 0.0
    %3094 = vmatpush2.msra.mxu0 0.0
    %3095 = vmatprep.subr.mxu0 0.0
    %3096 = vmatpush2.msra.mxu0 0.0
    %3097 = vmatprep.subr.mxu0 0.0
    %3098 = vmatpush2.msra.mxu0 0.0
    %3099 = vmatprep.mubr.f32.mxu0 0.0
    %3100 = vmatmul.mubr.f32.gmra.mxu0 %v3033
    %v3101 = vpop.f32.mrf.mxu0
    %v3102 = vadd.f32 %v3029, %v3101
    %v3103 = vpop.f32.mrf.mxu0
    %3104 = vdwg.mxu0
    %vm3105 = vcmask 17408
    %3106 = vst.msk [vmem:[#allocation19] sm:$0x3] %vm3105, %v3102
    // Predicated region
    $region94: #{tpu_custom_call.1} parent=1 // pred_check
      _
    $region95: #{tpu_custom_call.1} parent=1 // pred_check_branch
      %3108 = sbr.rel (0) target = $region97
    $region96: #{tpu_custom_call.1} parent=1 // pred_region
      %s3110 = ssub.s32 32, 32
      %3111 = vsyncadd [#allocation6], %s3110
      %s3113 = sshll.u32 [#allocation19], 4
      %s3114 = int_to_ptr.vmem [resolvable:$true] %s3113
      %3116 = dma.vmem_to_hbm [thread:$0]  %s3114, 32, %s14, [#allocation6]
    $region97: #{tpu_custom_call.1} parent=1 // pred_fallthru
      _
    // Predicated region
    $region98: #{tpu_custom_call.1} parent=1 // pred_check
      _
    $region99: #{tpu_custom_call.1} parent=1 // pred_check_branch
      %3118 = sbr.rel (0) target = $region101
    $region100: #{tpu_custom_call.1} parent=1 // pred_region
      %3119 = dma.done [#allocation6], 32
    $region101: #{tpu_custom_call.1} parent=1 // pred_fallthru
      _
    %3120 = vsyncpa [#allocation5], 1
    %3121 = vsyncpa [#allocation8], 1
    %3122 = vsyncpa [#allocation11], 1
    %3123 = vsyncpa [#allocation14], 1
    %3124 = vsyncpa [#allocation17], 1
    %3125 = vsyncpa [#allocation6], 1

</llo_original>
